<compile_context>
chip_gen: v7x
topology: tpu7x:2x2x1
jax: 0.10.0
libtpu: 0.0.40
codegen_flags: <defaults>
</compile_context>

<pallas_src>
import jax
import jax.numpy as jnp
from jax.experimental import pallas as pl
from jax.experimental.pallas import tpu as pltpu

# Make the kernel's and the pure-JAX reference's f32 matmuls both use the
# accurate MXU path so they can be compared at tight tolerance.
jax.config.update("jax_default_matmul_precision", "highest")

HIDDEN = 64  # fixed by nn.Linear(nhid*2, 64) inside SelfAttentionLayer


def _attention_layer_kernel(x_ref, w1b_ref, w1a_ref, b1_ref, w2bd_ref, b2_ref, o_ref):
    """One program = TB batch rows; all nins heads fused into two fat matmuls."""
    TB, nins, nhid = x_ref.shape
    H = w1a_ref.shape[-1]
    M = TB * nins

    X = x_ref[...]                                   # (TB, nins, nhid)
    Xf = X.reshape(M, nhid)                          # row (b, j) -> b*nins + j

    # "inputs" half of every head's first Linear in ONE MXU push:
    #   shared[b*nins + j, i*H + h] = X[b, j, :] . W1b[i][:, h]
    shared = jnp.dot(Xf, w1b_ref[...], preferred_element_type=jnp.float32)   # (M, nins*H)

    # "own row" half: head i uses input row i; independent of j, so compute it
    # once per (b, i) and broadcast over the nins rows.  nins is small ->
    # static unroll (switch to lax.fori_loop for large nins).
    own = jnp.concatenate(
        [jnp.dot(X[:, i, :], w1a_ref[i], preferred_element_type=jnp.float32)
         for i in range(nins)],
        axis=-1)                                                             # (TB, nins*H)
    own = jnp.broadcast_to(own[:, None, :], (TB, nins, nins * H)).reshape(M, nins * H)

    h = jnp.maximum(shared + own + b1_ref[...], 0.0)                         # (M, nins*H)

    # Linear(64 -> 1) for all heads at once via a block-diagonal weight matrix:
    # one (M, nins*H) @ (nins*H, nins) MXU push instead of nins lane-reductions.
    logits = jnp.dot(h, w2bd_ref[...], preferred_element_type=jnp.float32) + b2_ref[...]
    logits = logits.reshape(TB, nins, nins)          # [b, j, i]: input row j, head i

    # softmax over the input-row axis j (per batch row, per head)
    m = jnp.max(logits, axis=1, keepdims=True)
    e = jnp.exp(logits - m)
    inv = pl.reciprocal(jnp.sum(e, axis=1, keepdims=True), approx=False)
    wts = e * inv                                    # (TB, nins_j, nins_i)

    # weighted sum of the inputs: out[b, i, d] = sum_j wts[b, j, i] * X[b, j, d]
    out = jnp.sum(wts[:, :, :, None] * X[:, :, None, :], axis=1)             # (TB, nins, nhid)

    # lane-dense store, already in the final (b, i, k) element order
    o_ref[...] = out.reshape(TB, nins * nhid).astype(o_ref.dtype)


def _pick_block_batch(B, nins):
    """Batch rows per grid step: divisor of B, sublane-aligned, ~128 MXU rows."""
    target = max(1, 128 // max(1, nins))             # aim for TB * nins ~ 128
    tb = B                                           # fallback: whole batch per step
    for cand in range(min(B, target), 0, -1):
        if B % cand == 0 and (cand % 8 == 0 or cand == B):
            tb = cand
            break
    if tb == B and B > 1:                            # prefer >= 2 steps (2 TCs on v7x)
        for cand in range(B // 2, 0, -1):
            if B % cand == 0 and cand % 8 == 0:
                return cand
    return tb


@jax.jit
def attention_layer(x, W1_all, b1_all, W2t_all, b2_all):
    """x: (B, nins, nhid) -> (B, nins, nhid); matches PyTorch AttentionLayer.forward."""
    B, nins, nhid = x.shape
    H = W1_all.shape[-1]

    # Re-pack the per-head parameters for the fused kernel (traced, one-time):
    W1a = W1_all[:, :nhid, :]                                          # own-row half  (nins, nhid, H)
    W1b_stk = jnp.transpose(W1_all[:, nhid:, :], (1, 0, 2)).reshape(nhid, nins * H)
    b1_flat = b1_all.reshape(1, nins * H)
    w2 = W2t_all.reshape(nins, H)
    W2_bd = (w2[:, :, None] * jnp.eye(nins, dtype=w2.dtype)[:, None, :]).reshape(nins * H, nins)
    b2_row = b2_all.reshape(1, nins)       # cancels in the softmax; kept for fidelity

    TB = _pick_block_batch(B, nins)

    out = pl.pallas_call(
        _attention_layer_kernel,
        out_shape=jax.ShapeDtypeStruct((B, nins * nhid), x.dtype),
        grid_spec=pl.GridSpec(
            grid=(B // TB,),
            in_specs=[
                pl.BlockSpec((TB, nins, nhid), lambda b: (b, 0, 0)),   # inputs, TB rows / step
                pl.BlockSpec((nhid, nins * H), lambda b: (0, 0)),      # fused "inputs" half of W1
                pl.BlockSpec((nins, nhid, H), lambda b: (0, 0, 0)),    # "own row" half of W1
                pl.BlockSpec((1, nins * H), lambda b: (0, 0)),         # b1 (all heads)
                pl.BlockSpec((nins * H, nins), lambda b: (0, 0)),      # block-diagonal W2
                pl.BlockSpec((1, nins), lambda b: (0, 0)),             # b2 (all heads)
            ],
            out_specs=pl.BlockSpec((TB, nins * nhid), lambda b: (b, 0)),
        ),
        compiler_params=pltpu.CompilerParams(
            dimension_semantics=("parallel",)),      # batch blocks across TCs on v7x
    )(x, W1b_stk, W1a, b1_flat, W2_bd, b2_row)

    # (B, nins*nhid) -> (B, nins, nhid): contiguous row-major view, equivalent to
    # torch.cat([...], dim=1).view(inputs.shape)
    return out.reshape(B, nins, nhid)


def attention_layer_ref(x, W1_all, b1_all, W2t_all, b2_all):
    """Pure-JAX reimplementation of the PyTorch AttentionLayer forward."""
    B, nins, nhid = x.shape
    outs = []
    for i in range(nins):
        own = jnp.broadcast_to(x[:, i:i + 1, :], (B, nins, nhid))
        tmp = jnp.concatenate([own, x], axis=2)                      # (B, nins, 2*nhid)
        h = jax.nn.relu(tmp @ W1_all[i] + b1_all[i, 0])              # (B, nins, 64)
        a = jnp.sum(h * W2t_all[i, 0], axis=-1) + b2_all[i, 0, 0]    # (B, nins)
        w = jax.nn.softmax(a, axis=1)
        outs.append(jnp.sum(x * w[:, :, None], axis=1))              # (B, nhid)
    return jnp.stack(outs, axis=1)                                   # (B, nins, nhid)


def gear_head(h, Wc, bc):
    # GEAR.forward tail for pool='mean' (tiny; plain JAX).
    # TODO(synk): fold the mean-pool + Linear + log_softmax head into the last
    # attention kernel step if it ever shows up in a profile.
    pooled = jnp.mean(h, axis=1)
    z = jax.nn.relu(pooled @ Wc + bc)
    return jax.nn.log_softmax(z, axis=1)


if __name__ == "__main__":
    B, nins, nhid = 16, 4, 32            # small demo shapes
    nlayer, nclass = 2, 3

    key = jax.random.PRNGKey(0)
    key, kx, kwc, kbc = jax.random.split(key, 4)
    x = jax.random.normal(kx, (B, nins, nhid), jnp.float32)

    def make_layer_params(k):
        k1, k2, k3, k4 = jax.random.split(k, 4)
        return (0.1 * jax.random.normal(k1, (nins, 2 * nhid, HIDDEN), jnp.float32),
                0.1 * jax.random.normal(k2, (nins, 1, HIDDEN), jnp.float32),
                0.1 * jax.random.normal(k3, (nins, 1, HIDDEN), jnp.float32),  # W2 stored transposed
                0.1 * jax.random.normal(k4, (nins, 1, 1), jnp.float32))

    params = [make_layer_params(k) for k in jax.random.split(key, nlayer)]
    Wc = 0.1 * jax.random.normal(kwc, (nhid, nclass), jnp.float32)
    bc = 0.1 * jax.random.normal(kbc, (nclass,), jnp.float32)

    # GEAR forward with Pallas attention layers (pool='mean')
    h = x
    for p in params:
        h = attention_layer(h, *p)
    h = jax.block_until_ready(h)
    logp = gear_head(h, Wc, bc)

    # pure-JAX reference
    h_ref = x
    for p in params:
        h_ref = attention_layer_ref(h_ref, *p)
    logp_ref = gear_head(h_ref, Wc, bc)

    assert h.shape == (B, nins, nhid)
    assert jnp.allclose(h, h_ref, atol=1e-4, rtol=1e-4), "attention stack mismatch vs reference"
    assert jnp.allclose(logp, logp_ref, atol=1e-4, rtol=1e-4), "GEAR head mismatch vs reference"

    print("KERNEL_OK")
</pallas_src>

<mosaic_0001>
module attributes {stable_mosaic.version = 11 : i64} {
  func.func @_attention_layer_kernel(%arg0: i32, %arg1: memref<8x4x32xf32, #tpu.memory_space<vmem>>, %arg2: memref<32x256xf32, #tpu.memory_space<vmem>>, %arg3: memref<4x32x64xf32, #tpu.memory_space<vmem>>, %arg4: memref<1x256xf32, #tpu.memory_space<vmem>>, %arg5: memref<256x4xf32, #tpu.memory_space<vmem>>, %arg6: memref<1x4xf32, #tpu.memory_space<vmem>>, %arg7: memref<8x128xf32, #tpu.memory_space<vmem>>) attributes {dimension_semantics = [#tpu.dimension_semantics<parallel>], iteration_bounds = array<i64: 2>, scalar_prefetch = 0 : i64, scratch_operands = 0 : i64, tpu.core_type = #tpu.core_type<tc>, window_params = [{transform_indices = @transform_0, window_bounds = array<i64: 8, 4, 32>}, {pipeline_mode = #tpu.pipeline_mode<synchronous>, transform_indices = @transform_1, window_bounds = array<i64: 32, 256>}, {pipeline_mode = #tpu.pipeline_mode<synchronous>, transform_indices = @transform_2, window_bounds = array<i64: 4, 32, 64>}, {pipeline_mode = #tpu.pipeline_mode<synchronous>, transform_indices = @transform_3, window_bounds = array<i64: 1, 256>}, {pipeline_mode = #tpu.pipeline_mode<synchronous>, transform_indices = @transform_4, window_bounds = array<i64: 256, 4>}, {pipeline_mode = #tpu.pipeline_mode<synchronous>, transform_indices = @transform_5, window_bounds = array<i64: 1, 4>}, {transform_indices = @transform_6, window_bounds = array<i64: 8, 128>}]} {
    %c0 = arith.constant 0 : index
    %c0_0 = arith.constant 0 : index
    %c0_1 = arith.constant 0 : index
    %0 = vector.load %arg1[%c0, %c0_0, %c0_1] : memref<8x4x32xf32, #tpu.memory_space<vmem>>, vector<8x4x32xf32>
    %1 = vector.shape_cast %0 : vector<8x4x32xf32> to vector<32x32xf32>
    %c0_2 = arith.constant 0 : index
    %c0_3 = arith.constant 0 : index
    %2 = vector.load %arg2[%c0_2, %c0_3] : memref<32x256xf32, #tpu.memory_space<vmem>>, vector<32x256xf32>
    %cst = arith.constant dense<0.000000e+00> : vector<32x256xf32>
    %3 = tpu.matmul %1, %2, %cst {dimension_numbers = #tpu.dot_dimension_numbers<[1], [0], [0], [1], [0, 0, 1, 1], [], []>, precision = #tpu.contract_precision<fp32>} : vector<32x32xf32>, vector<32x256xf32>, vector<32x256xf32> -> vector<32x256xf32>
    %4 = vector.extract_strided_slice %0 {offsets = [0, 0, 0], sizes = [8, 1, 32], strides = [1, 1, 1]} : vector<8x4x32xf32> to vector<8x1x32xf32>
    %5 = vector.shape_cast %4 : vector<8x1x32xf32> to vector<8x32xf32>
    %c0_4 = arith.constant 0 : index
    %c0_5 = arith.constant 0 : index
    %c0_6 = arith.constant 0 : index
    %6 = vector.load %arg3[%c0_4, %c0_5, %c0_6] : memref<4x32x64xf32, #tpu.memory_space<vmem>>, vector<1x32x64xf32>
    %7 = vector.shape_cast %6 : vector<1x32x64xf32> to vector<32x64xf32>
    %cst_7 = arith.constant dense<0.000000e+00> : vector<8x64xf32>
    %8 = tpu.matmul %5, %7, %cst_7 {dimension_numbers = #tpu.dot_dimension_numbers<[1], [0], [0], [1], [0, 0, 1, 1], [], []>, precision = #tpu.contract_precision<fp32>} : vector<8x32xf32>, vector<32x64xf32>, vector<8x64xf32> -> vector<8x64xf32>
    %9 = vector.extract_strided_slice %0 {offsets = [0, 1, 0], sizes = [8, 1, 32], strides = [1, 1, 1]} : vector<8x4x32xf32> to vector<8x1x32xf32>
    %10 = vector.shape_cast %9 : vector<8x1x32xf32> to vector<8x32xf32>
    %c1 = arith.constant 1 : index
    %c0_8 = arith.constant 0 : index
    %c0_9 = arith.constant 0 : index
    %11 = vector.load %arg3[%c1, %c0_8, %c0_9] : memref<4x32x64xf32, #tpu.memory_space<vmem>>, vector<1x32x64xf32>
    %12 = vector.shape_cast %11 : vector<1x32x64xf32> to vector<32x64xf32>
    %cst_10 = arith.constant dense<0.000000e+00> : vector<8x64xf32>
    %13 = tpu.matmul %10, %12, %cst_10 {dimension_numbers = #tpu.dot_dimension_numbers<[1], [0], [0], [1], [0, 0, 1, 1], [], []>, precision = #tpu.contract_precision<fp32>} : vector<8x32xf32>, vector<32x64xf32>, vector<8x64xf32> -> vector<8x64xf32>
    %14 = vector.extract_strided_slice %0 {offsets = [0, 2, 0], sizes = [8, 1, 32], strides = [1, 1, 1]} : vector<8x4x32xf32> to vector<8x1x32xf32>
    %15 = vector.shape_cast %14 : vector<8x1x32xf32> to vector<8x32xf32>
    %c2 = arith.constant 2 : index
    %c0_11 = arith.constant 0 : index
    %c0_12 = arith.constant 0 : index
    %16 = vector.load %arg3[%c2, %c0_11, %c0_12] : memref<4x32x64xf32, #tpu.memory_space<vmem>>, vector<1x32x64xf32>
    %17 = vector.shape_cast %16 : vector<1x32x64xf32> to vector<32x64xf32>
    %cst_13 = arith.constant dense<0.000000e+00> : vector<8x64xf32>
    %18 = tpu.matmul %15, %17, %cst_13 {dimension_numbers = #tpu.dot_dimension_numbers<[1], [0], [0], [1], [0, 0, 1, 1], [], []>, precision = #tpu.contract_precision<fp32>} : vector<8x32xf32>, vector<32x64xf32>, vector<8x64xf32> -> vector<8x64xf32>
    %19 = vector.extract_strided_slice %0 {offsets = [0, 3, 0], sizes = [8, 1, 32], strides = [1, 1, 1]} : vector<8x4x32xf32> to vector<8x1x32xf32>
    %20 = vector.shape_cast %19 : vector<8x1x32xf32> to vector<8x32xf32>
    %c3 = arith.constant 3 : index
    %c0_14 = arith.constant 0 : index
    %c0_15 = arith.constant 0 : index
    %21 = vector.load %arg3[%c3, %c0_14, %c0_15] : memref<4x32x64xf32, #tpu.memory_space<vmem>>, vector<1x32x64xf32>
    %22 = vector.shape_cast %21 : vector<1x32x64xf32> to vector<32x64xf32>
    %cst_16 = arith.constant dense<0.000000e+00> : vector<8x64xf32>
    %23 = tpu.matmul %20, %22, %cst_16 {dimension_numbers = #tpu.dot_dimension_numbers<[1], [0], [0], [1], [0, 0, 1, 1], [], []>, precision = #tpu.contract_precision<fp32>} : vector<8x32xf32>, vector<32x64xf32>, vector<8x64xf32> -> vector<8x64xf32>
    %24 = tpu.concatenate %8, %13, %18, %23 in 1 : vector<8x64xf32>, vector<8x64xf32>, vector<8x64xf32>, vector<8x64xf32> -> vector<8x256xf32>
    %25 = vector.shape_cast %24 : vector<8x256xf32> to vector<8x1x256xf32>
    %26 = vector.shape_cast %25 : vector<8x1x256xf32> to vector<8x1x256xf32>
    %27 = vector.broadcast %26 : vector<8x1x256xf32> to vector<8x4x256xf32>
    %28 = vector.shape_cast %27 : vector<8x4x256xf32> to vector<32x256xf32>
    %29 = arith.addf %3, %28 : vector<32x256xf32>
    %c0_17 = arith.constant 0 : index
    %c0_18 = arith.constant 0 : index
    %30 = vector.load %arg4[%c0_17, %c0_18] : memref<1x256xf32, #tpu.memory_space<vmem>>, vector<1x256xf32>
    %31 = vector.broadcast %30 : vector<1x256xf32> to vector<32x256xf32>
    %32 = arith.addf %29, %31 : vector<32x256xf32>
    %cst_19 = arith.constant 0.000000e+00 : f32
    %33 = vector.broadcast %cst_19 : f32 to vector<32x256xf32>
    %34 = arith.maximumf %32, %33 : vector<32x256xf32>
    %c0_20 = arith.constant 0 : index
    %c0_21 = arith.constant 0 : index
    %35 = vector.load %arg5[%c0_20, %c0_21] : memref<256x4xf32, #tpu.memory_space<vmem>>, vector<256x4xf32>
    %cst_22 = arith.constant dense<0.000000e+00> : vector<32x4xf32>
    %36 = tpu.matmul %34, %35, %cst_22 {dimension_numbers = #tpu.dot_dimension_numbers<[1], [0], [0], [1], [0, 0, 1, 1], [], []>, precision = #tpu.contract_precision<fp32>} : vector<32x256xf32>, vector<256x4xf32>, vector<32x4xf32> -> vector<32x4xf32>
    %c0_23 = arith.constant 0 : index
    %c0_24 = arith.constant 0 : index
    %37 = vector.load %arg6[%c0_23, %c0_24] : memref<1x4xf32, #tpu.memory_space<vmem>>, vector<1x4xf32>
    %38 = vector.broadcast %37 : vector<1x4xf32> to vector<32x4xf32>
    %39 = arith.addf %36, %38 : vector<32x4xf32>
    %40 = vector.shape_cast %39 : vector<32x4xf32> to vector<8x4x4xf32>
    %cst_25 = arith.constant dense<0xFF800000> : vector<8x4xf32>
    %41 = vector.multi_reduction <maximumf>, %40, %cst_25 [1] : vector<8x4x4xf32> to vector<8x4xf32>
    %42 = vector.shape_cast %41 : vector<8x4xf32> to vector<8x1x4xf32>
    %43 = vector.broadcast %42 : vector<8x1x4xf32> to vector<8x4x4xf32>
    %44 = arith.subf %40, %43 : vector<8x4x4xf32>
    %45 = math.exp %44 : vector<8x4x4xf32>
    %cst_26 = arith.constant dense<0.000000e+00> : vector<8x4xf32>
    %46 = vector.multi_reduction <add>, %45, %cst_26 [1] : vector<8x4x4xf32> to vector<8x4xf32>
    %47 = vector.shape_cast %46 : vector<8x4xf32> to vector<8x1x4xf32>
    %48 = tpu.reciprocal %47 : vector<8x1x4xf32> -> vector<8x1x4xf32>
    %49 = vector.broadcast %48 : vector<8x1x4xf32> to vector<8x4x4xf32>
    %50 = arith.mulf %45, %49 : vector<8x4x4xf32>
    %51 = vector.shape_cast %50 : vector<8x4x4xf32> to vector<8x4x4x1xf32>
    %52 = vector.shape_cast %0 : vector<8x4x32xf32> to vector<8x4x1x32xf32>
    %53 = vector.broadcast %51 : vector<8x4x4x1xf32> to vector<8x4x4x32xf32>
    %54 = vector.broadcast %52 : vector<8x4x1x32xf32> to vector<8x4x4x32xf32>
    %55 = arith.mulf %53, %54 : vector<8x4x4x32xf32>
    %cst_27 = arith.constant dense<0.000000e+00> : vector<8x4x32xf32>
    %56 = vector.multi_reduction <add>, %55, %cst_27 [1] : vector<8x4x4x32xf32> to vector<8x4x32xf32>
    %57 = vector.shape_cast %56 : vector<8x4x32xf32> to vector<8x128xf32>
    %c0_28 = arith.constant 0 : index
    %c0_29 = arith.constant 0 : index
    %58 = vector.load %arg7[%c0_28, %c0_29] : memref<8x128xf32, #tpu.memory_space<vmem>>, vector<8x128xf32>
    tpu.vector_store %arg7[%c0_28, %c0_29], %57 {strides = array<i32>} : memref<8x128xf32, #tpu.memory_space<vmem>>, vector<8x128xf32>,
    return
  }
  func.func @transform_0(%arg0: i32) -> (i32, i32, i32) {
    %c0_i32 = arith.constant 0 : i32
    %c0_i32_0 = arith.constant 0 : i32
    %c0_i32_1 = arith.constant 0 : i32
    return %arg0, %c0_i32, %c0_i32_0 : i32, i32, i32
  }
  func.func @transform_1(%arg0: i32) -> (i32, i32) {
    %c0_i32 = arith.constant 0 : i32
    %c0_i32_0 = arith.constant 0 : i32
    %c0_i32_1 = arith.constant 0 : i32
    return %c0_i32, %c0_i32_0 : i32, i32
  }
  func.func @transform_2(%arg0: i32) -> (i32, i32, i32) {
    %c0_i32 = arith.constant 0 : i32
    %c0_i32_0 = arith.constant 0 : i32
    %c0_i32_1 = arith.constant 0 : i32
    %c0_i32_2 = arith.constant 0 : i32
    return %c0_i32, %c0_i32_0, %c0_i32_1 : i32, i32, i32
  }
  func.func @transform_3(%arg0: i32) -> (i32, i32) {
    %c0_i32 = arith.constant 0 : i32
    %c0_i32_0 = arith.constant 0 : i32
    %c0_i32_1 = arith.constant 0 : i32
    return %c0_i32, %c0_i32_0 : i32, i32
  }
  func.func @transform_4(%arg0: i32) -> (i32, i32) {
    %c0_i32 = arith.constant 0 : i32
    %c0_i32_0 = arith.constant 0 : i32
    %c0_i32_1 = arith.constant 0 : i32
    return %c0_i32, %c0_i32_0 : i32, i32
  }
  func.func @transform_5(%arg0: i32) -> (i32, i32) {
    %c0_i32 = arith.constant 0 : i32
    %c0_i32_0 = arith.constant 0 : i32
    %c0_i32_1 = arith.constant 0 : i32
    return %c0_i32, %c0_i32_0 : i32, i32
  }
  func.func @transform_6(%arg0: i32) -> (i32, i32) {
    %c0_i32 = arith.constant 0 : i32
    %c0_i32_0 = arith.constant 0 : i32
    return %arg0, %c0_i32 : i32, i32
  }
}

</mosaic_0001>

<llo_original>
// kernel: attention_layer.1
$region0: #{attention_layer.1}
  #allocation0 [shape = 'u32[]', space=smem, size = 0x4, offset = 0x4, fixed_abs, tag = 'smem constant byte address 0x4 - core index']
  #allocation1 [shape = 'u32[144,128]{1,0:T(1,128)}', space=vmem, size = 0x12000, scoped, tag = 'internal scratch']
  %s0 = inlined_call_operand.vmem [shape: f32[16,4,32], index: 0, kind: input, shape index: {}]
  %s1 = inlined_call_operand.vmem [shape: f32[32,256], index: 1, kind: input, shape index: {}]
  %s2 = inlined_call_operand.vmem [shape: f32[4,32,64], index: 2, kind: input, shape index: {}]
  %s3 = inlined_call_operand.vmem [shape: f32[1,256], index: 3, kind: input, shape index: {}]
  %s4 = inlined_call_operand.vmem [shape: f32[256,4], index: 4, kind: input, shape index: {}]
  %s5 = inlined_call_operand.vmem [shape: f32[1,4], index: 5, kind: input, shape index: {}]
  %s6 = inlined_call_operand.vmem [shape: f32[16,128], index: 6, kind: output, shape index: {}]
  %s7 = sld [smem:[#allocation0]]
  $region57: #{attention_layer.1} parent=0
    _
  %s9 = ssub.s32 1, %s7
  %s10 = scalar_select 0, %s9, %s7
  loop: start=0, step=1, limit=4
  $region2: #{attention_layer.1} parent=0 // loop_pre_header
    _
  $region3: #{attention_layer.1} parent=0 // loop_header
    %s12 = sphi 0, %s16
    %p13 = scmp.ge.s32.totalorder %s12, 4
    %s22 = sphi 0, %s24
    %s25 = sphi 0, %s22
    %s26 = sphi 0, %s25
    %s42 = sphi 0, %s26
    %s46 = sphi 0, %s46
    %s48 = sphi 0, %s46
    %s49 = sphi 0, %s48
    %s63 = sphi 0, %s49
    %s67 = sphi 0, %s67
    %s69 = sphi 0, %s67
    %s70 = sphi 0, %s69
    %s84 = sphi 0, %s70
    %s88 = sphi 0, %s88
    %s90 = sphi 0, %s88
    %s91 = sphi 0, %s90
    %s105 = sphi 0, %s91
    %s109 = sphi 0, %s109
    %s111 = sphi 0, %s109
    %s112 = sphi 0, %s111
    %s126 = sphi 0, %s112
    %s130 = sphi 0, %s130
    %s132 = sphi 0, %s130
    %s133 = sphi 0, %s132
    %s147 = sphi 0, %s133
    %s153 = sphi 0, %s155
    %s156 = sphi 0, %s153
    %s157 = sphi 0, %s156
    %s173 = sphi 0, %s157
  $region4: #{attention_layer.1} parent=0 // loop_header_branch
    %15 = sbr.rel (%p13) target = $region8
  $region5: #{attention_layer.1} parent=0 // loop_body
    %s17 = ssub.s32 %s12, 1
    %s18 = ssub.s32 %s12, 2
    %s19 = sadd.s32 %s12, 1
    %s20 = ssub.s32 %s12, %s19
    %p21 = scmp.eq.s32.totalorder %s20, 0
    %s23 = sadd.s32 %s22, 1
    %s24 = scalar_select %p21, %s22, %s23
    %p27 = pneg %p21
    %p28 = scmp.eq.s32.totalorder %s12, 1
    %p29 = por %p27, %p28
    %p30 = scmp.ne.s32.totalorder %s22, %s25
    %p31 = scmp.eq.s32.totalorder %s12, 0
    %p32 = por %p30, %p31
    %p33 = scmp.ne.s32.totalorder %s22, %s25
    %p34 = scmp.eq.s32.totalorder %s17, 1
    %p35 = por %p33, %p34
    %p36 = scmp.ne.s32.totalorder %s25, %s26
    %p37 = scmp.eq.s32.totalorder %s17, 0
    %p38 = por %p36, %p37
    %p39 = scmp.ne.s32.totalorder %s25, %s26
    %p40 = scmp.eq.s32.totalorder %s18, 1
    %p41 = por %p39, %p40
    %p43 = scmp.ne.s32.totalorder %s26, %s42
    %p44 = scmp.eq.s32.totalorder %s18, 0
    %p45 = por %p43, %p44
    %s47 = sadd.s32 %s46, 1
    %p50 = scmp.eq.s32.totalorder %s12, 1
    %p51 = scmp.ne.s32.totalorder %s46, %s48
    %p52 = scmp.eq.s32.totalorder %s12, 0
    %p53 = por %p51, %p52
    %p54 = scmp.ne.s32.totalorder %s46, %s48
    %p55 = scmp.eq.s32.totalorder %s17, 1
    %p56 = por %p54, %p55
    %p57 = scmp.ne.s32.totalorder %s48, %s49
    %p58 = scmp.eq.s32.totalorder %s17, 0
    %p59 = por %p57, %p58
    %p60 = scmp.ne.s32.totalorder %s48, %s49
    %p61 = scmp.eq.s32.totalorder %s18, 1
    %p62 = por %p60, %p61
    %p64 = scmp.ne.s32.totalorder %s49, %s63
    %p65 = scmp.eq.s32.totalorder %s18, 0
    %p66 = por %p64, %p65
    %s68 = sadd.s32 %s67, 1
    %p71 = scmp.eq.s32.totalorder %s12, 1
    %p72 = scmp.ne.s32.totalorder %s67, %s69
    %p73 = scmp.eq.s32.totalorder %s12, 0
    %p74 = por %p72, %p73
    %p75 = scmp.ne.s32.totalorder %s67, %s69
    %p76 = scmp.eq.s32.totalorder %s17, 1
    %p77 = por %p75, %p76
    %p78 = scmp.ne.s32.totalorder %s69, %s70
    %p79 = scmp.eq.s32.totalorder %s17, 0
    %p80 = por %p78, %p79
    %p81 = scmp.ne.s32.totalorder %s69, %s70
    %p82 = scmp.eq.s32.totalorder %s18, 1
    %p83 = por %p81, %p82
    %p85 = scmp.ne.s32.totalorder %s70, %s84
    %p86 = scmp.eq.s32.totalorder %s18, 0
    %p87 = por %p85, %p86
    %s89 = sadd.s32 %s88, 1
    %p92 = scmp.eq.s32.totalorder %s12, 1
    %p93 = scmp.ne.s32.totalorder %s88, %s90
    %p94 = scmp.eq.s32.totalorder %s12, 0
    %p95 = por %p93, %p94
    %p96 = scmp.ne.s32.totalorder %s88, %s90
    %p97 = scmp.eq.s32.totalorder %s17, 1
    %p98 = por %p96, %p97
    %p99 = scmp.ne.s32.totalorder %s90, %s91
    %p100 = scmp.eq.s32.totalorder %s17, 0
    %p101 = por %p99, %p100
    %p102 = scmp.ne.s32.totalorder %s90, %s91
    %p103 = scmp.eq.s32.totalorder %s18, 1
    %p104 = por %p102, %p103
    %p106 = scmp.ne.s32.totalorder %s91, %s105
    %p107 = scmp.eq.s32.totalorder %s18, 0
    %p108 = por %p106, %p107
    %s110 = sadd.s32 %s109, 1
    %p113 = scmp.eq.s32.totalorder %s12, 1
    %p114 = scmp.ne.s32.totalorder %s109, %s111
    %p115 = scmp.eq.s32.totalorder %s12, 0
    %p116 = por %p114, %p115
    %p117 = scmp.ne.s32.totalorder %s109, %s111
    %p118 = scmp.eq.s32.totalorder %s17, 1
    %p119 = por %p117, %p118
    %p120 = scmp.ne.s32.totalorder %s111, %s112
    %p121 = scmp.eq.s32.totalorder %s17, 0
    %p122 = por %p120, %p121
    %p123 = scmp.ne.s32.totalorder %s111, %s112
    %p124 = scmp.eq.s32.totalorder %s18, 1
    %p125 = por %p123, %p124
    %p127 = scmp.ne.s32.totalorder %s112, %s126
    %p128 = scmp.eq.s32.totalorder %s18, 0
    %p129 = por %p127, %p128
    %s131 = sadd.s32 %s130, 1
    %p134 = scmp.eq.s32.totalorder %s12, 1
    %p135 = scmp.ne.s32.totalorder %s130, %s132
    %p136 = scmp.eq.s32.totalorder %s12, 0
    %p137 = por %p135, %p136
    %p138 = scmp.ne.s32.totalorder %s130, %s132
    %p139 = scmp.eq.s32.totalorder %s17, 1
    %p140 = por %p138, %p139
    %p141 = scmp.ne.s32.totalorder %s132, %s133
    %p142 = scmp.eq.s32.totalorder %s17, 0
    %p143 = por %p141, %p142
    %p144 = scmp.ne.s32.totalorder %s132, %s133
    %p145 = scmp.eq.s32.totalorder %s18, 1
    %p146 = por %p144, %p145
    %p148 = scmp.ne.s32.totalorder %s133, %s147
    %p149 = scmp.eq.s32.totalorder %s18, 0
    %p150 = por %p148, %p149
    %s151 = ssub.s32 %s12, %s19
    %p152 = scmp.eq.s32.totalorder %s151, 0
    %s154 = sadd.s32 %s153, 1
    %s155 = scalar_select %p152, %s153, %s154
    %p158 = pneg %p152
    %p159 = scmp.eq.s32.totalorder %s12, 1
    %p160 = por %p158, %p159
    %p161 = scmp.ne.s32.totalorder %s153, %s156
    %p162 = scmp.eq.s32.totalorder %s12, 0
    %p163 = por %p161, %p162
    %p164 = scmp.ne.s32.totalorder %s153, %s156
    %p165 = scmp.eq.s32.totalorder %s17, 1
    %p166 = por %p164, %p165
    %p167 = scmp.ne.s32.totalorder %s156, %s157
    %p168 = scmp.eq.s32.totalorder %s17, 0
    %p169 = por %p167, %p168
    %p170 = scmp.ne.s32.totalorder %s156, %s157
    %p171 = scmp.eq.s32.totalorder %s18, 1
    %p172 = por %p170, %p171
    %p174 = scmp.ne.s32.totalorder %s157, %s173
    %p175 = scmp.eq.s32.totalorder %s18, 0
    %p176 = por %p174, %p175
    %p177 = scmp.le.s32.totalorder 1, %s12
    %p178 = scmp.lt.s32.totalorder %s12, 3
    %p179 = pnand %p177, %p178
    %p180 = pneg %p179
    // Predicated region
    $region9: #{attention_layer.1} parent=5 // pred_check
      _
    $region10: #{attention_layer.1} parent=5 // pred_check_branch
      %182 = sbr.rel (%p179) target = $region12
    $region11: #{attention_layer.1} parent=5 // pred_region
      %s183 = ssub.s32 %s12, 1
      // Predicated region
      $region13: #{attention_layer.1} parent=11 // pred_check
        %p184 = pneg %p59
      $region14: #{attention_layer.1} parent=11 // pred_check_branch
        %186 = sbr.rel (%p184) target = $region16
      $region15: #{attention_layer.1} parent=11 // pred_region
        _
      $region16: #{attention_layer.1} parent=11 // pred_fallthru
        _
      // Predicated region
      $region17: #{attention_layer.1} parent=11 // pred_check
        %p187 = pneg %p80
      $region18: #{attention_layer.1} parent=11 // pred_check_branch
        %189 = sbr.rel (%p187) target = $region20
      $region19: #{attention_layer.1} parent=11 // pred_region
        _
      $region20: #{attention_layer.1} parent=11 // pred_fallthru
        _
      // Predicated region
      $region21: #{attention_layer.1} parent=11 // pred_check
        %p190 = pneg %p101
      $region22: #{attention_layer.1} parent=11 // pred_check_branch
        %192 = sbr.rel (%p190) target = $region24
      $region23: #{attention_layer.1} parent=11 // pred_region
        _
      $region24: #{attention_layer.1} parent=11 // pred_fallthru
        _
      // Predicated region
      $region25: #{attention_layer.1} parent=11 // pred_check
        %p193 = pneg %p122
      $region26: #{attention_layer.1} parent=11 // pred_check_branch
        %195 = sbr.rel (%p193) target = $region28
      $region27: #{attention_layer.1} parent=11 // pred_region
        _
      $region28: #{attention_layer.1} parent=11 // pred_fallthru
        _
      // Predicated region
      $region29: #{attention_layer.1} parent=11 // pred_check
        %p196 = pneg %p143
      $region30: #{attention_layer.1} parent=11 // pred_check_branch
        %198 = sbr.rel (%p196) target = $region32
      $region31: #{attention_layer.1} parent=11 // pred_region
        _
      $region32: #{attention_layer.1} parent=11 // pred_fallthru
        _
    $region12: #{attention_layer.1} parent=5 // pred_fallthru
      _
    %p199 = scmp.lt.s32.totalorder %s12, 2
    // Predicated region
    $region33: #{attention_layer.1} parent=5 // pred_check
      %p200 = pneg %p199
    $region34: #{attention_layer.1} parent=5 // pred_check_branch
      %202 = sbr.rel (%p200) target = $region36
    $region35: #{attention_layer.1} parent=5 // pred_region
      // Predicated region
      $region37: #{attention_layer.1} parent=35 // pred_check
        %p203 = pneg %p32
      $region38: #{attention_layer.1} parent=35 // pred_check_branch
        %205 = sbr.rel (%p203) target = $region40
      $region39: #{attention_layer.1} parent=35 // pred_region
        %s206 = smul.u32 8, %s12
        %p207 = scmp.lt.s32.totalorder %s206, 15
        %s208 = scalar_select %p207, %s206, 15
        %s209 = smul.addr %s208, 4
        %s210 = scalar_lea.vmem %s0, %s209
        %s211 = smul.u32 8, %s12
      $region40: #{attention_layer.1} parent=35 // pred_fallthru
        _
    $region36: #{attention_layer.1} parent=5 // pred_fallthru
      _
    %p212 = scmp.le.s32.totalorder 1, %s12
    %p213 = scmp.lt.s32.totalorder %s12, 3
    %p214 = pnand %p212, %p213
    %p215 = pneg %p214
    // Predicated region
    $region41: #{attention_layer.1} parent=5 // pred_check
      _
    $region42: #{attention_layer.1} parent=5 // pred_check_branch
      %217 = sbr.rel (%p214) target = $region44
    $region43: #{attention_layer.1} parent=5 // pred_region
      %s218 = ssub.s32 %s12, 1
      %s219 = smul.u32 8, %s17
      %p220 = scmp.lt.s32.totalorder %s219, 15
      %s221 = scalar_select %p220, %s219, 15
      %s222 = smul.addr %s221, 4
      %s223 = scalar_lea.vmem %s0, %s222
      %p224 = pneg %p38
      %p225 = pneg %p35
      %p226 = pneg %p59
      %p227 = pneg %p56
      %p228 = pneg %p80
      %p229 = pneg %p77
      %p230 = pneg %p101
      %p231 = pneg %p98
      %p232 = pneg %p122
      %p233 = pneg %p119
      %p234 = pneg %p143
      %p235 = pneg %p140
      %p236 = pneg %p169
      %p237 = pneg %p166
      %p238 = scmp.lt.s32.totalorder %s17, 1
      %s239 = scalar_select %p238, %s17, 1
      %s240 = smul.addr %s239, 8
      %s241 = scalar_lea.vmem %s6, %s240
      %s242 = smul.u32 8, %s17
      %p243 = scmp.lt.s32.totalorder %s242, 15
      %s244 = scalar_select %p243, %s242, 15
      %s245 = smul.addr %s244, 4
      %s246 = scalar_lea.vmem %s0, %s245
      %s247 = smul.u32 8, %s17
      %p248 = scmp.lt.s32.totalorder %s17, 1
      %s249 = scalar_select %p248, %s17, 1
      %s250 = smul.addr %s249, 8
      %s251 = scalar_lea.vmem %s6, %s250
      %v252 = vld [vmem:[%s246] sm:$0xf]
      %v253 = vld [vmem:[%s246 + $0x4] sm:$0xf]
      %v254 = vld [vmem:[%s246 + $0x8] sm:$0xf]
      %v255 = vld [vmem:[%s246 + $0xc] sm:$0xf]
      %v256 = vld [vmem:[%s246 + $0x10] sm:$0xf]
      %v257 = vld [vmem:[%s246 + $0x14] sm:$0xf]
      %v258 = vld [vmem:[%s246 + $0x18] sm:$0xf]
      %v259 = vld [vmem:[%s246 + $0x1c] sm:$0xf]
      %v260 = vld [vmem:[%s1] sm:$0xff]
      %v261 = vld [vmem:[%s1 + $0x8] sm:$0xff]
      %v262 = vld [vmem:[%s1 + $0x10] sm:$0xff]
      %v263 = vld [vmem:[%s1 + $0x18] sm:$0xff]
      %v264 = vld [vmem:[%s1 + $0x20] sm:$0xff]
      %v265 = vld [vmem:[%s1 + $0x28] sm:$0xff]
      %v266 = vld [vmem:[%s1 + $0x30] sm:$0xff]
      %v267 = vld [vmem:[%s1 + $0x38] sm:$0xff]
      %v268 = vld [vmem:[%s2] sm:$0xff]
      %v269 = vld [vmem:[%s2 + $0x8] sm:$0xff]
      %v270 = vld [vmem:[%s2 + $0x10] sm:$0xff]
      %v271 = vld [vmem:[%s2 + $0x18] sm:$0xff]
      %v280 = vrot.slane %v253, 7
      %vm281 = vcmask 1041409
      %v282 = vsel %vm281, %v280, %v252
      %v283 = vrot.slane %v254, 6
      %vm284 = vcmask 1042434
      %v285 = vsel %vm284, %v283, %v282
      %v286 = vrot.slane %v255, 5
      %vm287 = vcmask 1043459
      %v288 = vsel %vm287, %v286, %v285
      %v289 = vrot.slane %v256, 4
      %vm290 = vcmask 1044484
      %v291 = vsel %vm290, %v289, %v288
      %v292 = vrot.slane %v257, 3
      %vm293 = vcmask 1045509
      %v294 = vsel %vm293, %v292, %v291
      %v295 = vrot.slane %v258, 2
      %vm296 = vcmask 1046534
      %v297 = vsel %vm296, %v295, %v294
      %v298 = vrot.slane %v259, 1
      %vm299 = vcmask 1047559
      %v300 = vsel %vm299, %v298, %v297
      %vm301 = vcmask 261120
      %v302 = vsel %vm301, %v300, 0
      %304 = vmatprep.subr.mxu0 0.0
      %v305 = vand.u32 %v268, 4294901760
      %306 = vmatpush1.msra.mxu0 %v305
      %307 = vmatprep.subr.mxu0 0.0
      %v308 = vand.u32 %v269, 4294901760
      %309 = vmatpush1.msra.mxu0 %v308
      %310 = vmatprep.subr.mxu0 0.0
      %v311 = vand.u32 %v270, 4294901760
      %312 = vmatpush1.msra.mxu0 %v311
      %313 = vmatprep.subr.mxu0 0.0
      %v314 = vand.u32 %v271, 4294901760
      %315 = vmatpush1.msra.mxu0 %v314
      %316 = vmatprep.subr.mxu0 0.0
      %317 = vmatpush1.msra.mxu0 0.0
      %318 = vmatprep.subr.mxu0 0.0
      %319 = vmatpush1.msra.mxu0 0.0
      %320 = vmatprep.subr.mxu0 0.0
      %321 = vmatpush1.msra.mxu0 0.0
      %322 = vmatprep.subr.mxu0 0.0
      %323 = vmatpush1.msra.mxu0 0.0
      %324 = vmatprep.subr.mxu0 0.0
      %325 = vmatpush1.msra.mxu0 0.0
      %326 = vmatprep.subr.mxu0 0.0
      %327 = vmatpush1.msra.mxu0 0.0
      %328 = vmatprep.subr.mxu0 0.0
      %329 = vmatpush1.msra.mxu0 0.0
      %330 = vmatprep.subr.mxu0 0.0
      %331 = vmatpush1.msra.mxu0 0.0
      %332 = vmatprep.subr.mxu0 0.0
      %333 = vmatpush1.msra.mxu0 0.0
      %334 = vmatprep.subr.mxu0 0.0
      %335 = vmatpush1.msra.mxu0 0.0
      %336 = vmatprep.subr.mxu0 0.0
      %337 = vmatpush1.msra.mxu0 0.0
      %338 = vmatprep.subr.mxu0 0.0
      %339 = vmatpush1.msra.mxu0 0.0
      %340 = vmatprep.subr.mxu0 0.0
      %341 = vmatpush1.msra.mxu0 0.0
      %342 = vmatprep.subr.mxu0 0.0
      %343 = vmatpush1.msra.mxu0 0.0
      %344 = vmatprep.subr.mxu0 0.0
      %345 = vmatpush1.msra.mxu0 0.0
      %346 = vmatprep.subr.mxu0 0.0
      %347 = vmatpush1.msra.mxu0 0.0
      %348 = vmatprep.subr.mxu0 0.0
      %349 = vmatpush1.msra.mxu0 0.0
      %350 = vmatprep.subr.mxu0 0.0
      %351 = vmatpush1.msra.mxu0 0.0
      %352 = vmatprep.subr.mxu0 0.0
      %353 = vmatpush1.msra.mxu0 0.0
      %354 = vmatprep.subr.mxu0 0.0
      %355 = vmatpush1.msra.mxu0 0.0
      %356 = vmatprep.subr.mxu0 0.0
      %357 = vmatpush1.msra.mxu0 0.0
      %358 = vmatprep.subr.mxu0 0.0
      %359 = vmatpush1.msra.mxu0 0.0
      %360 = vmatprep.subr.mxu0 0.0
      %361 = vmatpush1.msra.mxu0 0.0
      %362 = vmatprep.subr.mxu0 0.0
      %363 = vmatpush1.msra.mxu0 0.0
      %364 = vmatprep.subr.mxu0 0.0
      %365 = vmatpush1.msra.mxu0 0.0
      %366 = vmatprep.subr.mxu0 0.0
      %367 = vmatpush1.msra.mxu0 0.0
      %368 = vmatprep.subr.mxu0 0.0
      %369 = vmatpush1.msra.mxu0 0.0
      %370 = vmatprep.subr.mxu0 0.0
      %371 = vmatpush1.msra.mxu0 0.0
      %372 = vmatprep.mubr.f32.mxu0 0.0
      %v373 = vand.u32 %v302, 4294901760
      %v374 = vsub.f32 %v302, %v373
      %v375 = vand.u32 %v374, 4294901760
      %v376 = vsub.f32 %v374, %v375
      %v377 = vand.u32 %v376, 4294901760
      %378 = vmatmul.mubr.f32.gmra.mrb[0].mxu0 %v377
      %v379 = vpop.f32.mrb[0].mxu0
      %v380 = vadd.f32 0.0, %v379
      %v381 = vpop.f32.mrb[0].mxu0
      %382 = vdwg.mxu0
      %383 = vmatprep.subr.mxu0 0.0
      %v384 = vand.u32 %v268, 4294901760
      %v385 = vsub.f32 %v268, %v384
      %v386 = vand.u32 %v385, 4294901760
      %v387 = vsub.f32 %v385, %v386
      %v388 = vand.u32 %v387, 4294901760
      %389 = vmatpush1.msra.mxu0 %v388
      %390 = vmatprep.subr.mxu0 0.0
      %v391 = vand.u32 %v269, 4294901760
      %v392 = vsub.f32 %v269, %v391
      %v393 = vand.u32 %v392, 4294901760
      %v394 = vsub.f32 %v392, %v393
      %v395 = vand.u32 %v394, 4294901760
      %396 = vmatpush1.msra.mxu0 %v395
      %397 = vmatprep.subr.mxu0 0.0
      %v398 = vand.u32 %v270, 4294901760
      %v399 = vsub.f32 %v270, %v398
      %v400 = vand.u32 %v399, 4294901760
      %v401 = vsub.f32 %v399, %v400
      %v402 = vand.u32 %v401, 4294901760
      %403 = vmatpush1.msra.mxu0 %v402
      %404 = vmatprep.subr.mxu0 0.0
      %v405 = vand.u32 %v271, 4294901760
      %v406 = vsub.f32 %v271, %v405
      %v407 = vand.u32 %v406, 4294901760
      %v408 = vsub.f32 %v406, %v407
      %v409 = vand.u32 %v408, 4294901760
      %410 = vmatpush1.msra.mxu0 %v409
      %411 = vmatprep.subr.mxu0 0.0
      %412 = vmatpush1.msra.mxu0 0.0
      %413 = vmatprep.subr.mxu0 0.0
      %414 = vmatpush1.msra.mxu0 0.0
      %415 = vmatprep.subr.mxu0 0.0
      %416 = vmatpush1.msra.mxu0 0.0
      %417 = vmatprep.subr.mxu0 0.0
      %418 = vmatpush1.msra.mxu0 0.0
      %419 = vmatprep.subr.mxu0 0.0
      %420 = vmatpush1.msra.mxu0 0.0
      %421 = vmatprep.subr.mxu0 0.0
      %422 = vmatpush1.msra.mxu0 0.0
      %423 = vmatprep.subr.mxu0 0.0
      %424 = vmatpush1.msra.mxu0 0.0
      %425 = vmatprep.subr.mxu0 0.0
      %426 = vmatpush1.msra.mxu0 0.0
      %427 = vmatprep.subr.mxu0 0.0
      %428 = vmatpush1.msra.mxu0 0.0
      %429 = vmatprep.subr.mxu0 0.0
      %430 = vmatpush1.msra.mxu0 0.0
      %431 = vmatprep.subr.mxu0 0.0
      %432 = vmatpush1.msra.mxu0 0.0
      %433 = vmatprep.subr.mxu0 0.0
      %434 = vmatpush1.msra.mxu0 0.0
      %435 = vmatprep.subr.mxu0 0.0
      %436 = vmatpush1.msra.mxu0 0.0
      %437 = vmatprep.subr.mxu0 0.0
      %438 = vmatpush1.msra.mxu0 0.0
      %439 = vmatprep.subr.mxu0 0.0
      %440 = vmatpush1.msra.mxu0 0.0
      %441 = vmatprep.subr.mxu0 0.0
      %442 = vmatpush1.msra.mxu0 0.0
      %443 = vmatprep.subr.mxu0 0.0
      %444 = vmatpush1.msra.mxu0 0.0
      %445 = vmatprep.subr.mxu0 0.0
      %446 = vmatpush1.msra.mxu0 0.0
      %447 = vmatprep.subr.mxu0 0.0
      %448 = vmatpush1.msra.mxu0 0.0
      %449 = vmatprep.subr.mxu0 0.0
      %450 = vmatpush1.msra.mxu0 0.0
      %451 = vmatprep.subr.mxu0 0.0
      %452 = vmatpush1.msra.mxu0 0.0
      %453 = vmatprep.subr.mxu0 0.0
      %454 = vmatpush1.msra.mxu0 0.0
      %455 = vmatprep.subr.mxu0 0.0
      %456 = vmatpush1.msra.mxu0 0.0
      %457 = vmatprep.subr.mxu0 0.0
      %458 = vmatpush1.msra.mxu0 0.0
      %459 = vmatprep.subr.mxu0 0.0
      %460 = vmatpush1.msra.mxu0 0.0
      %461 = vmatprep.subr.mxu0 0.0
      %462 = vmatpush1.msra.mxu0 0.0
      %463 = vmatprep.subr.mxu0 0.0
      %464 = vmatpush1.msra.mxu0 0.0
      %465 = vmatprep.subr.mxu0 0.0
      %466 = vmatpush1.msra.mxu0 0.0
      %467 = vmatprep.mubr.f32.mxu0 0.0
      %v468 = vand.u32 %v302, 4294901760
      %469 = vmatmul.mubr.f32.gmra.mrb[0].mxu0 %v468
      %v470 = vpop.f32.mrb[0].mxu0
      %v471 = vadd.f32 %v380, %v470
      %v472 = vpop.f32.mrb[0].mxu0
      %473 = vdwg.mxu0
      %474 = vmatprep.subr.mxu0 0.0
      %v475 = vand.u32 %v268, 4294901760
      %v476 = vsub.f32 %v268, %v475
      %477 = vmatpush1.msra.mxu0 %v476
      %478 = vmatprep.subr.mxu0 0.0
      %v479 = vand.u32 %v269, 4294901760
      %v480 = vsub.f32 %v269, %v479
      %481 = vmatpush1.msra.mxu0 %v480
      %482 = vmatprep.subr.mxu0 0.0
      %v483 = vand.u32 %v270, 4294901760
      %v484 = vsub.f32 %v270, %v483
      %485 = vmatpush1.msra.mxu0 %v484
      %486 = vmatprep.subr.mxu0 0.0
      %v487 = vand.u32 %v271, 4294901760
      %v488 = vsub.f32 %v271, %v487
      %489 = vmatpush1.msra.mxu0 %v488
      %490 = vmatprep.subr.mxu0 0.0
      %491 = vmatpush1.msra.mxu0 0.0
      %492 = vmatprep.subr.mxu0 0.0
      %493 = vmatpush1.msra.mxu0 0.0
      %494 = vmatprep.subr.mxu0 0.0
      %495 = vmatpush1.msra.mxu0 0.0
      %496 = vmatprep.subr.mxu0 0.0
      %497 = vmatpush1.msra.mxu0 0.0
      %498 = vmatprep.subr.mxu0 0.0
      %499 = vmatpush1.msra.mxu0 0.0
      %500 = vmatprep.subr.mxu0 0.0
      %501 = vmatpush1.msra.mxu0 0.0
      %502 = vmatprep.subr.mxu0 0.0
      %503 = vmatpush1.msra.mxu0 0.0
      %504 = vmatprep.subr.mxu0 0.0
      %505 = vmatpush1.msra.mxu0 0.0
      %506 = vmatprep.subr.mxu0 0.0
      %507 = vmatpush1.msra.mxu0 0.0
      %508 = vmatprep.subr.mxu0 0.0
      %509 = vmatpush1.msra.mxu0 0.0
      %510 = vmatprep.subr.mxu0 0.0
      %511 = vmatpush1.msra.mxu0 0.0
      %512 = vmatprep.subr.mxu0 0.0
      %513 = vmatpush1.msra.mxu0 0.0
      %514 = vmatprep.subr.mxu0 0.0
      %515 = vmatpush1.msra.mxu0 0.0
      %516 = vmatprep.subr.mxu0 0.0
      %517 = vmatpush1.msra.mxu0 0.0
      %518 = vmatprep.subr.mxu0 0.0
      %519 = vmatpush1.msra.mxu0 0.0
      %520 = vmatprep.subr.mxu0 0.0
      %521 = vmatpush1.msra.mxu0 0.0
      %522 = vmatprep.subr.mxu0 0.0
      %523 = vmatpush1.msra.mxu0 0.0
      %524 = vmatprep.subr.mxu0 0.0
      %525 = vmatpush1.msra.mxu0 0.0
      %526 = vmatprep.subr.mxu0 0.0
      %527 = vmatpush1.msra.mxu0 0.0
      %528 = vmatprep.subr.mxu0 0.0
      %529 = vmatpush1.msra.mxu0 0.0
      %530 = vmatprep.subr.mxu0 0.0
      %531 = vmatpush1.msra.mxu0 0.0
      %532 = vmatprep.subr.mxu0 0.0
      %533 = vmatpush1.msra.mxu0 0.0
      %534 = vmatprep.subr.mxu0 0.0
      %535 = vmatpush1.msra.mxu0 0.0
      %536 = vmatprep.subr.mxu0 0.0
      %537 = vmatpush1.msra.mxu0 0.0
      %538 = vmatprep.subr.mxu0 0.0
      %539 = vmatpush1.msra.mxu0 0.0
      %540 = vmatprep.subr.mxu0 0.0
      %541 = vmatpush1.msra.mxu0 0.0
      %542 = vmatprep.subr.mxu0 0.0
      %543 = vmatpush1.msra.mxu0 0.0
      %544 = vmatprep.subr.mxu0 0.0
      %545 = vmatpush1.msra.mxu0 0.0
      %546 = vmatprep.mubr.f32.mxu0 0.0
      %v547 = vand.u32 %v302, 4294901760
      %v548 = vsub.f32 %v302, %v547
      %549 = vmatmul.mubr.f32.gmra.mrb[0].mxu0 %v548
      %v550 = vpop.f32.mrb[0].mxu0
      %v551 = vadd.f32 %v471, %v550
      %v552 = vpop.f32.mrb[0].mxu0
      %553 = vdwg.mxu0
      %554 = vmatprep.subr.mxu0 0.0
      %v555 = vand.u32 %v268, 4294901760
      %556 = vmatpush1.msra.mxu0 %v555
      %557 = vmatprep.subr.mxu0 0.0
      %v558 = vand.u32 %v269, 4294901760
      %559 = vmatpush1.msra.mxu0 %v558
      %560 = vmatprep.subr.mxu0 0.0
      %v561 = vand.u32 %v270, 4294901760
      %562 = vmatpush1.msra.mxu0 %v561
      %563 = vmatprep.subr.mxu0 0.0
      %v564 = vand.u32 %v271, 4294901760
      %565 = vmatpush1.msra.mxu0 %v564
      %566 = vmatprep.subr.mxu0 0.0
      %567 = vmatpush1.msra.mxu0 0.0
      %568 = vmatprep.subr.mxu0 0.0
      %569 = vmatpush1.msra.mxu0 0.0
      %570 = vmatprep.subr.mxu0 0.0
      %571 = vmatpush1.msra.mxu0 0.0
      %572 = vmatprep.subr.mxu0 0.0
      %573 = vmatpush1.msra.mxu0 0.0
      %574 = vmatprep.subr.mxu0 0.0
      %575 = vmatpush1.msra.mxu0 0.0
      %576 = vmatprep.subr.mxu0 0.0
      %577 = vmatpush1.msra.mxu0 0.0
      %578 = vmatprep.subr.mxu0 0.0
      %579 = vmatpush1.msra.mxu0 0.0
      %580 = vmatprep.subr.mxu0 0.0
      %581 = vmatpush1.msra.mxu0 0.0
      %582 = vmatprep.subr.mxu0 0.0
      %583 = vmatpush1.msra.mxu0 0.0
      %584 = vmatprep.subr.mxu0 0.0
      %585 = vmatpush1.msra.mxu0 0.0
      %586 = vmatprep.subr.mxu0 0.0
      %587 = vmatpush1.msra.mxu0 0.0
      %588 = vmatprep.subr.mxu0 0.0
      %589 = vmatpush1.msra.mxu0 0.0
      %590 = vmatprep.subr.mxu0 0.0
      %591 = vmatpush1.msra.mxu0 0.0
      %592 = vmatprep.subr.mxu0 0.0
      %593 = vmatpush1.msra.mxu0 0.0
      %594 = vmatprep.subr.mxu0 0.0
      %595 = vmatpush1.msra.mxu0 0.0
      %596 = vmatprep.subr.mxu0 0.0
      %597 = vmatpush1.msra.mxu0 0.0
      %598 = vmatprep.subr.mxu0 0.0
      %599 = vmatpush1.msra.mxu0 0.0
      %600 = vmatprep.subr.mxu0 0.0
      %601 = vmatpush1.msra.mxu0 0.0
      %602 = vmatprep.subr.mxu0 0.0
      %603 = vmatpush1.msra.mxu0 0.0
      %604 = vmatprep.subr.mxu0 0.0
      %605 = vmatpush1.msra.mxu0 0.0
      %606 = vmatprep.subr.mxu0 0.0
      %607 = vmatpush1.msra.mxu0 0.0
      %608 = vmatprep.subr.mxu0 0.0
      %609 = vmatpush1.msra.mxu0 0.0
      %610 = vmatprep.subr.mxu0 0.0
      %611 = vmatpush1.msra.mxu0 0.0
      %612 = vmatprep.subr.mxu0 0.0
      %613 = vmatpush1.msra.mxu0 0.0
      %614 = vmatprep.subr.mxu0 0.0
      %615 = vmatpush1.msra.mxu0 0.0
      %616 = vmatprep.subr.mxu0 0.0
      %617 = vmatpush1.msra.mxu0 0.0
      %618 = vmatprep.subr.mxu0 0.0
      %619 = vmatpush1.msra.mxu0 0.0
      %620 = vmatprep.subr.mxu0 0.0
      %621 = vmatpush1.msra.mxu0 0.0
      %622 = vmatprep.mubr.f32.mxu0 0.0
      %v623 = vand.u32 %v302, 4294901760
      %v624 = vsub.f32 %v302, %v623
      %v625 = vand.u32 %v624, 4294901760
      %626 = vmatmul.mubr.f32.gmra.mrb[0].mxu0 %v625
      %v627 = vpop.f32.mrb[0].mxu0
      %v628 = vadd.f32 %v551, %v627
      %v629 = vpop.f32.mrb[0].mxu0
      %630 = vdwg.mxu0
      %631 = vmatprep.subr.mxu0 0.0
      %v632 = vand.u32 %v268, 4294901760
      %v633 = vsub.f32 %v268, %v632
      %v634 = vand.u32 %v633, 4294901760
      %635 = vmatpush1.msra.mxu0 %v634
      %636 = vmatprep.subr.mxu0 0.0
      %v637 = vand.u32 %v269, 4294901760
      %v638 = vsub.f32 %v269, %v637
      %v639 = vand.u32 %v638, 4294901760
      %640 = vmatpush1.msra.mxu0 %v639
      %641 = vmatprep.subr.mxu0 0.0
      %v642 = vand.u32 %v270, 4294901760
      %v643 = vsub.f32 %v270, %v642
      %v644 = vand.u32 %v643, 4294901760
      %645 = vmatpush1.msra.mxu0 %v644
      %646 = vmatprep.subr.mxu0 0.0
      %v647 = vand.u32 %v271, 4294901760
      %v648 = vsub.f32 %v271, %v647
      %v649 = vand.u32 %v648, 4294901760
      %650 = vmatpush1.msra.mxu0 %v649
      %651 = vmatprep.subr.mxu0 0.0
      %652 = vmatpush1.msra.mxu0 0.0
      %653 = vmatprep.subr.mxu0 0.0
      %654 = vmatpush1.msra.mxu0 0.0
      %655 = vmatprep.subr.mxu0 0.0
      %656 = vmatpush1.msra.mxu0 0.0
      %657 = vmatprep.subr.mxu0 0.0
      %658 = vmatpush1.msra.mxu0 0.0
      %659 = vmatprep.subr.mxu0 0.0
      %660 = vmatpush1.msra.mxu0 0.0
      %661 = vmatprep.subr.mxu0 0.0
      %662 = vmatpush1.msra.mxu0 0.0
      %663 = vmatprep.subr.mxu0 0.0
      %664 = vmatpush1.msra.mxu0 0.0
      %665 = vmatprep.subr.mxu0 0.0
      %666 = vmatpush1.msra.mxu0 0.0
      %667 = vmatprep.subr.mxu0 0.0
      %668 = vmatpush1.msra.mxu0 0.0
      %669 = vmatprep.subr.mxu0 0.0
      %670 = vmatpush1.msra.mxu0 0.0
      %671 = vmatprep.subr.mxu0 0.0
      %672 = vmatpush1.msra.mxu0 0.0
      %673 = vmatprep.subr.mxu0 0.0
      %674 = vmatpush1.msra.mxu0 0.0
      %675 = vmatprep.subr.mxu0 0.0
      %676 = vmatpush1.msra.mxu0 0.0
      %677 = vmatprep.subr.mxu0 0.0
      %678 = vmatpush1.msra.mxu0 0.0
      %679 = vmatprep.subr.mxu0 0.0
      %680 = vmatpush1.msra.mxu0 0.0
      %681 = vmatprep.subr.mxu0 0.0
      %682 = vmatpush1.msra.mxu0 0.0
      %683 = vmatprep.subr.mxu0 0.0
      %684 = vmatpush1.msra.mxu0 0.0
      %685 = vmatprep.subr.mxu0 0.0
      %686 = vmatpush1.msra.mxu0 0.0
      %687 = vmatprep.subr.mxu0 0.0
      %688 = vmatpush1.msra.mxu0 0.0
      %689 = vmatprep.subr.mxu0 0.0
      %690 = vmatpush1.msra.mxu0 0.0
      %691 = vmatprep.subr.mxu0 0.0
      %692 = vmatpush1.msra.mxu0 0.0
      %693 = vmatprep.subr.mxu0 0.0
      %694 = vmatpush1.msra.mxu0 0.0
      %695 = vmatprep.subr.mxu0 0.0
      %696 = vmatpush1.msra.mxu0 0.0
      %697 = vmatprep.subr.mxu0 0.0
      %698 = vmatpush1.msra.mxu0 0.0
      %699 = vmatprep.subr.mxu0 0.0
      %700 = vmatpush1.msra.mxu0 0.0
      %701 = vmatprep.subr.mxu0 0.0
      %702 = vmatpush1.msra.mxu0 0.0
      %703 = vmatprep.subr.mxu0 0.0
      %704 = vmatpush1.msra.mxu0 0.0
      %705 = vmatprep.subr.mxu0 0.0
      %706 = vmatpush1.msra.mxu0 0.0
      %707 = vmatprep.mubr.f32.mxu0 0.0
      %v708 = vand.u32 %v302, 4294901760
      %709 = vmatmul.mubr.f32.gmra.mrb[0].mxu0 %v708
      %v710 = vpop.f32.mrb[0].mxu0
      %v711 = vadd.f32 %v628, %v710
      %v712 = vpop.f32.mrb[0].mxu0
      %713 = vdwg.mxu0
      %714 = vmatprep.subr.mxu0 0.0
      %v715 = vand.u32 %v268, 4294901760
      %716 = vmatpush1.msra.mxu0 %v715
      %717 = vmatprep.subr.mxu0 0.0
      %v718 = vand.u32 %v269, 4294901760
      %719 = vmatpush1.msra.mxu0 %v718
      %720 = vmatprep.subr.mxu0 0.0
      %v721 = vand.u32 %v270, 4294901760
      %722 = vmatpush1.msra.mxu0 %v721
      %723 = vmatprep.subr.mxu0 0.0
      %v724 = vand.u32 %v271, 4294901760
      %725 = vmatpush1.msra.mxu0 %v724
      %726 = vmatprep.subr.mxu0 0.0
      %727 = vmatpush1.msra.mxu0 0.0
      %728 = vmatprep.subr.mxu0 0.0
      %729 = vmatpush1.msra.mxu0 0.0
      %730 = vmatprep.subr.mxu0 0.0
      %731 = vmatpush1.msra.mxu0 0.0
      %732 = vmatprep.subr.mxu0 0.0
      %733 = vmatpush1.msra.mxu0 0.0
      %734 = vmatprep.subr.mxu0 0.0
      %735 = vmatpush1.msra.mxu0 0.0
      %736 = vmatprep.subr.mxu0 0.0
      %737 = vmatpush1.msra.mxu0 0.0
      %738 = vmatprep.subr.mxu0 0.0
      %739 = vmatpush1.msra.mxu0 0.0
      %740 = vmatprep.subr.mxu0 0.0
      %741 = vmatpush1.msra.mxu0 0.0
      %742 = vmatprep.subr.mxu0 0.0
      %743 = vmatpush1.msra.mxu0 0.0
      %744 = vmatprep.subr.mxu0 0.0
      %745 = vmatpush1.msra.mxu0 0.0
      %746 = vmatprep.subr.mxu0 0.0
      %747 = vmatpush1.msra.mxu0 0.0
      %748 = vmatprep.subr.mxu0 0.0
      %749 = vmatpush1.msra.mxu0 0.0
      %750 = vmatprep.subr.mxu0 0.0
      %751 = vmatpush1.msra.mxu0 0.0
      %752 = vmatprep.subr.mxu0 0.0
      %753 = vmatpush1.msra.mxu0 0.0
      %754 = vmatprep.subr.mxu0 0.0
      %755 = vmatpush1.msra.mxu0 0.0
      %756 = vmatprep.subr.mxu0 0.0
      %757 = vmatpush1.msra.mxu0 0.0
      %758 = vmatprep.subr.mxu0 0.0
      %759 = vmatpush1.msra.mxu0 0.0
      %760 = vmatprep.subr.mxu0 0.0
      %761 = vmatpush1.msra.mxu0 0.0
      %762 = vmatprep.subr.mxu0 0.0
      %763 = vmatpush1.msra.mxu0 0.0
      %764 = vmatprep.subr.mxu0 0.0
      %765 = vmatpush1.msra.mxu0 0.0
      %766 = vmatprep.subr.mxu0 0.0
      %767 = vmatpush1.msra.mxu0 0.0
      %768 = vmatprep.subr.mxu0 0.0
      %769 = vmatpush1.msra.mxu0 0.0
      %770 = vmatprep.subr.mxu0 0.0
      %771 = vmatpush1.msra.mxu0 0.0
      %772 = vmatprep.subr.mxu0 0.0
      %773 = vmatpush1.msra.mxu0 0.0
      %774 = vmatprep.subr.mxu0 0.0
      %775 = vmatpush1.msra.mxu0 0.0
      %776 = vmatprep.subr.mxu0 0.0
      %777 = vmatpush1.msra.mxu0 0.0
      %778 = vmatprep.subr.mxu0 0.0
      %779 = vmatpush1.msra.mxu0 0.0
      %780 = vmatprep.subr.mxu0 0.0
      %781 = vmatpush1.msra.mxu0 0.0
      %782 = vmatprep.mubr.f32.mxu0 0.0
      %v783 = vand.u32 %v302, 4294901760
      %784 = vmatmul.mubr.f32.gmra.mrb[0].mxu0 %v783
      %v785 = vpop.f32.mrb[0].mxu0
      %v786 = vadd.f32 %v711, %v785
      %v787 = vpop.f32.mrb[0].mxu0
      %788 = vdwg.mxu0
      %s789 = scalar_lea.vmem %s2, 32
      %v790 = vld [vmem:[%s789] sm:$0xff]
      %v791 = vld [vmem:[%s789 + $0x8] sm:$0xff]
      %v792 = vld [vmem:[%s789 + $0x10] sm:$0xff]
      %v793 = vld [vmem:[%s789 + $0x18] sm:$0xff]
      %v794 = vrot.slane %v252, 1
      %v795 = vsel %vm281, %v253, %v794
      %v796 = vrot.slane %v254, 7
      %v797 = vsel %vm284, %v796, %v795
      %v798 = vrot.slane %v255, 6
      %v799 = vsel %vm287, %v798, %v797
      %v800 = vrot.slane %v256, 5
      %v801 = vsel %vm290, %v800, %v799
      %v802 = vrot.slane %v257, 4
      %v803 = vsel %vm293, %v802, %v801
      %v804 = vrot.slane %v258, 3
      %v805 = vsel %vm296, %v804, %v803
      %v806 = vrot.slane %v259, 2
      %v807 = vsel %vm299, %v806, %v805
      %v808 = vsel %vm301, %v807, 0
      %810 = vmatprep.subr.mxu0 0.0
      %v811 = vand.u32 %v790, 4294901760
      %812 = vmatpush1.msra.mxu0 %v811
      %813 = vmatprep.subr.mxu0 0.0
      %v814 = vand.u32 %v791, 4294901760
      %815 = vmatpush1.msra.mxu0 %v814
      %816 = vmatprep.subr.mxu0 0.0
      %v817 = vand.u32 %v792, 4294901760
      %818 = vmatpush1.msra.mxu0 %v817
      %819 = vmatprep.subr.mxu0 0.0
      %v820 = vand.u32 %v793, 4294901760
      %821 = vmatpush1.msra.mxu0 %v820
      %822 = vmatprep.subr.mxu0 0.0
      %823 = vmatpush1.msra.mxu0 0.0
      %824 = vmatprep.subr.mxu0 0.0
      %825 = vmatpush1.msra.mxu0 0.0
      %826 = vmatprep.subr.mxu0 0.0
      %827 = vmatpush1.msra.mxu0 0.0
      %828 = vmatprep.subr.mxu0 0.0
      %829 = vmatpush1.msra.mxu0 0.0
      %830 = vmatprep.subr.mxu0 0.0
      %831 = vmatpush1.msra.mxu0 0.0
      %832 = vmatprep.subr.mxu0 0.0
      %833 = vmatpush1.msra.mxu0 0.0
      %834 = vmatprep.subr.mxu0 0.0
      %835 = vmatpush1.msra.mxu0 0.0
      %836 = vmatprep.subr.mxu0 0.0
      %837 = vmatpush1.msra.mxu0 0.0
      %838 = vmatprep.subr.mxu0 0.0
      %839 = vmatpush1.msra.mxu0 0.0
      %840 = vmatprep.subr.mxu0 0.0
      %841 = vmatpush1.msra.mxu0 0.0
      %842 = vmatprep.subr.mxu0 0.0
      %843 = vmatpush1.msra.mxu0 0.0
      %844 = vmatprep.subr.mxu0 0.0
      %845 = vmatpush1.msra.mxu0 0.0
      %846 = vmatprep.subr.mxu0 0.0
      %847 = vmatpush1.msra.mxu0 0.0
      %848 = vmatprep.subr.mxu0 0.0
      %849 = vmatpush1.msra.mxu0 0.0
      %850 = vmatprep.subr.mxu0 0.0
      %851 = vmatpush1.msra.mxu0 0.0
      %852 = vmatprep.subr.mxu0 0.0
      %853 = vmatpush1.msra.mxu0 0.0
      %854 = vmatprep.subr.mxu0 0.0
      %855 = vmatpush1.msra.mxu0 0.0
      %856 = vmatprep.subr.mxu0 0.0
      %857 = vmatpush1.msra.mxu0 0.0
      %858 = vmatprep.subr.mxu0 0.0
      %859 = vmatpush1.msra.mxu0 0.0
      %860 = vmatprep.subr.mxu0 0.0
      %861 = vmatpush1.msra.mxu0 0.0
      %862 = vmatprep.subr.mxu0 0.0
      %863 = vmatpush1.msra.mxu0 0.0
      %864 = vmatprep.subr.mxu0 0.0
      %865 = vmatpush1.msra.mxu0 0.0
      %866 = vmatprep.subr.mxu0 0.0
      %867 = vmatpush1.msra.mxu0 0.0
      %868 = vmatprep.subr.mxu0 0.0
      %869 = vmatpush1.msra.mxu0 0.0
      %870 = vmatprep.subr.mxu0 0.0
      %871 = vmatpush1.msra.mxu0 0.0
      %872 = vmatprep.subr.mxu0 0.0
      %873 = vmatpush1.msra.mxu0 0.0
      %874 = vmatprep.subr.mxu0 0.0
      %875 = vmatpush1.msra.mxu0 0.0
      %876 = vmatprep.subr.mxu0 0.0
      %877 = vmatpush1.msra.mxu0 0.0
      %878 = vmatprep.mubr.f32.mxu0 0.0
      %v879 = vand.u32 %v808, 4294901760
      %v880 = vsub.f32 %v808, %v879
      %v881 = vand.u32 %v880, 4294901760
      %v882 = vsub.f32 %v880, %v881
      %v883 = vand.u32 %v882, 4294901760
      %884 = vmatmul.mubr.f32.gmra.mrb[0].mxu0 %v883
      %v885 = vpop.f32.mrb[0].mxu0
      %v886 = vadd.f32 0.0, %v885
      %v887 = vpop.f32.mrb[0].mxu0
      %888 = vdwg.mxu0
      %889 = vmatprep.subr.mxu0 0.0
      %v890 = vand.u32 %v790, 4294901760
      %v891 = vsub.f32 %v790, %v890
      %v892 = vand.u32 %v891, 4294901760
      %v893 = vsub.f32 %v891, %v892
      %v894 = vand.u32 %v893, 4294901760
      %895 = vmatpush1.msra.mxu0 %v894
      %896 = vmatprep.subr.mxu0 0.0
      %v897 = vand.u32 %v791, 4294901760
      %v898 = vsub.f32 %v791, %v897
      %v899 = vand.u32 %v898, 4294901760
      %v900 = vsub.f32 %v898, %v899
      %v901 = vand.u32 %v900, 4294901760
      %902 = vmatpush1.msra.mxu0 %v901
      %903 = vmatprep.subr.mxu0 0.0
      %v904 = vand.u32 %v792, 4294901760
      %v905 = vsub.f32 %v792, %v904
      %v906 = vand.u32 %v905, 4294901760
      %v907 = vsub.f32 %v905, %v906
      %v908 = vand.u32 %v907, 4294901760
      %909 = vmatpush1.msra.mxu0 %v908
      %910 = vmatprep.subr.mxu0 0.0
      %v911 = vand.u32 %v793, 4294901760
      %v912 = vsub.f32 %v793, %v911
      %v913 = vand.u32 %v912, 4294901760
      %v914 = vsub.f32 %v912, %v913
      %v915 = vand.u32 %v914, 4294901760
      %916 = vmatpush1.msra.mxu0 %v915
      %917 = vmatprep.subr.mxu0 0.0
      %918 = vmatpush1.msra.mxu0 0.0
      %919 = vmatprep.subr.mxu0 0.0
      %920 = vmatpush1.msra.mxu0 0.0
      %921 = vmatprep.subr.mxu0 0.0
      %922 = vmatpush1.msra.mxu0 0.0
      %923 = vmatprep.subr.mxu0 0.0
      %924 = vmatpush1.msra.mxu0 0.0
      %925 = vmatprep.subr.mxu0 0.0
      %926 = vmatpush1.msra.mxu0 0.0
      %927 = vmatprep.subr.mxu0 0.0
      %928 = vmatpush1.msra.mxu0 0.0
      %929 = vmatprep.subr.mxu0 0.0
      %930 = vmatpush1.msra.mxu0 0.0
      %931 = vmatprep.subr.mxu0 0.0
      %932 = vmatpush1.msra.mxu0 0.0
      %933 = vmatprep.subr.mxu0 0.0
      %934 = vmatpush1.msra.mxu0 0.0
      %935 = vmatprep.subr.mxu0 0.0
      %936 = vmatpush1.msra.mxu0 0.0
      %937 = vmatprep.subr.mxu0 0.0
      %938 = vmatpush1.msra.mxu0 0.0
      %939 = vmatprep.subr.mxu0 0.0
      %940 = vmatpush1.msra.mxu0 0.0
      %941 = vmatprep.subr.mxu0 0.0
      %942 = vmatpush1.msra.mxu0 0.0
      %943 = vmatprep.subr.mxu0 0.0
      %944 = vmatpush1.msra.mxu0 0.0
      %945 = vmatprep.subr.mxu0 0.0
      %946 = vmatpush1.msra.mxu0 0.0
      %947 = vmatprep.subr.mxu0 0.0
      %948 = vmatpush1.msra.mxu0 0.0
      %949 = vmatprep.subr.mxu0 0.0
      %950 = vmatpush1.msra.mxu0 0.0
      %951 = vmatprep.subr.mxu0 0.0
      %952 = vmatpush1.msra.mxu0 0.0
      %953 = vmatprep.subr.mxu0 0.0
      %954 = vmatpush1.msra.mxu0 0.0
      %955 = vmatprep.subr.mxu0 0.0
      %956 = vmatpush1.msra.mxu0 0.0
      %957 = vmatprep.subr.mxu0 0.0
      %958 = vmatpush1.msra.mxu0 0.0
      %959 = vmatprep.subr.mxu0 0.0
      %960 = vmatpush1.msra.mxu0 0.0
      %961 = vmatprep.subr.mxu0 0.0
      %962 = vmatpush1.msra.mxu0 0.0
      %963 = vmatprep.subr.mxu0 0.0
      %964 = vmatpush1.msra.mxu0 0.0
      %965 = vmatprep.subr.mxu0 0.0
      %966 = vmatpush1.msra.mxu0 0.0
      %967 = vmatprep.subr.mxu0 0.0
      %968 = vmatpush1.msra.mxu0 0.0
      %969 = vmatprep.subr.mxu0 0.0
      %970 = vmatpush1.msra.mxu0 0.0
      %971 = vmatprep.subr.mxu0 0.0
      %972 = vmatpush1.msra.mxu0 0.0
      %973 = vmatprep.mubr.f32.mxu0 0.0
      %v974 = vand.u32 %v808, 4294901760
      %975 = vmatmul.mubr.f32.gmra.mrb[0].mxu0 %v974
      %v976 = vpop.f32.mrb[0].mxu0
      %v977 = vadd.f32 %v886, %v976
      %v978 = vpop.f32.mrb[0].mxu0
      %979 = vdwg.mxu0
      %980 = vmatprep.subr.mxu0 0.0
      %v981 = vand.u32 %v790, 4294901760
      %v982 = vsub.f32 %v790, %v981
      %983 = vmatpush1.msra.mxu0 %v982
      %984 = vmatprep.subr.mxu0 0.0
      %v985 = vand.u32 %v791, 4294901760
      %v986 = vsub.f32 %v791, %v985
      %987 = vmatpush1.msra.mxu0 %v986
      %988 = vmatprep.subr.mxu0 0.0
      %v989 = vand.u32 %v792, 4294901760
      %v990 = vsub.f32 %v792, %v989
      %991 = vmatpush1.msra.mxu0 %v990
      %992 = vmatprep.subr.mxu0 0.0
      %v993 = vand.u32 %v793, 4294901760
      %v994 = vsub.f32 %v793, %v993
      %995 = vmatpush1.msra.mxu0 %v994
      %996 = vmatprep.subr.mxu0 0.0
      %997 = vmatpush1.msra.mxu0 0.0
      %998 = vmatprep.subr.mxu0 0.0
      %999 = vmatpush1.msra.mxu0 0.0
      %1000 = vmatprep.subr.mxu0 0.0
      %1001 = vmatpush1.msra.mxu0 0.0
      %1002 = vmatprep.subr.mxu0 0.0
      %1003 = vmatpush1.msra.mxu0 0.0
      %1004 = vmatprep.subr.mxu0 0.0
      %1005 = vmatpush1.msra.mxu0 0.0
      %1006 = vmatprep.subr.mxu0 0.0
      %1007 = vmatpush1.msra.mxu0 0.0
      %1008 = vmatprep.subr.mxu0 0.0
      %1009 = vmatpush1.msra.mxu0 0.0
      %1010 = vmatprep.subr.mxu0 0.0
      %1011 = vmatpush1.msra.mxu0 0.0
      %1012 = vmatprep.subr.mxu0 0.0
      %1013 = vmatpush1.msra.mxu0 0.0
      %1014 = vmatprep.subr.mxu0 0.0
      %1015 = vmatpush1.msra.mxu0 0.0
      %1016 = vmatprep.subr.mxu0 0.0
      %1017 = vmatpush1.msra.mxu0 0.0
      %1018 = vmatprep.subr.mxu0 0.0
      %1019 = vmatpush1.msra.mxu0 0.0
      %1020 = vmatprep.subr.mxu0 0.0
      %1021 = vmatpush1.msra.mxu0 0.0
      %1022 = vmatprep.subr.mxu0 0.0
      %1023 = vmatpush1.msra.mxu0 0.0
      %1024 = vmatprep.subr.mxu0 0.0
      %1025 = vmatpush1.msra.mxu0 0.0
      %1026 = vmatprep.subr.mxu0 0.0
      %1027 = vmatpush1.msra.mxu0 0.0
      %1028 = vmatprep.subr.mxu0 0.0
      %1029 = vmatpush1.msra.mxu0 0.0
      %1030 = vmatprep.subr.mxu0 0.0
      %1031 = vmatpush1.msra.mxu0 0.0
      %1032 = vmatprep.subr.mxu0 0.0
      %1033 = vmatpush1.msra.mxu0 0.0
      %1034 = vmatprep.subr.mxu0 0.0
      %1035 = vmatpush1.msra.mxu0 0.0
      %1036 = vmatprep.subr.mxu0 0.0
      %1037 = vmatpush1.msra.mxu0 0.0
      %1038 = vmatprep.subr.mxu0 0.0
      %1039 = vmatpush1.msra.mxu0 0.0
      %1040 = vmatprep.subr.mxu0 0.0
      %1041 = vmatpush1.msra.mxu0 0.0
      %1042 = vmatprep.subr.mxu0 0.0
      %1043 = vmatpush1.msra.mxu0 0.0
      %1044 = vmatprep.subr.mxu0 0.0
      %1045 = vmatpush1.msra.mxu0 0.0
      %1046 = vmatprep.subr.mxu0 0.0
      %1047 = vmatpush1.msra.mxu0 0.0
      %1048 = vmatprep.subr.mxu0 0.0
      %1049 = vmatpush1.msra.mxu0 0.0
      %1050 = vmatprep.subr.mxu0 0.0
      %1051 = vmatpush1.msra.mxu0 0.0
      %1052 = vmatprep.mubr.f32.mxu0 0.0
      %v1053 = vand.u32 %v808, 4294901760
      %v1054 = vsub.f32 %v808, %v1053
      %1055 = vmatmul.mubr.f32.gmra.mrb[0].mxu0 %v1054
      %v1056 = vpop.f32.mrb[0].mxu0
      %v1057 = vadd.f32 %v977, %v1056
      %v1058 = vpop.f32.mrb[0].mxu0
      %1059 = vdwg.mxu0
      %1060 = vmatprep.subr.mxu0 0.0
      %v1061 = vand.u32 %v790, 4294901760
      %1062 = vmatpush1.msra.mxu0 %v1061
      %1063 = vmatprep.subr.mxu0 0.0
      %v1064 = vand.u32 %v791, 4294901760
      %1065 = vmatpush1.msra.mxu0 %v1064
      %1066 = vmatprep.subr.mxu0 0.0
      %v1067 = vand.u32 %v792, 4294901760
      %1068 = vmatpush1.msra.mxu0 %v1067
      %1069 = vmatprep.subr.mxu0 0.0
      %v1070 = vand.u32 %v793, 4294901760
      %1071 = vmatpush1.msra.mxu0 %v1070
      %1072 = vmatprep.subr.mxu0 0.0
      %1073 = vmatpush1.msra.mxu0 0.0
      %1074 = vmatprep.subr.mxu0 0.0
      %1075 = vmatpush1.msra.mxu0 0.0
      %1076 = vmatprep.subr.mxu0 0.0
      %1077 = vmatpush1.msra.mxu0 0.0
      %1078 = vmatprep.subr.mxu0 0.0
      %1079 = vmatpush1.msra.mxu0 0.0
      %1080 = vmatprep.subr.mxu0 0.0
      %1081 = vmatpush1.msra.mxu0 0.0
      %1082 = vmatprep.subr.mxu0 0.0
      %1083 = vmatpush1.msra.mxu0 0.0
      %1084 = vmatprep.subr.mxu0 0.0
      %1085 = vmatpush1.msra.mxu0 0.0
      %1086 = vmatprep.subr.mxu0 0.0
      %1087 = vmatpush1.msra.mxu0 0.0
      %1088 = vmatprep.subr.mxu0 0.0
      %1089 = vmatpush1.msra.mxu0 0.0
      %1090 = vmatprep.subr.mxu0 0.0
      %1091 = vmatpush1.msra.mxu0 0.0
      %1092 = vmatprep.subr.mxu0 0.0
      %1093 = vmatpush1.msra.mxu0 0.0
      %1094 = vmatprep.subr.mxu0 0.0
      %1095 = vmatpush1.msra.mxu0 0.0
      %1096 = vmatprep.subr.mxu0 0.0
      %1097 = vmatpush1.msra.mxu0 0.0
      %1098 = vmatprep.subr.mxu0 0.0
      %1099 = vmatpush1.msra.mxu0 0.0
      %1100 = vmatprep.subr.mxu0 0.0
      %1101 = vmatpush1.msra.mxu0 0.0
      %1102 = vmatprep.subr.mxu0 0.0
      %1103 = vmatpush1.msra.mxu0 0.0
      %1104 = vmatprep.subr.mxu0 0.0
      %1105 = vmatpush1.msra.mxu0 0.0
      %1106 = vmatprep.subr.mxu0 0.0
      %1107 = vmatpush1.msra.mxu0 0.0
      %1108 = vmatprep.subr.mxu0 0.0
      %1109 = vmatpush1.msra.mxu0 0.0
      %1110 = vmatprep.subr.mxu0 0.0
      %1111 = vmatpush1.msra.mxu0 0.0
      %1112 = vmatprep.subr.mxu0 0.0
      %1113 = vmatpush1.msra.mxu0 0.0
      %1114 = vmatprep.subr.mxu0 0.0
      %1115 = vmatpush1.msra.mxu0 0.0
      %1116 = vmatprep.subr.mxu0 0.0
      %1117 = vmatpush1.msra.mxu0 0.0
      %1118 = vmatprep.subr.mxu0 0.0
      %1119 = vmatpush1.msra.mxu0 0.0
      %1120 = vmatprep.subr.mxu0 0.0
      %1121 = vmatpush1.msra.mxu0 0.0
      %1122 = vmatprep.subr.mxu0 0.0
      %1123 = vmatpush1.msra.mxu0 0.0
      %1124 = vmatprep.subr.mxu0 0.0
      %1125 = vmatpush1.msra.mxu0 0.0
      %1126 = vmatprep.subr.mxu0 0.0
      %1127 = vmatpush1.msra.mxu0 0.0
      %1128 = vmatprep.mubr.f32.mxu0 0.0
      %v1129 = vand.u32 %v808, 4294901760
      %v1130 = vsub.f32 %v808, %v1129
      %v1131 = vand.u32 %v1130, 4294901760
      %1132 = vmatmul.mubr.f32.gmra.mrb[0].mxu0 %v1131
      %v1133 = vpop.f32.mrb[0].mxu0
      %v1134 = vadd.f32 %v1057, %v1133
      %v1135 = vpop.f32.mrb[0].mxu0
      %1136 = vdwg.mxu0
      %1137 = vmatprep.subr.mxu0 0.0
      %v1138 = vand.u32 %v790, 4294901760
      %v1139 = vsub.f32 %v790, %v1138
      %v1140 = vand.u32 %v1139, 4294901760
      %1141 = vmatpush1.msra.mxu0 %v1140
      %1142 = vmatprep.subr.mxu0 0.0
      %v1143 = vand.u32 %v791, 4294901760
      %v1144 = vsub.f32 %v791, %v1143
      %v1145 = vand.u32 %v1144, 4294901760
      %1146 = vmatpush1.msra.mxu0 %v1145
      %1147 = vmatprep.subr.mxu0 0.0
      %v1148 = vand.u32 %v792, 4294901760
      %v1149 = vsub.f32 %v792, %v1148
      %v1150 = vand.u32 %v1149, 4294901760
      %1151 = vmatpush1.msra.mxu0 %v1150
      %1152 = vmatprep.subr.mxu0 0.0
      %v1153 = vand.u32 %v793, 4294901760
      %v1154 = vsub.f32 %v793, %v1153
      %v1155 = vand.u32 %v1154, 4294901760
      %1156 = vmatpush1.msra.mxu0 %v1155
      %1157 = vmatprep.subr.mxu0 0.0
      %1158 = vmatpush1.msra.mxu0 0.0
      %1159 = vmatprep.subr.mxu0 0.0
      %1160 = vmatpush1.msra.mxu0 0.0
      %1161 = vmatprep.subr.mxu0 0.0
      %1162 = vmatpush1.msra.mxu0 0.0
      %1163 = vmatprep.subr.mxu0 0.0
      %1164 = vmatpush1.msra.mxu0 0.0
      %1165 = vmatprep.subr.mxu0 0.0
      %1166 = vmatpush1.msra.mxu0 0.0
      %1167 = vmatprep.subr.mxu0 0.0
      %1168 = vmatpush1.msra.mxu0 0.0
      %1169 = vmatprep.subr.mxu0 0.0
      %1170 = vmatpush1.msra.mxu0 0.0
      %1171 = vmatprep.subr.mxu0 0.0
      %1172 = vmatpush1.msra.mxu0 0.0
      %1173 = vmatprep.subr.mxu0 0.0
      %1174 = vmatpush1.msra.mxu0 0.0
      %1175 = vmatprep.subr.mxu0 0.0
      %1176 = vmatpush1.msra.mxu0 0.0
      %1177 = vmatprep.subr.mxu0 0.0
      %1178 = vmatpush1.msra.mxu0 0.0
      %1179 = vmatprep.subr.mxu0 0.0
      %1180 = vmatpush1.msra.mxu0 0.0
      %1181 = vmatprep.subr.mxu0 0.0
      %1182 = vmatpush1.msra.mxu0 0.0
      %1183 = vmatprep.subr.mxu0 0.0
      %1184 = vmatpush1.msra.mxu0 0.0
      %1185 = vmatprep.subr.mxu0 0.0
      %1186 = vmatpush1.msra.mxu0 0.0
      %1187 = vmatprep.subr.mxu0 0.0
      %1188 = vmatpush1.msra.mxu0 0.0
      %1189 = vmatprep.subr.mxu0 0.0
      %1190 = vmatpush1.msra.mxu0 0.0
      %1191 = vmatprep.subr.mxu0 0.0
      %1192 = vmatpush1.msra.mxu0 0.0
      %1193 = vmatprep.subr.mxu0 0.0
      %1194 = vmatpush1.msra.mxu0 0.0
      %1195 = vmatprep.subr.mxu0 0.0
      %1196 = vmatpush1.msra.mxu0 0.0
      %1197 = vmatprep.subr.mxu0 0.0
      %1198 = vmatpush1.msra.mxu0 0.0
      %1199 = vmatprep.subr.mxu0 0.0
      %1200 = vmatpush1.msra.mxu0 0.0
      %1201 = vmatprep.subr.mxu0 0.0
      %1202 = vmatpush1.msra.mxu0 0.0
      %1203 = vmatprep.subr.mxu0 0.0
      %1204 = vmatpush1.msra.mxu0 0.0
      %1205 = vmatprep.subr.mxu0 0.0
      %1206 = vmatpush1.msra.mxu0 0.0
      %1207 = vmatprep.subr.mxu0 0.0
      %1208 = vmatpush1.msra.mxu0 0.0
      %1209 = vmatprep.subr.mxu0 0.0
      %1210 = vmatpush1.msra.mxu0 0.0
      %1211 = vmatprep.subr.mxu0 0.0
      %1212 = vmatpush1.msra.mxu0 0.0
      %1213 = vmatprep.mubr.f32.mxu0 0.0
      %v1214 = vand.u32 %v808, 4294901760
      %1215 = vmatmul.mubr.f32.gmra.mrb[0].mxu0 %v1214
      %v1216 = vpop.f32.mrb[0].mxu0
      %v1217 = vadd.f32 %v1134, %v1216
      %v1218 = vpop.f32.mrb[0].mxu0
      %1219 = vdwg.mxu0
      %1220 = vmatprep.subr.mxu0 0.0
      %v1221 = vand.u32 %v790, 4294901760
      %1222 = vmatpush1.msra.mxu0 %v1221
      %1223 = vmatprep.subr.mxu0 0.0
      %v1224 = vand.u32 %v791, 4294901760
      %1225 = vmatpush1.msra.mxu0 %v1224
      %1226 = vmatprep.subr.mxu0 0.0
      %v1227 = vand.u32 %v792, 4294901760
      %1228 = vmatpush1.msra.mxu0 %v1227
      %1229 = vmatprep.subr.mxu0 0.0
      %v1230 = vand.u32 %v793, 4294901760
      %1231 = vmatpush1.msra.mxu0 %v1230
      %1232 = vmatprep.subr.mxu0 0.0
      %1233 = vmatpush1.msra.mxu0 0.0
      %1234 = vmatprep.subr.mxu0 0.0
      %1235 = vmatpush1.msra.mxu0 0.0
      %1236 = vmatprep.subr.mxu0 0.0
      %1237 = vmatpush1.msra.mxu0 0.0
      %1238 = vmatprep.subr.mxu0 0.0
      %1239 = vmatpush1.msra.mxu0 0.0
      %1240 = vmatprep.subr.mxu0 0.0
      %1241 = vmatpush1.msra.mxu0 0.0
      %1242 = vmatprep.subr.mxu0 0.0
      %1243 = vmatpush1.msra.mxu0 0.0
      %1244 = vmatprep.subr.mxu0 0.0
      %1245 = vmatpush1.msra.mxu0 0.0
      %1246 = vmatprep.subr.mxu0 0.0
      %1247 = vmatpush1.msra.mxu0 0.0
      %1248 = vmatprep.subr.mxu0 0.0
      %1249 = vmatpush1.msra.mxu0 0.0
      %1250 = vmatprep.subr.mxu0 0.0
      %1251 = vmatpush1.msra.mxu0 0.0
      %1252 = vmatprep.subr.mxu0 0.0
      %1253 = vmatpush1.msra.mxu0 0.0
      %1254 = vmatprep.subr.mxu0 0.0
      %1255 = vmatpush1.msra.mxu0 0.0
      %1256 = vmatprep.subr.mxu0 0.0
      %1257 = vmatpush1.msra.mxu0 0.0
      %1258 = vmatprep.subr.mxu0 0.0
      %1259 = vmatpush1.msra.mxu0 0.0
      %1260 = vmatprep.subr.mxu0 0.0
      %1261 = vmatpush1.msra.mxu0 0.0
      %1262 = vmatprep.subr.mxu0 0.0
      %1263 = vmatpush1.msra.mxu0 0.0
      %1264 = vmatprep.subr.mxu0 0.0
      %1265 = vmatpush1.msra.mxu0 0.0
      %1266 = vmatprep.subr.mxu0 0.0
      %1267 = vmatpush1.msra.mxu0 0.0
      %1268 = vmatprep.subr.mxu0 0.0
      %1269 = vmatpush1.msra.mxu0 0.0
      %1270 = vmatprep.subr.mxu0 0.0
      %1271 = vmatpush1.msra.mxu0 0.0
      %1272 = vmatprep.subr.mxu0 0.0
      %1273 = vmatpush1.msra.mxu0 0.0
      %1274 = vmatprep.subr.mxu0 0.0
      %1275 = vmatpush1.msra.mxu0 0.0
      %1276 = vmatprep.subr.mxu0 0.0
      %1277 = vmatpush1.msra.mxu0 0.0
      %1278 = vmatprep.subr.mxu0 0.0
      %1279 = vmatpush1.msra.mxu0 0.0
      %1280 = vmatprep.subr.mxu0 0.0
      %1281 = vmatpush1.msra.mxu0 0.0
      %1282 = vmatprep.subr.mxu0 0.0
      %1283 = vmatpush1.msra.mxu0 0.0
      %1284 = vmatprep.subr.mxu0 0.0
      %1285 = vmatpush1.msra.mxu0 0.0
      %1286 = vmatprep.subr.mxu0 0.0
      %1287 = vmatpush1.msra.mxu0 0.0
      %1288 = vmatprep.mubr.f32.mxu0 0.0
      %v1289 = vand.u32 %v808, 4294901760
      %1290 = vmatmul.mubr.f32.gmra.mrb[0].mxu0 %v1289
      %v1291 = vpop.f32.mrb[0].mxu0
      %v1292 = vadd.f32 %v1217, %v1291
      %v1293 = vpop.f32.mrb[0].mxu0
      %1294 = vdwg.mxu0
      %s1295 = scalar_lea.vmem %s2, 64
      %v1296 = vld [vmem:[%s1295] sm:$0xff]
      %v1297 = vld [vmem:[%s1295 + $0x8] sm:$0xff]
      %v1298 = vld [vmem:[%s1295 + $0x10] sm:$0xff]
      %v1299 = vld [vmem:[%s1295 + $0x18] sm:$0xff]
      %v1300 = vrot.slane %v252, 2
      %v1301 = vrot.slane %v253, 1
      %v1302 = vsel %vm281, %v1301, %v1300
      %v1303 = vsel %vm284, %v254, %v1302
      %v1304 = vrot.slane %v255, 7
      %v1305 = vsel %vm287, %v1304, %v1303
      %v1306 = vrot.slane %v256, 6
      %v1307 = vsel %vm290, %v1306, %v1305
      %v1308 = vrot.slane %v257, 5
      %v1309 = vsel %vm293, %v1308, %v1307
      %v1310 = vrot.slane %v258, 4
      %v1311 = vsel %vm296, %v1310, %v1309
      %v1312 = vrot.slane %v259, 3
      %v1313 = vsel %vm299, %v1312, %v1311
      %v1314 = vsel %vm301, %v1313, 0
      %1316 = vmatprep.subr.mxu0 0.0
      %v1317 = vand.u32 %v1296, 4294901760
      %1318 = vmatpush1.msra.mxu0 %v1317
      %1319 = vmatprep.subr.mxu0 0.0
      %v1320 = vand.u32 %v1297, 4294901760
      %1321 = vmatpush1.msra.mxu0 %v1320
      %1322 = vmatprep.subr.mxu0 0.0
      %v1323 = vand.u32 %v1298, 4294901760
      %1324 = vmatpush1.msra.mxu0 %v1323
      %1325 = vmatprep.subr.mxu0 0.0
      %v1326 = vand.u32 %v1299, 4294901760
      %1327 = vmatpush1.msra.mxu0 %v1326
      %1328 = vmatprep.subr.mxu0 0.0
      %1329 = vmatpush1.msra.mxu0 0.0
      %1330 = vmatprep.subr.mxu0 0.0
      %1331 = vmatpush1.msra.mxu0 0.0
      %1332 = vmatprep.subr.mxu0 0.0
      %1333 = vmatpush1.msra.mxu0 0.0
      %1334 = vmatprep.subr.mxu0 0.0
      %1335 = vmatpush1.msra.mxu0 0.0
      %1336 = vmatprep.subr.mxu0 0.0
      %1337 = vmatpush1.msra.mxu0 0.0
      %1338 = vmatprep.subr.mxu0 0.0
      %1339 = vmatpush1.msra.mxu0 0.0
      %1340 = vmatprep.subr.mxu0 0.0
      %1341 = vmatpush1.msra.mxu0 0.0
      %1342 = vmatprep.subr.mxu0 0.0
      %1343 = vmatpush1.msra.mxu0 0.0
      %1344 = vmatprep.subr.mxu0 0.0
      %1345 = vmatpush1.msra.mxu0 0.0
      %1346 = vmatprep.subr.mxu0 0.0
      %1347 = vmatpush1.msra.mxu0 0.0
      %1348 = vmatprep.subr.mxu0 0.0
      %1349 = vmatpush1.msra.mxu0 0.0
      %1350 = vmatprep.subr.mxu0 0.0
      %1351 = vmatpush1.msra.mxu0 0.0
      %1352 = vmatprep.subr.mxu0 0.0
      %1353 = vmatpush1.msra.mxu0 0.0
      %1354 = vmatprep.subr.mxu0 0.0
      %1355 = vmatpush1.msra.mxu0 0.0
      %1356 = vmatprep.subr.mxu0 0.0
      %1357 = vmatpush1.msra.mxu0 0.0
      %1358 = vmatprep.subr.mxu0 0.0
      %1359 = vmatpush1.msra.mxu0 0.0
      %1360 = vmatprep.subr.mxu0 0.0
      %1361 = vmatpush1.msra.mxu0 0.0
      %1362 = vmatprep.subr.mxu0 0.0
      %1363 = vmatpush1.msra.mxu0 0.0
      %1364 = vmatprep.subr.mxu0 0.0
      %1365 = vmatpush1.msra.mxu0 0.0
      %1366 = vmatprep.subr.mxu0 0.0
      %1367 = vmatpush1.msra.mxu0 0.0
      %1368 = vmatprep.subr.mxu0 0.0
      %1369 = vmatpush1.msra.mxu0 0.0
      %1370 = vmatprep.subr.mxu0 0.0
      %1371 = vmatpush1.msra.mxu0 0.0
      %1372 = vmatprep.subr.mxu0 0.0
      %1373 = vmatpush1.msra.mxu0 0.0
      %1374 = vmatprep.subr.mxu0 0.0
      %1375 = vmatpush1.msra.mxu0 0.0
      %1376 = vmatprep.subr.mxu0 0.0
      %1377 = vmatpush1.msra.mxu0 0.0
      %1378 = vmatprep.subr.mxu0 0.0
      %1379 = vmatpush1.msra.mxu0 0.0
      %1380 = vmatprep.subr.mxu0 0.0
      %1381 = vmatpush1.msra.mxu0 0.0
      %1382 = vmatprep.subr.mxu0 0.0
      %1383 = vmatpush1.msra.mxu0 0.0
      %1384 = vmatprep.mubr.f32.mxu0 0.0
      %v1385 = vand.u32 %v1314, 4294901760
      %v1386 = vsub.f32 %v1314, %v1385
      %v1387 = vand.u32 %v1386, 4294901760
      %v1388 = vsub.f32 %v1386, %v1387
      %v1389 = vand.u32 %v1388, 4294901760
      %1390 = vmatmul.mubr.f32.gmra.mrb[0].mxu0 %v1389
      %v1391 = vpop.f32.mrb[0].mxu0
      %v1392 = vadd.f32 0.0, %v1391
      %v1393 = vpop.f32.mrb[0].mxu0
      %1394 = vdwg.mxu0
      %1395 = vmatprep.subr.mxu0 0.0
      %v1396 = vand.u32 %v1296, 4294901760
      %v1397 = vsub.f32 %v1296, %v1396
      %v1398 = vand.u32 %v1397, 4294901760
      %v1399 = vsub.f32 %v1397, %v1398
      %v1400 = vand.u32 %v1399, 4294901760
      %1401 = vmatpush1.msra.mxu0 %v1400
      %1402 = vmatprep.subr.mxu0 0.0
      %v1403 = vand.u32 %v1297, 4294901760
      %v1404 = vsub.f32 %v1297, %v1403
      %v1405 = vand.u32 %v1404, 4294901760
      %v1406 = vsub.f32 %v1404, %v1405
      %v1407 = vand.u32 %v1406, 4294901760
      %1408 = vmatpush1.msra.mxu0 %v1407
      %1409 = vmatprep.subr.mxu0 0.0
      %v1410 = vand.u32 %v1298, 4294901760
      %v1411 = vsub.f32 %v1298, %v1410
      %v1412 = vand.u32 %v1411, 4294901760
      %v1413 = vsub.f32 %v1411, %v1412
      %v1414 = vand.u32 %v1413, 4294901760
      %1415 = vmatpush1.msra.mxu0 %v1414
      %1416 = vmatprep.subr.mxu0 0.0
      %v1417 = vand.u32 %v1299, 4294901760
      %v1418 = vsub.f32 %v1299, %v1417
      %v1419 = vand.u32 %v1418, 4294901760
      %v1420 = vsub.f32 %v1418, %v1419
      %v1421 = vand.u32 %v1420, 4294901760
      %1422 = vmatpush1.msra.mxu0 %v1421
      %1423 = vmatprep.subr.mxu0 0.0
      %1424 = vmatpush1.msra.mxu0 0.0
      %1425 = vmatprep.subr.mxu0 0.0
      %1426 = vmatpush1.msra.mxu0 0.0
      %1427 = vmatprep.subr.mxu0 0.0
      %1428 = vmatpush1.msra.mxu0 0.0
      %1429 = vmatprep.subr.mxu0 0.0
      %1430 = vmatpush1.msra.mxu0 0.0
      %1431 = vmatprep.subr.mxu0 0.0
      %1432 = vmatpush1.msra.mxu0 0.0
      %1433 = vmatprep.subr.mxu0 0.0
      %1434 = vmatpush1.msra.mxu0 0.0
      %1435 = vmatprep.subr.mxu0 0.0
      %1436 = vmatpush1.msra.mxu0 0.0
      %1437 = vmatprep.subr.mxu0 0.0
      %1438 = vmatpush1.msra.mxu0 0.0
      %1439 = vmatprep.subr.mxu0 0.0
      %1440 = vmatpush1.msra.mxu0 0.0
      %1441 = vmatprep.subr.mxu0 0.0
      %1442 = vmatpush1.msra.mxu0 0.0
      %1443 = vmatprep.subr.mxu0 0.0
      %1444 = vmatpush1.msra.mxu0 0.0
      %1445 = vmatprep.subr.mxu0 0.0
      %1446 = vmatpush1.msra.mxu0 0.0
      %1447 = vmatprep.subr.mxu0 0.0
      %1448 = vmatpush1.msra.mxu0 0.0
      %1449 = vmatprep.subr.mxu0 0.0
      %1450 = vmatpush1.msra.mxu0 0.0
      %1451 = vmatprep.subr.mxu0 0.0
      %1452 = vmatpush1.msra.mxu0 0.0
      %1453 = vmatprep.subr.mxu0 0.0
      %1454 = vmatpush1.msra.mxu0 0.0
      %1455 = vmatprep.subr.mxu0 0.0
      %1456 = vmatpush1.msra.mxu0 0.0
      %1457 = vmatprep.subr.mxu0 0.0
      %1458 = vmatpush1.msra.mxu0 0.0
      %1459 = vmatprep.subr.mxu0 0.0
      %1460 = vmatpush1.msra.mxu0 0.0
      %1461 = vmatprep.subr.mxu0 0.0
      %1462 = vmatpush1.msra.mxu0 0.0
      %1463 = vmatprep.subr.mxu0 0.0
      %1464 = vmatpush1.msra.mxu0 0.0
      %1465 = vmatprep.subr.mxu0 0.0
      %1466 = vmatpush1.msra.mxu0 0.0
      %1467 = vmatprep.subr.mxu0 0.0
      %1468 = vmatpush1.msra.mxu0 0.0
      %1469 = vmatprep.subr.mxu0 0.0
      %1470 = vmatpush1.msra.mxu0 0.0
      %1471 = vmatprep.subr.mxu0 0.0
      %1472 = vmatpush1.msra.mxu0 0.0
      %1473 = vmatprep.subr.mxu0 0.0
      %1474 = vmatpush1.msra.mxu0 0.0
      %1475 = vmatprep.subr.mxu0 0.0
      %1476 = vmatpush1.msra.mxu0 0.0
      %1477 = vmatprep.subr.mxu0 0.0
      %1478 = vmatpush1.msra.mxu0 0.0
      %1479 = vmatprep.mubr.f32.mxu0 0.0
      %v1480 = vand.u32 %v1314, 4294901760
      %1481 = vmatmul.mubr.f32.gmra.mrb[0].mxu0 %v1480
      %v1482 = vpop.f32.mrb[0].mxu0
      %v1483 = vadd.f32 %v1392, %v1482
      %v1484 = vpop.f32.mrb[0].mxu0
      %1485 = vdwg.mxu0
      %1486 = vmatprep.subr.mxu0 0.0
      %v1487 = vand.u32 %v1296, 4294901760
      %v1488 = vsub.f32 %v1296, %v1487
      %1489 = vmatpush1.msra.mxu0 %v1488
      %1490 = vmatprep.subr.mxu0 0.0
      %v1491 = vand.u32 %v1297, 4294901760
      %v1492 = vsub.f32 %v1297, %v1491
      %1493 = vmatpush1.msra.mxu0 %v1492
      %1494 = vmatprep.subr.mxu0 0.0
      %v1495 = vand.u32 %v1298, 4294901760
      %v1496 = vsub.f32 %v1298, %v1495
      %1497 = vmatpush1.msra.mxu0 %v1496
      %1498 = vmatprep.subr.mxu0 0.0
      %v1499 = vand.u32 %v1299, 4294901760
      %v1500 = vsub.f32 %v1299, %v1499
      %1501 = vmatpush1.msra.mxu0 %v1500
      %1502 = vmatprep.subr.mxu0 0.0
      %1503 = vmatpush1.msra.mxu0 0.0
      %1504 = vmatprep.subr.mxu0 0.0
      %1505 = vmatpush1.msra.mxu0 0.0
      %1506 = vmatprep.subr.mxu0 0.0
      %1507 = vmatpush1.msra.mxu0 0.0
      %1508 = vmatprep.subr.mxu0 0.0
      %1509 = vmatpush1.msra.mxu0 0.0
      %1510 = vmatprep.subr.mxu0 0.0
      %1511 = vmatpush1.msra.mxu0 0.0
      %1512 = vmatprep.subr.mxu0 0.0
      %1513 = vmatpush1.msra.mxu0 0.0
      %1514 = vmatprep.subr.mxu0 0.0
      %1515 = vmatpush1.msra.mxu0 0.0
      %1516 = vmatprep.subr.mxu0 0.0
      %1517 = vmatpush1.msra.mxu0 0.0
      %1518 = vmatprep.subr.mxu0 0.0
      %1519 = vmatpush1.msra.mxu0 0.0
      %1520 = vmatprep.subr.mxu0 0.0
      %1521 = vmatpush1.msra.mxu0 0.0
      %1522 = vmatprep.subr.mxu0 0.0
      %1523 = vmatpush1.msra.mxu0 0.0
      %1524 = vmatprep.subr.mxu0 0.0
      %1525 = vmatpush1.msra.mxu0 0.0
      %1526 = vmatprep.subr.mxu0 0.0
      %1527 = vmatpush1.msra.mxu0 0.0
      %1528 = vmatprep.subr.mxu0 0.0
      %1529 = vmatpush1.msra.mxu0 0.0
      %1530 = vmatprep.subr.mxu0 0.0
      %1531 = vmatpush1.msra.mxu0 0.0
      %1532 = vmatprep.subr.mxu0 0.0
      %1533 = vmatpush1.msra.mxu0 0.0
      %1534 = vmatprep.subr.mxu0 0.0
      %1535 = vmatpush1.msra.mxu0 0.0
      %1536 = vmatprep.subr.mxu0 0.0
      %1537 = vmatpush1.msra.mxu0 0.0
      %1538 = vmatprep.subr.mxu0 0.0
      %1539 = vmatpush1.msra.mxu0 0.0
      %1540 = vmatprep.subr.mxu0 0.0
      %1541 = vmatpush1.msra.mxu0 0.0
      %1542 = vmatprep.subr.mxu0 0.0
      %1543 = vmatpush1.msra.mxu0 0.0
      %1544 = vmatprep.subr.mxu0 0.0
      %1545 = vmatpush1.msra.mxu0 0.0
      %1546 = vmatprep.subr.mxu0 0.0
      %1547 = vmatpush1.msra.mxu0 0.0
      %1548 = vmatprep.subr.mxu0 0.0
      %1549 = vmatpush1.msra.mxu0 0.0
      %1550 = vmatprep.subr.mxu0 0.0
      %1551 = vmatpush1.msra.mxu0 0.0
      %1552 = vmatprep.subr.mxu0 0.0
      %1553 = vmatpush1.msra.mxu0 0.0
      %1554 = vmatprep.subr.mxu0 0.0
      %1555 = vmatpush1.msra.mxu0 0.0
      %1556 = vmatprep.subr.mxu0 0.0
      %1557 = vmatpush1.msra.mxu0 0.0
      %1558 = vmatprep.mubr.f32.mxu0 0.0
      %v1559 = vand.u32 %v1314, 4294901760
      %v1560 = vsub.f32 %v1314, %v1559
      %1561 = vmatmul.mubr.f32.gmra.mrb[0].mxu0 %v1560
      %v1562 = vpop.f32.mrb[0].mxu0
      %v1563 = vadd.f32 %v1483, %v1562
      %v1564 = vpop.f32.mrb[0].mxu0
      %1565 = vdwg.mxu0
      %1566 = vmatprep.subr.mxu0 0.0
      %v1567 = vand.u32 %v1296, 4294901760
      %1568 = vmatpush1.msra.mxu0 %v1567
      %1569 = vmatprep.subr.mxu0 0.0
      %v1570 = vand.u32 %v1297, 4294901760
      %1571 = vmatpush1.msra.mxu0 %v1570
      %1572 = vmatprep.subr.mxu0 0.0
      %v1573 = vand.u32 %v1298, 4294901760
      %1574 = vmatpush1.msra.mxu0 %v1573
      %1575 = vmatprep.subr.mxu0 0.0
      %v1576 = vand.u32 %v1299, 4294901760
      %1577 = vmatpush1.msra.mxu0 %v1576
      %1578 = vmatprep.subr.mxu0 0.0
      %1579 = vmatpush1.msra.mxu0 0.0
      %1580 = vmatprep.subr.mxu0 0.0
      %1581 = vmatpush1.msra.mxu0 0.0
      %1582 = vmatprep.subr.mxu0 0.0
      %1583 = vmatpush1.msra.mxu0 0.0
      %1584 = vmatprep.subr.mxu0 0.0
      %1585 = vmatpush1.msra.mxu0 0.0
      %1586 = vmatprep.subr.mxu0 0.0
      %1587 = vmatpush1.msra.mxu0 0.0
      %1588 = vmatprep.subr.mxu0 0.0
      %1589 = vmatpush1.msra.mxu0 0.0
      %1590 = vmatprep.subr.mxu0 0.0
      %1591 = vmatpush1.msra.mxu0 0.0
      %1592 = vmatprep.subr.mxu0 0.0
      %1593 = vmatpush1.msra.mxu0 0.0
      %1594 = vmatprep.subr.mxu0 0.0
      %1595 = vmatpush1.msra.mxu0 0.0
      %1596 = vmatprep.subr.mxu0 0.0
      %1597 = vmatpush1.msra.mxu0 0.0
      %1598 = vmatprep.subr.mxu0 0.0
      %1599 = vmatpush1.msra.mxu0 0.0
      %1600 = vmatprep.subr.mxu0 0.0
      %1601 = vmatpush1.msra.mxu0 0.0
      %1602 = vmatprep.subr.mxu0 0.0
      %1603 = vmatpush1.msra.mxu0 0.0
      %1604 = vmatprep.subr.mxu0 0.0
      %1605 = vmatpush1.msra.mxu0 0.0
      %1606 = vmatprep.subr.mxu0 0.0
      %1607 = vmatpush1.msra.mxu0 0.0
      %1608 = vmatprep.subr.mxu0 0.0
      %1609 = vmatpush1.msra.mxu0 0.0
      %1610 = vmatprep.subr.mxu0 0.0
      %1611 = vmatpush1.msra.mxu0 0.0
      %1612 = vmatprep.subr.mxu0 0.0
      %1613 = vmatpush1.msra.mxu0 0.0
      %1614 = vmatprep.subr.mxu0 0.0
      %1615 = vmatpush1.msra.mxu0 0.0
      %1616 = vmatprep.subr.mxu0 0.0
      %1617 = vmatpush1.msra.mxu0 0.0
      %1618 = vmatprep.subr.mxu0 0.0
      %1619 = vmatpush1.msra.mxu0 0.0
      %1620 = vmatprep.subr.mxu0 0.0
      %1621 = vmatpush1.msra.mxu0 0.0
      %1622 = vmatprep.subr.mxu0 0.0
      %1623 = vmatpush1.msra.mxu0 0.0
      %1624 = vmatprep.subr.mxu0 0.0
      %1625 = vmatpush1.msra.mxu0 0.0
      %1626 = vmatprep.subr.mxu0 0.0
      %1627 = vmatpush1.msra.mxu0 0.0
      %1628 = vmatprep.subr.mxu0 0.0
      %1629 = vmatpush1.msra.mxu0 0.0
      %1630 = vmatprep.subr.mxu0 0.0
      %1631 = vmatpush1.msra.mxu0 0.0
      %1632 = vmatprep.subr.mxu0 0.0
      %1633 = vmatpush1.msra.mxu0 0.0
      %1634 = vmatprep.mubr.f32.mxu0 0.0
      %v1635 = vand.u32 %v1314, 4294901760
      %v1636 = vsub.f32 %v1314, %v1635
      %v1637 = vand.u32 %v1636, 4294901760
      %1638 = vmatmul.mubr.f32.gmra.mrb[0].mxu0 %v1637
      %v1639 = vpop.f32.mrb[0].mxu0
      %v1640 = vadd.f32 %v1563, %v1639
      %v1641 = vpop.f32.mrb[0].mxu0
      %1642 = vdwg.mxu0
      %1643 = vmatprep.subr.mxu0 0.0
      %v1644 = vand.u32 %v1296, 4294901760
      %v1645 = vsub.f32 %v1296, %v1644
      %v1646 = vand.u32 %v1645, 4294901760
      %1647 = vmatpush1.msra.mxu0 %v1646
      %1648 = vmatprep.subr.mxu0 0.0
      %v1649 = vand.u32 %v1297, 4294901760
      %v1650 = vsub.f32 %v1297, %v1649
      %v1651 = vand.u32 %v1650, 4294901760
      %1652 = vmatpush1.msra.mxu0 %v1651
      %1653 = vmatprep.subr.mxu0 0.0
      %v1654 = vand.u32 %v1298, 4294901760
      %v1655 = vsub.f32 %v1298, %v1654
      %v1656 = vand.u32 %v1655, 4294901760
      %1657 = vmatpush1.msra.mxu0 %v1656
      %1658 = vmatprep.subr.mxu0 0.0
      %v1659 = vand.u32 %v1299, 4294901760
      %v1660 = vsub.f32 %v1299, %v1659
      %v1661 = vand.u32 %v1660, 4294901760
      %1662 = vmatpush1.msra.mxu0 %v1661
      %1663 = vmatprep.subr.mxu0 0.0
      %1664 = vmatpush1.msra.mxu0 0.0
      %1665 = vmatprep.subr.mxu0 0.0
      %1666 = vmatpush1.msra.mxu0 0.0
      %1667 = vmatprep.subr.mxu0 0.0
      %1668 = vmatpush1.msra.mxu0 0.0
      %1669 = vmatprep.subr.mxu0 0.0
      %1670 = vmatpush1.msra.mxu0 0.0
      %1671 = vmatprep.subr.mxu0 0.0
      %1672 = vmatpush1.msra.mxu0 0.0
      %1673 = vmatprep.subr.mxu0 0.0
      %1674 = vmatpush1.msra.mxu0 0.0
      %1675 = vmatprep.subr.mxu0 0.0
      %1676 = vmatpush1.msra.mxu0 0.0
      %1677 = vmatprep.subr.mxu0 0.0
      %1678 = vmatpush1.msra.mxu0 0.0
      %1679 = vmatprep.subr.mxu0 0.0
      %1680 = vmatpush1.msra.mxu0 0.0
      %1681 = vmatprep.subr.mxu0 0.0
      %1682 = vmatpush1.msra.mxu0 0.0
      %1683 = vmatprep.subr.mxu0 0.0
      %1684 = vmatpush1.msra.mxu0 0.0
      %1685 = vmatprep.subr.mxu0 0.0
      %1686 = vmatpush1.msra.mxu0 0.0
      %1687 = vmatprep.subr.mxu0 0.0
      %1688 = vmatpush1.msra.mxu0 0.0
      %1689 = vmatprep.subr.mxu0 0.0
      %1690 = vmatpush1.msra.mxu0 0.0
      %1691 = vmatprep.subr.mxu0 0.0
      %1692 = vmatpush1.msra.mxu0 0.0
      %1693 = vmatprep.subr.mxu0 0.0
      %1694 = vmatpush1.msra.mxu0 0.0
      %1695 = vmatprep.subr.mxu0 0.0
      %1696 = vmatpush1.msra.mxu0 0.0
      %1697 = vmatprep.subr.mxu0 0.0
      %1698 = vmatpush1.msra.mxu0 0.0
      %1699 = vmatprep.subr.mxu0 0.0
      %1700 = vmatpush1.msra.mxu0 0.0
      %1701 = vmatprep.subr.mxu0 0.0
      %1702 = vmatpush1.msra.mxu0 0.0
      %1703 = vmatprep.subr.mxu0 0.0
      %1704 = vmatpush1.msra.mxu0 0.0
      %1705 = vmatprep.subr.mxu0 0.0
      %1706 = vmatpush1.msra.mxu0 0.0
      %1707 = vmatprep.subr.mxu0 0.0
      %1708 = vmatpush1.msra.mxu0 0.0
      %1709 = vmatprep.subr.mxu0 0.0
      %1710 = vmatpush1.msra.mxu0 0.0
      %1711 = vmatprep.subr.mxu0 0.0
      %1712 = vmatpush1.msra.mxu0 0.0
      %1713 = vmatprep.subr.mxu0 0.0
      %1714 = vmatpush1.msra.mxu0 0.0
      %1715 = vmatprep.subr.mxu0 0.0
      %1716 = vmatpush1.msra.mxu0 0.0
      %1717 = vmatprep.subr.mxu0 0.0
      %1718 = vmatpush1.msra.mxu0 0.0
      %1719 = vmatprep.mubr.f32.mxu0 0.0
      %v1720 = vand.u32 %v1314, 4294901760
      %1721 = vmatmul.mubr.f32.gmra.mrb[0].mxu0 %v1720
      %v1722 = vpop.f32.mrb[0].mxu0
      %v1723 = vadd.f32 %v1640, %v1722
      %v1724 = vpop.f32.mrb[0].mxu0
      %1725 = vdwg.mxu0
      %1726 = vmatprep.subr.mxu0 0.0
      %v1727 = vand.u32 %v1296, 4294901760
      %1728 = vmatpush1.msra.mxu0 %v1727
      %1729 = vmatprep.subr.mxu0 0.0
      %v1730 = vand.u32 %v1297, 4294901760
      %1731 = vmatpush1.msra.mxu0 %v1730
      %1732 = vmatprep.subr.mxu0 0.0
      %v1733 = vand.u32 %v1298, 4294901760
      %1734 = vmatpush1.msra.mxu0 %v1733
      %1735 = vmatprep.subr.mxu0 0.0
      %v1736 = vand.u32 %v1299, 4294901760
      %1737 = vmatpush1.msra.mxu0 %v1736
      %1738 = vmatprep.subr.mxu0 0.0
      %1739 = vmatpush1.msra.mxu0 0.0
      %1740 = vmatprep.subr.mxu0 0.0
      %1741 = vmatpush1.msra.mxu0 0.0
      %1742 = vmatprep.subr.mxu0 0.0
      %1743 = vmatpush1.msra.mxu0 0.0
      %1744 = vmatprep.subr.mxu0 0.0
      %1745 = vmatpush1.msra.mxu0 0.0
      %1746 = vmatprep.subr.mxu0 0.0
      %1747 = vmatpush1.msra.mxu0 0.0
      %1748 = vmatprep.subr.mxu0 0.0
      %1749 = vmatpush1.msra.mxu0 0.0
      %1750 = vmatprep.subr.mxu0 0.0
      %1751 = vmatpush1.msra.mxu0 0.0
      %1752 = vmatprep.subr.mxu0 0.0
      %1753 = vmatpush1.msra.mxu0 0.0
      %1754 = vmatprep.subr.mxu0 0.0
      %1755 = vmatpush1.msra.mxu0 0.0
      %1756 = vmatprep.subr.mxu0 0.0
      %1757 = vmatpush1.msra.mxu0 0.0
      %1758 = vmatprep.subr.mxu0 0.0
      %1759 = vmatpush1.msra.mxu0 0.0
      %1760 = vmatprep.subr.mxu0 0.0
      %1761 = vmatpush1.msra.mxu0 0.0
      %1762 = vmatprep.subr.mxu0 0.0
      %1763 = vmatpush1.msra.mxu0 0.0
      %1764 = vmatprep.subr.mxu0 0.0
      %1765 = vmatpush1.msra.mxu0 0.0
      %1766 = vmatprep.subr.mxu0 0.0
      %1767 = vmatpush1.msra.mxu0 0.0
      %1768 = vmatprep.subr.mxu0 0.0
      %1769 = vmatpush1.msra.mxu0 0.0
      %1770 = vmatprep.subr.mxu0 0.0
      %1771 = vmatpush1.msra.mxu0 0.0
      %1772 = vmatprep.subr.mxu0 0.0
      %1773 = vmatpush1.msra.mxu0 0.0
      %1774 = vmatprep.subr.mxu0 0.0
      %1775 = vmatpush1.msra.mxu0 0.0
      %1776 = vmatprep.subr.mxu0 0.0
      %1777 = vmatpush1.msra.mxu0 0.0
      %1778 = vmatprep.subr.mxu0 0.0
      %1779 = vmatpush1.msra.mxu0 0.0
      %1780 = vmatprep.subr.mxu0 0.0
      %1781 = vmatpush1.msra.mxu0 0.0
      %1782 = vmatprep.subr.mxu0 0.0
      %1783 = vmatpush1.msra.mxu0 0.0
      %1784 = vmatprep.subr.mxu0 0.0
      %1785 = vmatpush1.msra.mxu0 0.0
      %1786 = vmatprep.subr.mxu0 0.0
      %1787 = vmatpush1.msra.mxu0 0.0
      %1788 = vmatprep.subr.mxu0 0.0
      %1789 = vmatpush1.msra.mxu0 0.0
      %1790 = vmatprep.subr.mxu0 0.0
      %1791 = vmatpush1.msra.mxu0 0.0
      %1792 = vmatprep.subr.mxu0 0.0
      %1793 = vmatpush1.msra.mxu0 0.0
      %1794 = vmatprep.mubr.f32.mxu0 0.0
      %v1795 = vand.u32 %v1314, 4294901760
      %1796 = vmatmul.mubr.f32.gmra.mrb[0].mxu0 %v1795
      %v1797 = vpop.f32.mrb[0].mxu0
      %v1798 = vadd.f32 %v1723, %v1797
      %v1799 = vpop.f32.mrb[0].mxu0
      %1800 = vdwg.mxu0
      %s1801 = scalar_lea.vmem %s2, 96
      %v1802 = vld [vmem:[%s1801] sm:$0xff]
      %v1803 = vld [vmem:[%s1801 + $0x8] sm:$0xff]
      %v1804 = vld [vmem:[%s1801 + $0x10] sm:$0xff]
      %v1805 = vld [vmem:[%s1801 + $0x18] sm:$0xff]
      %v1806 = vrot.slane %v252, 3
      %v1807 = vrot.slane %v253, 2
      %v1808 = vsel %vm281, %v1807, %v1806
      %v1809 = vrot.slane %v254, 1
      %v1810 = vsel %vm284, %v1809, %v1808
      %v1811 = vsel %vm287, %v255, %v1810
      %v1812 = vrot.slane %v256, 7
      %v1813 = vsel %vm290, %v1812, %v1811
      %v1814 = vrot.slane %v257, 6
      %v1815 = vsel %vm293, %v1814, %v1813
      %v1816 = vrot.slane %v258, 5
      %v1817 = vsel %vm296, %v1816, %v1815
      %v1818 = vrot.slane %v259, 4
      %v1819 = vsel %vm299, %v1818, %v1817
      %v1820 = vsel %vm301, %v1819, 0
      %1822 = vmatprep.subr.mxu0 0.0
      %v1823 = vand.u32 %v1802, 4294901760
      %1824 = vmatpush1.msra.mxu0 %v1823
      %1825 = vmatprep.subr.mxu0 0.0
      %v1826 = vand.u32 %v1803, 4294901760
      %1827 = vmatpush1.msra.mxu0 %v1826
      %1828 = vmatprep.subr.mxu0 0.0
      %v1829 = vand.u32 %v1804, 4294901760
      %1830 = vmatpush1.msra.mxu0 %v1829
      %1831 = vmatprep.subr.mxu0 0.0
      %v1832 = vand.u32 %v1805, 4294901760
      %1833 = vmatpush1.msra.mxu0 %v1832
      %1834 = vmatprep.subr.mxu0 0.0
      %1835 = vmatpush1.msra.mxu0 0.0
      %1836 = vmatprep.subr.mxu0 0.0
      %1837 = vmatpush1.msra.mxu0 0.0
      %1838 = vmatprep.subr.mxu0 0.0
      %1839 = vmatpush1.msra.mxu0 0.0
      %1840 = vmatprep.subr.mxu0 0.0
      %1841 = vmatpush1.msra.mxu0 0.0
      %1842 = vmatprep.subr.mxu0 0.0
      %1843 = vmatpush1.msra.mxu0 0.0
      %1844 = vmatprep.subr.mxu0 0.0
      %1845 = vmatpush1.msra.mxu0 0.0
      %1846 = vmatprep.subr.mxu0 0.0
      %1847 = vmatpush1.msra.mxu0 0.0
      %1848 = vmatprep.subr.mxu0 0.0
      %1849 = vmatpush1.msra.mxu0 0.0
      %1850 = vmatprep.subr.mxu0 0.0
      %1851 = vmatpush1.msra.mxu0 0.0
      %1852 = vmatprep.subr.mxu0 0.0
      %1853 = vmatpush1.msra.mxu0 0.0
      %1854 = vmatprep.subr.mxu0 0.0
      %1855 = vmatpush1.msra.mxu0 0.0
      %1856 = vmatprep.subr.mxu0 0.0
      %1857 = vmatpush1.msra.mxu0 0.0
      %1858 = vmatprep.subr.mxu0 0.0
      %1859 = vmatpush1.msra.mxu0 0.0
      %1860 = vmatprep.subr.mxu0 0.0
      %1861 = vmatpush1.msra.mxu0 0.0
      %1862 = vmatprep.subr.mxu0 0.0
      %1863 = vmatpush1.msra.mxu0 0.0
      %1864 = vmatprep.subr.mxu0 0.0
      %1865 = vmatpush1.msra.mxu0 0.0
      %1866 = vmatprep.subr.mxu0 0.0
      %1867 = vmatpush1.msra.mxu0 0.0
      %1868 = vmatprep.subr.mxu0 0.0
      %1869 = vmatpush1.msra.mxu0 0.0
      %1870 = vmatprep.subr.mxu0 0.0
      %1871 = vmatpush1.msra.mxu0 0.0
      %1872 = vmatprep.subr.mxu0 0.0
      %1873 = vmatpush1.msra.mxu0 0.0
      %1874 = vmatprep.subr.mxu0 0.0
      %1875 = vmatpush1.msra.mxu0 0.0
      %1876 = vmatprep.subr.mxu0 0.0
      %1877 = vmatpush1.msra.mxu0 0.0
      %1878 = vmatprep.subr.mxu0 0.0
      %1879 = vmatpush1.msra.mxu0 0.0
      %1880 = vmatprep.subr.mxu0 0.0
      %1881 = vmatpush1.msra.mxu0 0.0
      %1882 = vmatprep.subr.mxu0 0.0
      %1883 = vmatpush1.msra.mxu0 0.0
      %1884 = vmatprep.subr.mxu0 0.0
      %1885 = vmatpush1.msra.mxu0 0.0
      %1886 = vmatprep.subr.mxu0 0.0
      %1887 = vmatpush1.msra.mxu0 0.0
      %1888 = vmatprep.subr.mxu0 0.0
      %1889 = vmatpush1.msra.mxu0 0.0
      %1890 = vmatprep.mubr.f32.mxu0 0.0
      %v1891 = vand.u32 %v1820, 4294901760
      %v1892 = vsub.f32 %v1820, %v1891
      %v1893 = vand.u32 %v1892, 4294901760
      %v1894 = vsub.f32 %v1892, %v1893
      %v1895 = vand.u32 %v1894, 4294901760
      %1896 = vmatmul.mubr.f32.gmra.mrb[0].mxu0 %v1895
      %v1897 = vpop.f32.mrb[0].mxu0
      %v1898 = vadd.f32 0.0, %v1897
      %v1899 = vpop.f32.mrb[0].mxu0
      %1900 = vdwg.mxu0
      %1901 = vmatprep.subr.mxu0 0.0
      %v1902 = vand.u32 %v1802, 4294901760
      %v1903 = vsub.f32 %v1802, %v1902
      %v1904 = vand.u32 %v1903, 4294901760
      %v1905 = vsub.f32 %v1903, %v1904
      %v1906 = vand.u32 %v1905, 4294901760
      %1907 = vmatpush1.msra.mxu0 %v1906
      %1908 = vmatprep.subr.mxu0 0.0
      %v1909 = vand.u32 %v1803, 4294901760
      %v1910 = vsub.f32 %v1803, %v1909
      %v1911 = vand.u32 %v1910, 4294901760
      %v1912 = vsub.f32 %v1910, %v1911
      %v1913 = vand.u32 %v1912, 4294901760
      %1914 = vmatpush1.msra.mxu0 %v1913
      %1915 = vmatprep.subr.mxu0 0.0
      %v1916 = vand.u32 %v1804, 4294901760
      %v1917 = vsub.f32 %v1804, %v1916
      %v1918 = vand.u32 %v1917, 4294901760
      %v1919 = vsub.f32 %v1917, %v1918
      %v1920 = vand.u32 %v1919, 4294901760
      %1921 = vmatpush1.msra.mxu0 %v1920
      %1922 = vmatprep.subr.mxu0 0.0
      %v1923 = vand.u32 %v1805, 4294901760
      %v1924 = vsub.f32 %v1805, %v1923
      %v1925 = vand.u32 %v1924, 4294901760
      %v1926 = vsub.f32 %v1924, %v1925
      %v1927 = vand.u32 %v1926, 4294901760
      %1928 = vmatpush1.msra.mxu0 %v1927
      %1929 = vmatprep.subr.mxu0 0.0
      %1930 = vmatpush1.msra.mxu0 0.0
      %1931 = vmatprep.subr.mxu0 0.0
      %1932 = vmatpush1.msra.mxu0 0.0
      %1933 = vmatprep.subr.mxu0 0.0
      %1934 = vmatpush1.msra.mxu0 0.0
      %1935 = vmatprep.subr.mxu0 0.0
      %1936 = vmatpush1.msra.mxu0 0.0
      %1937 = vmatprep.subr.mxu0 0.0
      %1938 = vmatpush1.msra.mxu0 0.0
      %1939 = vmatprep.subr.mxu0 0.0
      %1940 = vmatpush1.msra.mxu0 0.0
      %1941 = vmatprep.subr.mxu0 0.0
      %1942 = vmatpush1.msra.mxu0 0.0
      %1943 = vmatprep.subr.mxu0 0.0
      %1944 = vmatpush1.msra.mxu0 0.0
      %1945 = vmatprep.subr.mxu0 0.0
      %1946 = vmatpush1.msra.mxu0 0.0
      %1947 = vmatprep.subr.mxu0 0.0
      %1948 = vmatpush1.msra.mxu0 0.0
      %1949 = vmatprep.subr.mxu0 0.0
      %1950 = vmatpush1.msra.mxu0 0.0
      %1951 = vmatprep.subr.mxu0 0.0
      %1952 = vmatpush1.msra.mxu0 0.0
      %1953 = vmatprep.subr.mxu0 0.0
      %1954 = vmatpush1.msra.mxu0 0.0
      %1955 = vmatprep.subr.mxu0 0.0
      %1956 = vmatpush1.msra.mxu0 0.0
      %1957 = vmatprep.subr.mxu0 0.0
      %1958 = vmatpush1.msra.mxu0 0.0
      %1959 = vmatprep.subr.mxu0 0.0
      %1960 = vmatpush1.msra.mxu0 0.0
      %1961 = vmatprep.subr.mxu0 0.0
      %1962 = vmatpush1.msra.mxu0 0.0
      %1963 = vmatprep.subr.mxu0 0.0
      %1964 = vmatpush1.msra.mxu0 0.0
      %1965 = vmatprep.subr.mxu0 0.0
      %1966 = vmatpush1.msra.mxu0 0.0
      %1967 = vmatprep.subr.mxu0 0.0
      %1968 = vmatpush1.msra.mxu0 0.0
      %1969 = vmatprep.subr.mxu0 0.0
      %1970 = vmatpush1.msra.mxu0 0.0
      %1971 = vmatprep.subr.mxu0 0.0
      %1972 = vmatpush1.msra.mxu0 0.0
      %1973 = vmatprep.subr.mxu0 0.0
      %1974 = vmatpush1.msra.mxu0 0.0
      %1975 = vmatprep.subr.mxu0 0.0
      %1976 = vmatpush1.msra.mxu0 0.0
      %1977 = vmatprep.subr.mxu0 0.0
      %1978 = vmatpush1.msra.mxu0 0.0
      %1979 = vmatprep.subr.mxu0 0.0
      %1980 = vmatpush1.msra.mxu0 0.0
      %1981 = vmatprep.subr.mxu0 0.0
      %1982 = vmatpush1.msra.mxu0 0.0
      %1983 = vmatprep.subr.mxu0 0.0
      %1984 = vmatpush1.msra.mxu0 0.0
      %1985 = vmatprep.mubr.f32.mxu0 0.0
      %v1986 = vand.u32 %v1820, 4294901760
      %1987 = vmatmul.mubr.f32.gmra.mrb[0].mxu0 %v1986
      %v1988 = vpop.f32.mrb[0].mxu0
      %v1989 = vadd.f32 %v1898, %v1988
      %v1990 = vpop.f32.mrb[0].mxu0
      %1991 = vdwg.mxu0
      %1992 = vmatprep.subr.mxu0 0.0
      %v1993 = vand.u32 %v1802, 4294901760
      %v1994 = vsub.f32 %v1802, %v1993
      %1995 = vmatpush1.msra.mxu0 %v1994
      %1996 = vmatprep.subr.mxu0 0.0
      %v1997 = vand.u32 %v1803, 4294901760
      %v1998 = vsub.f32 %v1803, %v1997
      %1999 = vmatpush1.msra.mxu0 %v1998
      %2000 = vmatprep.subr.mxu0 0.0
      %v2001 = vand.u32 %v1804, 4294901760
      %v2002 = vsub.f32 %v1804, %v2001
      %2003 = vmatpush1.msra.mxu0 %v2002
      %2004 = vmatprep.subr.mxu0 0.0
      %v2005 = vand.u32 %v1805, 4294901760
      %v2006 = vsub.f32 %v1805, %v2005
      %2007 = vmatpush1.msra.mxu0 %v2006
      %2008 = vmatprep.subr.mxu0 0.0
      %2009 = vmatpush1.msra.mxu0 0.0
      %2010 = vmatprep.subr.mxu0 0.0
      %2011 = vmatpush1.msra.mxu0 0.0
      %2012 = vmatprep.subr.mxu0 0.0
      %2013 = vmatpush1.msra.mxu0 0.0
      %2014 = vmatprep.subr.mxu0 0.0
      %2015 = vmatpush1.msra.mxu0 0.0
      %2016 = vmatprep.subr.mxu0 0.0
      %2017 = vmatpush1.msra.mxu0 0.0
      %2018 = vmatprep.subr.mxu0 0.0
      %2019 = vmatpush1.msra.mxu0 0.0
      %2020 = vmatprep.subr.mxu0 0.0
      %2021 = vmatpush1.msra.mxu0 0.0
      %2022 = vmatprep.subr.mxu0 0.0
      %2023 = vmatpush1.msra.mxu0 0.0
      %2024 = vmatprep.subr.mxu0 0.0
      %2025 = vmatpush1.msra.mxu0 0.0
      %2026 = vmatprep.subr.mxu0 0.0
      %2027 = vmatpush1.msra.mxu0 0.0
      %2028 = vmatprep.subr.mxu0 0.0
      %2029 = vmatpush1.msra.mxu0 0.0
      %2030 = vmatprep.subr.mxu0 0.0
      %2031 = vmatpush1.msra.mxu0 0.0
      %2032 = vmatprep.subr.mxu0 0.0
      %2033 = vmatpush1.msra.mxu0 0.0
      %2034 = vmatprep.subr.mxu0 0.0
      %2035 = vmatpush1.msra.mxu0 0.0
      %2036 = vmatprep.subr.mxu0 0.0
      %2037 = vmatpush1.msra.mxu0 0.0
      %2038 = vmatprep.subr.mxu0 0.0
      %2039 = vmatpush1.msra.mxu0 0.0
      %2040 = vmatprep.subr.mxu0 0.0
      %2041 = vmatpush1.msra.mxu0 0.0
      %2042 = vmatprep.subr.mxu0 0.0
      %2043 = vmatpush1.msra.mxu0 0.0
      %2044 = vmatprep.subr.mxu0 0.0
      %2045 = vmatpush1.msra.mxu0 0.0
      %2046 = vmatprep.subr.mxu0 0.0
      %2047 = vmatpush1.msra.mxu0 0.0
      %2048 = vmatprep.subr.mxu0 0.0
      %2049 = vmatpush1.msra.mxu0 0.0
      %2050 = vmatprep.subr.mxu0 0.0
      %2051 = vmatpush1.msra.mxu0 0.0
      %2052 = vmatprep.subr.mxu0 0.0
      %2053 = vmatpush1.msra.mxu0 0.0
      %2054 = vmatprep.subr.mxu0 0.0
      %2055 = vmatpush1.msra.mxu0 0.0
      %2056 = vmatprep.subr.mxu0 0.0
      %2057 = vmatpush1.msra.mxu0 0.0
      %2058 = vmatprep.subr.mxu0 0.0
      %2059 = vmatpush1.msra.mxu0 0.0
      %2060 = vmatprep.subr.mxu0 0.0
      %2061 = vmatpush1.msra.mxu0 0.0
      %2062 = vmatprep.subr.mxu0 0.0
      %2063 = vmatpush1.msra.mxu0 0.0
      %2064 = vmatprep.mubr.f32.mxu0 0.0
      %v2065 = vand.u32 %v1820, 4294901760
      %v2066 = vsub.f32 %v1820, %v2065
      %2067 = vmatmul.mubr.f32.gmra.mrb[0].mxu0 %v2066
      %v2068 = vpop.f32.mrb[0].mxu0
      %v2069 = vadd.f32 %v1989, %v2068
      %v2070 = vpop.f32.mrb[0].mxu0
      %2071 = vdwg.mxu0
      %2072 = vmatprep.subr.mxu0 0.0
      %v2073 = vand.u32 %v1802, 4294901760
      %2074 = vmatpush1.msra.mxu0 %v2073
      %2075 = vmatprep.subr.mxu0 0.0
      %v2076 = vand.u32 %v1803, 4294901760
      %2077 = vmatpush1.msra.mxu0 %v2076
      %2078 = vmatprep.subr.mxu0 0.0
      %v2079 = vand.u32 %v1804, 4294901760
      %2080 = vmatpush1.msra.mxu0 %v2079
      %2081 = vmatprep.subr.mxu0 0.0
      %v2082 = vand.u32 %v1805, 4294901760
      %2083 = vmatpush1.msra.mxu0 %v2082
      %2084 = vmatprep.subr.mxu0 0.0
      %2085 = vmatpush1.msra.mxu0 0.0
      %2086 = vmatprep.subr.mxu0 0.0
      %2087 = vmatpush1.msra.mxu0 0.0
      %2088 = vmatprep.subr.mxu0 0.0
      %2089 = vmatpush1.msra.mxu0 0.0
      %2090 = vmatprep.subr.mxu0 0.0
      %2091 = vmatpush1.msra.mxu0 0.0
      %2092 = vmatprep.subr.mxu0 0.0
      %2093 = vmatpush1.msra.mxu0 0.0
      %2094 = vmatprep.subr.mxu0 0.0
      %2095 = vmatpush1.msra.mxu0 0.0
      %2096 = vmatprep.subr.mxu0 0.0
      %2097 = vmatpush1.msra.mxu0 0.0
      %2098 = vmatprep.subr.mxu0 0.0
      %2099 = vmatpush1.msra.mxu0 0.0
      %2100 = vmatprep.subr.mxu0 0.0
      %2101 = vmatpush1.msra.mxu0 0.0
      %2102 = vmatprep.subr.mxu0 0.0
      %2103 = vmatpush1.msra.mxu0 0.0
      %2104 = vmatprep.subr.mxu0 0.0
      %2105 = vmatpush1.msra.mxu0 0.0
      %2106 = vmatprep.subr.mxu0 0.0
      %2107 = vmatpush1.msra.mxu0 0.0
      %2108 = vmatprep.subr.mxu0 0.0
      %2109 = vmatpush1.msra.mxu0 0.0
      %2110 = vmatprep.subr.mxu0 0.0
      %2111 = vmatpush1.msra.mxu0 0.0
      %2112 = vmatprep.subr.mxu0 0.0
      %2113 = vmatpush1.msra.mxu0 0.0
      %2114 = vmatprep.subr.mxu0 0.0
      %2115 = vmatpush1.msra.mxu0 0.0
      %2116 = vmatprep.subr.mxu0 0.0
      %2117 = vmatpush1.msra.mxu0 0.0
      %2118 = vmatprep.subr.mxu0 0.0
      %2119 = vmatpush1.msra.mxu0 0.0
      %2120 = vmatprep.subr.mxu0 0.0
      %2121 = vmatpush1.msra.mxu0 0.0
      %2122 = vmatprep.subr.mxu0 0.0
      %2123 = vmatpush1.msra.mxu0 0.0
      %2124 = vmatprep.subr.mxu0 0.0
      %2125 = vmatpush1.msra.mxu0 0.0
      %2126 = vmatprep.subr.mxu0 0.0
      %2127 = vmatpush1.msra.mxu0 0.0
      %2128 = vmatprep.subr.mxu0 0.0
      %2129 = vmatpush1.msra.mxu0 0.0
      %2130 = vmatprep.subr.mxu0 0.0
      %2131 = vmatpush1.msra.mxu0 0.0
      %2132 = vmatprep.subr.mxu0 0.0
      %2133 = vmatpush1.msra.mxu0 0.0
      %2134 = vmatprep.subr.mxu0 0.0
      %2135 = vmatpush1.msra.mxu0 0.0
      %2136 = vmatprep.subr.mxu0 0.0
      %2137 = vmatpush1.msra.mxu0 0.0
      %2138 = vmatprep.subr.mxu0 0.0
      %2139 = vmatpush1.msra.mxu0 0.0
      %2140 = vmatprep.mubr.f32.mxu0 0.0
      %v2141 = vand.u32 %v1820, 4294901760
      %v2142 = vsub.f32 %v1820, %v2141
      %v2143 = vand.u32 %v2142, 4294901760
      %2144 = vmatmul.mubr.f32.gmra.mrb[0].mxu0 %v2143
      %v2145 = vpop.f32.mrb[0].mxu0
      %v2146 = vadd.f32 %v2069, %v2145
      %v2147 = vpop.f32.mrb[0].mxu0
      %2148 = vdwg.mxu0
      %2149 = vmatprep.subr.mxu0 0.0
      %v2150 = vand.u32 %v1802, 4294901760
      %v2151 = vsub.f32 %v1802, %v2150
      %v2152 = vand.u32 %v2151, 4294901760
      %2153 = vmatpush1.msra.mxu0 %v2152
      %2154 = vmatprep.subr.mxu0 0.0
      %v2155 = vand.u32 %v1803, 4294901760
      %v2156 = vsub.f32 %v1803, %v2155
      %v2157 = vand.u32 %v2156, 4294901760
      %2158 = vmatpush1.msra.mxu0 %v2157
      %2159 = vmatprep.subr.mxu0 0.0
      %v2160 = vand.u32 %v1804, 4294901760
      %v2161 = vsub.f32 %v1804, %v2160
      %v2162 = vand.u32 %v2161, 4294901760
      %2163 = vmatpush1.msra.mxu0 %v2162
      %2164 = vmatprep.subr.mxu0 0.0
      %v2165 = vand.u32 %v1805, 4294901760
      %v2166 = vsub.f32 %v1805, %v2165
      %v2167 = vand.u32 %v2166, 4294901760
      %2168 = vmatpush1.msra.mxu0 %v2167
      %2169 = vmatprep.subr.mxu0 0.0
      %2170 = vmatpush1.msra.mxu0 0.0
      %2171 = vmatprep.subr.mxu0 0.0
      %2172 = vmatpush1.msra.mxu0 0.0
      %2173 = vmatprep.subr.mxu0 0.0
      %2174 = vmatpush1.msra.mxu0 0.0
      %2175 = vmatprep.subr.mxu0 0.0
      %2176 = vmatpush1.msra.mxu0 0.0
      %2177 = vmatprep.subr.mxu0 0.0
      %2178 = vmatpush1.msra.mxu0 0.0
      %2179 = vmatprep.subr.mxu0 0.0
      %2180 = vmatpush1.msra.mxu0 0.0
      %2181 = vmatprep.subr.mxu0 0.0
      %2182 = vmatpush1.msra.mxu0 0.0
      %2183 = vmatprep.subr.mxu0 0.0
      %2184 = vmatpush1.msra.mxu0 0.0
      %2185 = vmatprep.subr.mxu0 0.0
      %2186 = vmatpush1.msra.mxu0 0.0
      %2187 = vmatprep.subr.mxu0 0.0
      %2188 = vmatpush1.msra.mxu0 0.0
      %2189 = vmatprep.subr.mxu0 0.0
      %2190 = vmatpush1.msra.mxu0 0.0
      %2191 = vmatprep.subr.mxu0 0.0
      %2192 = vmatpush1.msra.mxu0 0.0
      %2193 = vmatprep.subr.mxu0 0.0
      %2194 = vmatpush1.msra.mxu0 0.0
      %2195 = vmatprep.subr.mxu0 0.0
      %2196 = vmatpush1.msra.mxu0 0.0
      %2197 = vmatprep.subr.mxu0 0.0
      %2198 = vmatpush1.msra.mxu0 0.0
      %2199 = vmatprep.subr.mxu0 0.0
      %2200 = vmatpush1.msra.mxu0 0.0
      %2201 = vmatprep.subr.mxu0 0.0
      %2202 = vmatpush1.msra.mxu0 0.0
      %2203 = vmatprep.subr.mxu0 0.0
      %2204 = vmatpush1.msra.mxu0 0.0
      %2205 = vmatprep.subr.mxu0 0.0
      %2206 = vmatpush1.msra.mxu0 0.0
      %2207 = vmatprep.subr.mxu0 0.0
      %2208 = vmatpush1.msra.mxu0 0.0
      %2209 = vmatprep.subr.mxu0 0.0
      %2210 = vmatpush1.msra.mxu0 0.0
      %2211 = vmatprep.subr.mxu0 0.0
      %2212 = vmatpush1.msra.mxu0 0.0
      %2213 = vmatprep.subr.mxu0 0.0
      %2214 = vmatpush1.msra.mxu0 0.0
      %2215 = vmatprep.subr.mxu0 0.0
      %2216 = vmatpush1.msra.mxu0 0.0
      %2217 = vmatprep.subr.mxu0 0.0
      %2218 = vmatpush1.msra.mxu0 0.0
      %2219 = vmatprep.subr.mxu0 0.0
      %2220 = vmatpush1.msra.mxu0 0.0
      %2221 = vmatprep.subr.mxu0 0.0
      %2222 = vmatpush1.msra.mxu0 0.0
      %2223 = vmatprep.subr.mxu0 0.0
      %2224 = vmatpush1.msra.mxu0 0.0
      %2225 = vmatprep.mubr.f32.mxu0 0.0
      %v2226 = vand.u32 %v1820, 4294901760
      %2227 = vmatmul.mubr.f32.gmra.mrb[0].mxu0 %v2226
      %v2228 = vpop.f32.mrb[0].mxu0
      %v2229 = vadd.f32 %v2146, %v2228
      %v2230 = vpop.f32.mrb[0].mxu0
      %2231 = vdwg.mxu0
      %2232 = vmatprep.subr.mxu0 0.0
      %v2233 = vand.u32 %v1802, 4294901760
      %2234 = vmatpush1.msra.mxu0 %v2233
      %2235 = vmatprep.subr.mxu0 0.0
      %v2236 = vand.u32 %v1803, 4294901760
      %2237 = vmatpush1.msra.mxu0 %v2236
      %2238 = vmatprep.subr.mxu0 0.0
      %v2239 = vand.u32 %v1804, 4294901760
      %2240 = vmatpush1.msra.mxu0 %v2239
      %2241 = vmatprep.subr.mxu0 0.0
      %v2242 = vand.u32 %v1805, 4294901760
      %2243 = vmatpush1.msra.mxu0 %v2242
      %2244 = vmatprep.subr.mxu0 0.0
      %2245 = vmatpush1.msra.mxu0 0.0
      %2246 = vmatprep.subr.mxu0 0.0
      %2247 = vmatpush1.msra.mxu0 0.0
      %2248 = vmatprep.subr.mxu0 0.0
      %2249 = vmatpush1.msra.mxu0 0.0
      %2250 = vmatprep.subr.mxu0 0.0
      %2251 = vmatpush1.msra.mxu0 0.0
      %2252 = vmatprep.subr.mxu0 0.0
      %2253 = vmatpush1.msra.mxu0 0.0
      %2254 = vmatprep.subr.mxu0 0.0
      %2255 = vmatpush1.msra.mxu0 0.0
      %2256 = vmatprep.subr.mxu0 0.0
      %2257 = vmatpush1.msra.mxu0 0.0
      %2258 = vmatprep.subr.mxu0 0.0
      %2259 = vmatpush1.msra.mxu0 0.0
      %2260 = vmatprep.subr.mxu0 0.0
      %2261 = vmatpush1.msra.mxu0 0.0
      %2262 = vmatprep.subr.mxu0 0.0
      %2263 = vmatpush1.msra.mxu0 0.0
      %2264 = vmatprep.subr.mxu0 0.0
      %2265 = vmatpush1.msra.mxu0 0.0
      %2266 = vmatprep.subr.mxu0 0.0
      %2267 = vmatpush1.msra.mxu0 0.0
      %2268 = vmatprep.subr.mxu0 0.0
      %2269 = vmatpush1.msra.mxu0 0.0
      %2270 = vmatprep.subr.mxu0 0.0
      %2271 = vmatpush1.msra.mxu0 0.0
      %2272 = vmatprep.subr.mxu0 0.0
      %2273 = vmatpush1.msra.mxu0 0.0
      %2274 = vmatprep.subr.mxu0 0.0
      %2275 = vmatpush1.msra.mxu0 0.0
      %2276 = vmatprep.subr.mxu0 0.0
      %2277 = vmatpush1.msra.mxu0 0.0
      %2278 = vmatprep.subr.mxu0 0.0
      %2279 = vmatpush1.msra.mxu0 0.0
      %2280 = vmatprep.subr.mxu0 0.0
      %2281 = vmatpush1.msra.mxu0 0.0
      %2282 = vmatprep.subr.mxu0 0.0
      %2283 = vmatpush1.msra.mxu0 0.0
      %2284 = vmatprep.subr.mxu0 0.0
      %2285 = vmatpush1.msra.mxu0 0.0
      %2286 = vmatprep.subr.mxu0 0.0
      %2287 = vmatpush1.msra.mxu0 0.0
      %2288 = vmatprep.subr.mxu0 0.0
      %2289 = vmatpush1.msra.mxu0 0.0
      %2290 = vmatprep.subr.mxu0 0.0
      %2291 = vmatpush1.msra.mxu0 0.0
      %2292 = vmatprep.subr.mxu0 0.0
      %2293 = vmatpush1.msra.mxu0 0.0
      %2294 = vmatprep.subr.mxu0 0.0
      %2295 = vmatpush1.msra.mxu0 0.0
      %2296 = vmatprep.subr.mxu0 0.0
      %2297 = vmatpush1.msra.mxu0 0.0
      %2298 = vmatprep.subr.mxu0 0.0
      %2299 = vmatpush1.msra.mxu0 0.0
      %2300 = vmatprep.mubr.f32.mxu0 0.0
      %v2301 = vand.u32 %v1820, 4294901760
      %2302 = vmatmul.mubr.f32.gmra.mrb[0].mxu0 %v2301
      %v2303 = vpop.f32.mrb[0].mxu0
      %v2304 = vadd.f32 %v2229, %v2303
      %v2305 = vpop.f32.mrb[0].mxu0
      %2306 = vdwg.mxu0
      %2308 = vrot.lane.b32.xlu0 %v1292, 64
      %v2309 = vpop.permute.xlu0 %2308
      %2312 = vrot.lane.b32.xlu0 %v2304, 64
      %v2313 = vpop.permute.xlu0 %2312
      %vm2315 = vcmask 523264
      %v2316 = vsel %vm2315, %v786, %v2309
      %v2317 = vsel %vm2315, %v1798, %v2313
      %v2320 = vcombine.low %v2316, %v2317
      %v2321 = vcombine.high %v2316, %v2317
      %v2323 = vunpack.c.l.s4 1966171168
      %v2324 = vunpack.c.0.s8 %v2323
      %v2325 = vlaneseq
      %v2326 = vshrl.u32 %v2325, 7
      %v2327 = vsub.s32 %v2324, %v2326
      %v2328 = vrot.slane %v2320, %v2327
      %v2330 = vunpack.c.l.s4 1966171168
      %v2331 = vunpack.c.0.s8 %v2330
      %v2332 = vlaneseq
      %v2333 = vshrl.u32 %v2332, 7
      %v2334 = vsub.s32 %v2331, %v2333
      %v2335 = vrot.slane %v2321, %v2334
      %v2336 = vcombine.high %v2328, %v2328
      %v2337 = vcombine.high %v2335, %v2335
      %v2339 = vunpack.c.l.s4 1966171168
      %v2340 = vunpack.c.0.s8 %v2339
      %v2341 = vlaneseq
      %v2342 = vshrl.u32 %v2341, 7
      %v2343 = vsub.s32 %v2340, %v2342
      %v2344 = vrot.slane %v2328, %v2343
      %v2346 = vunpack.c.l.s4 1966171168
      %v2347 = vunpack.c.0.s8 %v2346
      %v2348 = vlaneseq
      %v2349 = vshrl.u32 %v2348, 7
      %v2350 = vsub.s32 %v2347, %v2349
      %v2351 = vrot.slane %v2335, %v2350
      %v2353 = vunpack.c.l.s4 1966171168
      %v2354 = vunpack.c.0.s8 %v2353
      %v2355 = vlaneseq
      %v2356 = vshrl.u32 %v2355, 7
      %v2357 = vsub.s32 %v2354, %v2356
      %v2358 = vrot.slane %v2336, %v2357
      %v2360 = vunpack.c.l.s4 1966171168
      %v2361 = vunpack.c.0.s8 %v2360
      %v2362 = vlaneseq
      %v2363 = vshrl.u32 %v2362, 7
      %v2364 = vsub.s32 %v2361, %v2363
      %v2365 = vrot.slane %v2337, %v2364
      %v2366 = vcombine.high %v2344, %v2344
      %v2367 = vcombine.high %v2351, %v2351
      %v2368 = vcombine.high %v2358, %v2358
      %v2369 = vcombine.high %v2365, %v2365
      %v2370 = vlaneseq
      %v2371 = vshrl.u32 %v2370, 7
      %v2372 = vsub.s32 0, %v2371
      %v2373 = vrot.slane %v2344, %v2372
      %v2374 = vlaneseq
      %v2375 = vshrl.u32 %v2374, 7
      %v2376 = vsub.s32 1, %v2375
      %v2377 = vrot.slane %v2344, %v2376
      %v2378 = vlaneseq
      %v2379 = vshrl.u32 %v2378, 7
      %v2380 = vsub.s32 0, %v2379
      %v2381 = vrot.slane %v2358, %v2380
      %v2382 = vlaneseq
      %v2383 = vshrl.u32 %v2382, 7
      %v2384 = vsub.s32 1, %v2383
      %v2385 = vrot.slane %v2358, %v2384
      %v2386 = vlaneseq
      %v2387 = vshrl.u32 %v2386, 7
      %v2388 = vsub.s32 0, %v2387
      %v2389 = vrot.slane %v2366, %v2388
      %v2390 = vlaneseq
      %v2391 = vshrl.u32 %v2390, 7
      %v2392 = vsub.s32 1, %v2391
      %v2393 = vrot.slane %v2366, %v2392
      %v2394 = vlaneseq
      %v2395 = vshrl.u32 %v2394, 7
      %v2396 = vsub.s32 0, %v2395
      %v2397 = vrot.slane %v2368, %v2396
      %v2398 = vlaneseq
      %v2399 = vshrl.u32 %v2398, 7
      %v2400 = vsub.s32 1, %v2399
      %v2401 = vrot.slane %v2368, %v2400
      %v2402 = vlaneseq
      %v2403 = vshrl.u32 %v2402, 7
      %v2404 = vsub.s32 0, %v2403
      %v2405 = vrot.slane %v2351, %v2404
      %v2406 = vlaneseq
      %v2407 = vshrl.u32 %v2406, 7
      %v2408 = vsub.s32 1, %v2407
      %v2409 = vrot.slane %v2351, %v2408
      %v2410 = vlaneseq
      %v2411 = vshrl.u32 %v2410, 7
      %v2412 = vsub.s32 0, %v2411
      %v2413 = vrot.slane %v2365, %v2412
      %v2414 = vlaneseq
      %v2415 = vshrl.u32 %v2414, 7
      %v2416 = vsub.s32 1, %v2415
      %v2417 = vrot.slane %v2365, %v2416
      %v2418 = vlaneseq
      %v2419 = vshrl.u32 %v2418, 7
      %v2420 = vsub.s32 0, %v2419
      %v2421 = vrot.slane %v2367, %v2420
      %v2422 = vlaneseq
      %v2423 = vshrl.u32 %v2422, 7
      %v2424 = vsub.s32 1, %v2423
      %v2425 = vrot.slane %v2367, %v2424
      %v2426 = vlaneseq
      %v2427 = vshrl.u32 %v2426, 7
      %v2428 = vsub.s32 0, %v2427
      %v2429 = vrot.slane %v2369, %v2428
      %v2430 = vlaneseq
      %v2431 = vshrl.u32 %v2430, 7
      %v2432 = vsub.s32 1, %v2431
      %v2433 = vrot.slane %v2369, %v2432
      %v2434 = vcombine.low %v2373, %v2377
      %v2435 = vcombine.low %v2381, %v2385
      %v2436 = vcombine.low %v2389, %v2393
      %v2437 = vcombine.low %v2397, %v2401
      %v2438 = vcombine.low %v2405, %v2409
      %v2439 = vcombine.low %v2413, %v2417
      %v2440 = vcombine.low %v2421, %v2425
      %v2441 = vcombine.low %v2429, %v2433
      %v2442 = vcombine.low %v252, %v253
      %v2443 = vcombine.low %v254, %v255
      %v2444 = vcombine.low %v256, %v257
      %v2445 = vcombine.low %v258, %v259
      %v2446 = vcombine.low %v2434, %v2435
      %v2447 = vcombine.high %v2434, %v2435
      %v2448 = vcombine.low %v2436, %v2437
      %v2449 = vcombine.high %v2436, %v2437
      %v2450 = vcombine.low %v2438, %v2439
      %v2451 = vcombine.high %v2438, %v2439
      %v2452 = vcombine.low %v2440, %v2441
      %v2453 = vcombine.high %v2440, %v2441
      %v2462 = vsel %vm301, %v2442, 0
      %v2464 = vsel %vm301, %v2443, 0
      %v2466 = vsel %vm301, %v2444, 0
      %v2468 = vsel %vm301, %v2445, 0
      %v2470 = vand.u32 %v261, 4294901760
      %2471 = vmatprep.subr.mxu0 %v2470
      %v2472 = vand.u32 %v260, 4294901760
      %2473 = vmatpush1.msra.mxu0 %v2472
      %v2474 = vand.u32 %v263, 4294901760
      %2475 = vmatprep.subr.mxu0 %v2474
      %v2476 = vand.u32 %v262, 4294901760
      %2477 = vmatpush1.msra.mxu0 %v2476
      %v2478 = vand.u32 %v265, 4294901760
      %2479 = vmatprep.subr.mxu0 %v2478
      %v2480 = vand.u32 %v264, 4294901760
      %2481 = vmatpush1.msra.mxu0 %v2480
      %v2482 = vand.u32 %v267, 4294901760
      %2483 = vmatprep.subr.mxu0 %v2482
      %v2484 = vand.u32 %v266, 4294901760
      %2485 = vmatpush1.msra.mxu0 %v2484
      %2486 = vmatprep.subr.mxu0 0.0
      %2487 = vmatpush1.msra.mxu0 0.0
      %2488 = vmatprep.subr.mxu0 0.0
      %2489 = vmatpush1.msra.mxu0 0.0
      %2490 = vmatprep.subr.mxu0 0.0
      %2491 = vmatpush1.msra.mxu0 0.0
      %2492 = vmatprep.subr.mxu0 0.0
      %2493 = vmatpush1.msra.mxu0 0.0
      %2494 = vmatprep.subr.mxu0 0.0
      %2495 = vmatpush1.msra.mxu0 0.0
      %2496 = vmatprep.subr.mxu0 0.0
      %2497 = vmatpush1.msra.mxu0 0.0
      %2498 = vmatprep.subr.mxu0 0.0
      %2499 = vmatpush1.msra.mxu0 0.0
      %2500 = vmatprep.subr.mxu0 0.0
      %2501 = vmatpush1.msra.mxu0 0.0
      %2502 = vmatprep.subr.mxu0 0.0
      %2503 = vmatpush1.msra.mxu0 0.0
      %2504 = vmatprep.subr.mxu0 0.0
      %2505 = vmatpush1.msra.mxu0 0.0
      %2506 = vmatprep.subr.mxu0 0.0
      %2507 = vmatpush1.msra.mxu0 0.0
      %2508 = vmatprep.subr.mxu0 0.0
      %2509 = vmatpush1.msra.mxu0 0.0
      %2510 = vmatprep.subr.mxu0 0.0
      %2511 = vmatpush1.msra.mxu0 0.0
      %2512 = vmatprep.subr.mxu0 0.0
      %2513 = vmatpush1.msra.mxu0 0.0
      %2514 = vmatprep.subr.mxu0 0.0
      %2515 = vmatpush1.msra.mxu0 0.0
      %2516 = vmatprep.subr.mxu0 0.0
      %2517 = vmatpush1.msra.mxu0 0.0
      %2518 = vmatprep.subr.mxu0 0.0
      %2519 = vmatpush1.msra.mxu0 0.0
      %2520 = vmatprep.subr.mxu0 0.0
      %2521 = vmatpush1.msra.mxu0 0.0
      %2522 = vmatprep.subr.mxu0 0.0
      %2523 = vmatpush1.msra.mxu0 0.0
      %2524 = vmatprep.subr.mxu0 0.0
      %2525 = vmatpush1.msra.mxu0 0.0
      %2526 = vmatprep.subr.mxu0 0.0
      %2527 = vmatpush1.msra.mxu0 0.0
      %2528 = vmatprep.subr.mxu0 0.0
      %2529 = vmatpush1.msra.mxu0 0.0
      %2530 = vmatprep.subr.mxu0 0.0
      %2531 = vmatpush1.msra.mxu0 0.0
      %2532 = vmatprep.subr.mxu0 0.0
      %2533 = vmatpush1.msra.mxu0 0.0
      %2534 = vmatprep.subr.mxu0 0.0
      %2535 = vmatpush1.msra.mxu0 0.0
      %2536 = vmatprep.subr.mxu0 0.0
      %2537 = vmatpush1.msra.mxu0 0.0
      %2538 = vmatprep.subr.mxu0 0.0
      %2539 = vmatpush1.msra.mxu0 0.0
      %2540 = vmatprep.subr.mxu0 0.0
      %2541 = vmatpush1.msra.mxu0 0.0
      %2542 = vmatprep.mubr.f32.mxu0 0.0
      %v2543 = vand.u32 %v2462, 4294901760
      %v2544 = vsub.f32 %v2462, %v2543
      %v2545 = vand.u32 %v2544, 4294901760
      %v2546 = vsub.f32 %v2544, %v2545
      %v2547 = vand.u32 %v2546, 4294901760
      %2548 = vmatmul.mubr.f32.gmra.mrb[0].mxu0 %v2547
      %v2549 = vpop.f32.mrb[0].mxu0
      %v2550 = vadd.f32 %v2446, %v2549
      %v2551 = vpop.f32.mrb[0].mxu0
      %v2552 = vadd.f32 %v2447, %v2551
      %2553 = vmatprep.mubr.f32.mxu0 0.0
      %v2554 = vand.u32 %v2464, 4294901760
      %v2555 = vsub.f32 %v2464, %v2554
      %v2556 = vand.u32 %v2555, 4294901760
      %v2557 = vsub.f32 %v2555, %v2556
      %v2558 = vand.u32 %v2557, 4294901760
      %2559 = vmatmul.mubr.f32.gmra.mrb[0].mxu0 %v2558
      %v2560 = vpop.f32.mrb[0].mxu0
      %v2561 = vadd.f32 %v2448, %v2560
      %v2562 = vpop.f32.mrb[0].mxu0
      %v2563 = vadd.f32 %v2449, %v2562
      %2564 = vmatprep.mubr.f32.mxu0 0.0
      %v2565 = vand.u32 %v2466, 4294901760
      %v2566 = vsub.f32 %v2466, %v2565
      %v2567 = vand.u32 %v2566, 4294901760
      %v2568 = vsub.f32 %v2566, %v2567
      %v2569 = vand.u32 %v2568, 4294901760
      %2570 = vmatmul.mubr.f32.gmra.mrb[0].mxu0 %v2569
      %v2571 = vpop.f32.mrb[0].mxu0
      %v2572 = vadd.f32 %v2450, %v2571
      %v2573 = vpop.f32.mrb[0].mxu0
      %v2574 = vadd.f32 %v2451, %v2573
      %2575 = vmatprep.mubr.f32.mxu0 0.0
      %v2576 = vand.u32 %v2468, 4294901760
      %v2577 = vsub.f32 %v2468, %v2576
      %v2578 = vand.u32 %v2577, 4294901760
      %v2579 = vsub.f32 %v2577, %v2578
      %v2580 = vand.u32 %v2579, 4294901760
      %2581 = vmatmul.mubr.f32.gmra.mrb[0].mxu0 %v2580
      %v2582 = vpop.f32.mrb[0].mxu0
      %v2583 = vadd.f32 %v2452, %v2582
      %v2584 = vpop.f32.mrb[0].mxu0
      %v2585 = vadd.f32 %v2453, %v2584
      %2586 = vdwg.mxu0
      %v2587 = vand.u32 %v261, 4294901760
      %v2588 = vsub.f32 %v261, %v2587
      %v2589 = vand.u32 %v2588, 4294901760
      %v2590 = vsub.f32 %v2588, %v2589
      %v2591 = vand.u32 %v2590, 4294901760
      %2592 = vmatprep.subr.mxu0 %v2591
      %v2593 = vand.u32 %v260, 4294901760
      %v2594 = vsub.f32 %v260, %v2593
      %v2595 = vand.u32 %v2594, 4294901760
      %v2596 = vsub.f32 %v2594, %v2595
      %v2597 = vand.u32 %v2596, 4294901760
      %2598 = vmatpush1.msra.mxu0 %v2597
      %v2599 = vand.u32 %v263, 4294901760
      %v2600 = vsub.f32 %v263, %v2599
      %v2601 = vand.u32 %v2600, 4294901760
      %v2602 = vsub.f32 %v2600, %v2601
      %v2603 = vand.u32 %v2602, 4294901760
      %2604 = vmatprep.subr.mxu0 %v2603
      %v2605 = vand.u32 %v262, 4294901760
      %v2606 = vsub.f32 %v262, %v2605
      %v2607 = vand.u32 %v2606, 4294901760
      %v2608 = vsub.f32 %v2606, %v2607
      %v2609 = vand.u32 %v2608, 4294901760
      %2610 = vmatpush1.msra.mxu0 %v2609
      %v2611 = vand.u32 %v265, 4294901760
      %v2612 = vsub.f32 %v265, %v2611
      %v2613 = vand.u32 %v2612, 4294901760
      %v2614 = vsub.f32 %v2612, %v2613
      %v2615 = vand.u32 %v2614, 4294901760
      %2616 = vmatprep.subr.mxu0 %v2615
      %v2617 = vand.u32 %v264, 4294901760
      %v2618 = vsub.f32 %v264, %v2617
      %v2619 = vand.u32 %v2618, 4294901760
      %v2620 = vsub.f32 %v2618, %v2619
      %v2621 = vand.u32 %v2620, 4294901760
      %2622 = vmatpush1.msra.mxu0 %v2621
      %v2623 = vand.u32 %v267, 4294901760
      %v2624 = vsub.f32 %v267, %v2623
      %v2625 = vand.u32 %v2624, 4294901760
      %v2626 = vsub.f32 %v2624, %v2625
      %v2627 = vand.u32 %v2626, 4294901760
      %2628 = vmatprep.subr.mxu0 %v2627
      %v2629 = vand.u32 %v266, 4294901760
      %v2630 = vsub.f32 %v266, %v2629
      %v2631 = vand.u32 %v2630, 4294901760
      %v2632 = vsub.f32 %v2630, %v2631
      %v2633 = vand.u32 %v2632, 4294901760
      %2634 = vmatpush1.msra.mxu0 %v2633
      %2635 = vmatprep.subr.mxu0 0.0
      %2636 = vmatpush1.msra.mxu0 0.0
      %2637 = vmatprep.subr.mxu0 0.0
      %2638 = vmatpush1.msra.mxu0 0.0
      %2639 = vmatprep.subr.mxu0 0.0
      %2640 = vmatpush1.msra.mxu0 0.0
      %2641 = vmatprep.subr.mxu0 0.0
      %2642 = vmatpush1.msra.mxu0 0.0
      %2643 = vmatprep.subr.mxu0 0.0
      %2644 = vmatpush1.msra.mxu0 0.0
      %2645 = vmatprep.subr.mxu0 0.0
      %2646 = vmatpush1.msra.mxu0 0.0
      %2647 = vmatprep.subr.mxu0 0.0
      %2648 = vmatpush1.msra.mxu0 0.0
      %2649 = vmatprep.subr.mxu0 0.0
      %2650 = vmatpush1.msra.mxu0 0.0
      %2651 = vmatprep.subr.mxu0 0.0
      %2652 = vmatpush1.msra.mxu0 0.0
      %2653 = vmatprep.subr.mxu0 0.0
      %2654 = vmatpush1.msra.mxu0 0.0
      %2655 = vmatprep.subr.mxu0 0.0
      %2656 = vmatpush1.msra.mxu0 0.0
      %2657 = vmatprep.subr.mxu0 0.0
      %2658 = vmatpush1.msra.mxu0 0.0
      %2659 = vmatprep.subr.mxu0 0.0
      %2660 = vmatpush1.msra.mxu0 0.0
      %2661 = vmatprep.subr.mxu0 0.0
      %2662 = vmatpush1.msra.mxu0 0.0
      %2663 = vmatprep.subr.mxu0 0.0
      %2664 = vmatpush1.msra.mxu0 0.0
      %2665 = vmatprep.subr.mxu0 0.0
      %2666 = vmatpush1.msra.mxu0 0.0
      %2667 = vmatprep.subr.mxu0 0.0
      %2668 = vmatpush1.msra.mxu0 0.0
      %2669 = vmatprep.subr.mxu0 0.0
      %2670 = vmatpush1.msra.mxu0 0.0
      %2671 = vmatprep.subr.mxu0 0.0
      %2672 = vmatpush1.msra.mxu0 0.0
      %2673 = vmatprep.subr.mxu0 0.0
      %2674 = vmatpush1.msra.mxu0 0.0
      %2675 = vmatprep.subr.mxu0 0.0
      %2676 = vmatpush1.msra.mxu0 0.0
      %2677 = vmatprep.subr.mxu0 0.0
      %2678 = vmatpush1.msra.mxu0 0.0
      %2679 = vmatprep.subr.mxu0 0.0
      %2680 = vmatpush1.msra.mxu0 0.0
      %2681 = vmatprep.subr.mxu0 0.0
      %2682 = vmatpush1.msra.mxu0 0.0
      %2683 = vmatprep.subr.mxu0 0.0
      %2684 = vmatpush1.msra.mxu0 0.0
      %2685 = vmatprep.subr.mxu0 0.0
      %2686 = vmatpush1.msra.mxu0 0.0
      %2687 = vmatprep.subr.mxu0 0.0
      %2688 = vmatpush1.msra.mxu0 0.0
      %2689 = vmatprep.subr.mxu0 0.0
      %2690 = vmatpush1.msra.mxu0 0.0
      %2691 = vmatprep.mubr.f32.mxu0 0.0
      %v2692 = vand.u32 %v2462, 4294901760
      %2693 = vmatmul.mubr.f32.gmra.mrb[0].mxu0 %v2692
      %v2694 = vpop.f32.mrb[0].mxu0
      %v2695 = vadd.f32 %v2550, %v2694
      %v2696 = vpop.f32.mrb[0].mxu0
      %v2697 = vadd.f32 %v2552, %v2696
      %2698 = vmatprep.mubr.f32.mxu0 0.0
      %v2699 = vand.u32 %v2464, 4294901760
      %2700 = vmatmul.mubr.f32.gmra.mrb[0].mxu0 %v2699
      %v2701 = vpop.f32.mrb[0].mxu0
      %v2702 = vadd.f32 %v2561, %v2701
      %v2703 = vpop.f32.mrb[0].mxu0
      %v2704 = vadd.f32 %v2563, %v2703
      %2705 = vmatprep.mubr.f32.mxu0 0.0
      %v2706 = vand.u32 %v2466, 4294901760
      %2707 = vmatmul.mubr.f32.gmra.mrb[0].mxu0 %v2706
      %v2708 = vpop.f32.mrb[0].mxu0
      %v2709 = vadd.f32 %v2572, %v2708
      %v2710 = vpop.f32.mrb[0].mxu0
      %v2711 = vadd.f32 %v2574, %v2710
      %2712 = vmatprep.mubr.f32.mxu0 0.0
      %v2713 = vand.u32 %v2468, 4294901760
      %2714 = vmatmul.mubr.f32.gmra.mrb[0].mxu0 %v2713
      %v2715 = vpop.f32.mrb[0].mxu0
      %v2716 = vadd.f32 %v2583, %v2715
      %v2717 = vpop.f32.mrb[0].mxu0
      %v2718 = vadd.f32 %v2585, %v2717
      %2719 = vdwg.mxu0
      %v2720 = vand.u32 %v261, 4294901760
      %v2721 = vsub.f32 %v261, %v2720
      %2722 = vmatprep.subr.mxu0 %v2721
      %v2723 = vand.u32 %v260, 4294901760
      %v2724 = vsub.f32 %v260, %v2723
      %2725 = vmatpush1.msra.mxu0 %v2724
      %v2726 = vand.u32 %v263, 4294901760
      %v2727 = vsub.f32 %v263, %v2726
      %2728 = vmatprep.subr.mxu0 %v2727
      %v2729 = vand.u32 %v262, 4294901760
      %v2730 = vsub.f32 %v262, %v2729
      %2731 = vmatpush1.msra.mxu0 %v2730
      %v2732 = vand.u32 %v265, 4294901760
      %v2733 = vsub.f32 %v265, %v2732
      %2734 = vmatprep.subr.mxu0 %v2733
      %v2735 = vand.u32 %v264, 4294901760
      %v2736 = vsub.f32 %v264, %v2735
      %2737 = vmatpush1.msra.mxu0 %v2736
      %v2738 = vand.u32 %v267, 4294901760
      %v2739 = vsub.f32 %v267, %v2738
      %2740 = vmatprep.subr.mxu0 %v2739
      %v2741 = vand.u32 %v266, 4294901760
      %v2742 = vsub.f32 %v266, %v2741
      %2743 = vmatpush1.msra.mxu0 %v2742
      %2744 = vmatprep.subr.mxu0 0.0
      %2745 = vmatpush1.msra.mxu0 0.0
      %2746 = vmatprep.subr.mxu0 0.0
      %2747 = vmatpush1.msra.mxu0 0.0
      %2748 = vmatprep.subr.mxu0 0.0
      %2749 = vmatpush1.msra.mxu0 0.0
      %2750 = vmatprep.subr.mxu0 0.0
      %2751 = vmatpush1.msra.mxu0 0.0
      %2752 = vmatprep.subr.mxu0 0.0
      %2753 = vmatpush1.msra.mxu0 0.0
      %2754 = vmatprep.subr.mxu0 0.0
      %2755 = vmatpush1.msra.mxu0 0.0
      %2756 = vmatprep.subr.mxu0 0.0
      %2757 = vmatpush1.msra.mxu0 0.0
      %2758 = vmatprep.subr.mxu0 0.0
      %2759 = vmatpush1.msra.mxu0 0.0
      %2760 = vmatprep.subr.mxu0 0.0
      %2761 = vmatpush1.msra.mxu0 0.0
      %2762 = vmatprep.subr.mxu0 0.0
      %2763 = vmatpush1.msra.mxu0 0.0
      %2764 = vmatprep.subr.mxu0 0.0
      %2765 = vmatpush1.msra.mxu0 0.0
      %2766 = vmatprep.subr.mxu0 0.0
      %2767 = vmatpush1.msra.mxu0 0.0
      %2768 = vmatprep.subr.mxu0 0.0
      %2769 = vmatpush1.msra.mxu0 0.0
      %2770 = vmatprep.subr.mxu0 0.0
      %2771 = vmatpush1.msra.mxu0 0.0
      %2772 = vmatprep.subr.mxu0 0.0
      %2773 = vmatpush1.msra.mxu0 0.0
      %2774 = vmatprep.subr.mxu0 0.0
      %2775 = vmatpush1.msra.mxu0 0.0
      %2776 = vmatprep.subr.mxu0 0.0
      %2777 = vmatpush1.msra.mxu0 0.0
      %2778 = vmatprep.subr.mxu0 0.0
      %2779 = vmatpush1.msra.mxu0 0.0
      %2780 = vmatprep.subr.mxu0 0.0
      %2781 = vmatpush1.msra.mxu0 0.0
      %2782 = vmatprep.subr.mxu0 0.0
      %2783 = vmatpush1.msra.mxu0 0.0
      %2784 = vmatprep.subr.mxu0 0.0
      %2785 = vmatpush1.msra.mxu0 0.0
      %2786 = vmatprep.subr.mxu0 0.0
      %2787 = vmatpush1.msra.mxu0 0.0
      %2788 = vmatprep.subr.mxu0 0.0
      %2789 = vmatpush1.msra.mxu0 0.0
      %2790 = vmatprep.subr.mxu0 0.0
      %2791 = vmatpush1.msra.mxu0 0.0
      %2792 = vmatprep.subr.mxu0 0.0
      %2793 = vmatpush1.msra.mxu0 0.0
      %2794 = vmatprep.subr.mxu0 0.0
      %2795 = vmatpush1.msra.mxu0 0.0
      %2796 = vmatprep.subr.mxu0 0.0
      %2797 = vmatpush1.msra.mxu0 0.0
      %2798 = vmatprep.subr.mxu0 0.0
      %2799 = vmatpush1.msra.mxu0 0.0
      %2800 = vmatprep.mubr.f32.mxu0 0.0
      %v2801 = vand.u32 %v2462, 4294901760
      %v2802 = vsub.f32 %v2462, %v2801
      %2803 = vmatmul.mubr.f32.gmra.mrb[0].mxu0 %v2802
      %v2804 = vpop.f32.mrb[0].mxu0
      %v2805 = vadd.f32 %v2695, %v2804
      %v2806 = vpop.f32.mrb[0].mxu0
      %v2807 = vadd.f32 %v2697, %v2806
      %2808 = vmatprep.mubr.f32.mxu0 0.0
      %v2809 = vand.u32 %v2464, 4294901760
      %v2810 = vsub.f32 %v2464, %v2809
      %2811 = vmatmul.mubr.f32.gmra.mrb[0].mxu0 %v2810
      %v2812 = vpop.f32.mrb[0].mxu0
      %v2813 = vadd.f32 %v2702, %v2812
      %v2814 = vpop.f32.mrb[0].mxu0
      %v2815 = vadd.f32 %v2704, %v2814
      %2816 = vmatprep.mubr.f32.mxu0 0.0
      %v2817 = vand.u32 %v2466, 4294901760
      %v2818 = vsub.f32 %v2466, %v2817
      %2819 = vmatmul.mubr.f32.gmra.mrb[0].mxu0 %v2818
      %v2820 = vpop.f32.mrb[0].mxu0
      %v2821 = vadd.f32 %v2709, %v2820
      %v2822 = vpop.f32.mrb[0].mxu0
      %v2823 = vadd.f32 %v2711, %v2822
      %2824 = vmatprep.mubr.f32.mxu0 0.0
      %v2825 = vand.u32 %v2468, 4294901760
      %v2826 = vsub.f32 %v2468, %v2825
      %2827 = vmatmul.mubr.f32.gmra.mrb[0].mxu0 %v2826
      %v2828 = vpop.f32.mrb[0].mxu0
      %v2829 = vadd.f32 %v2716, %v2828
      %v2830 = vpop.f32.mrb[0].mxu0
      %v2831 = vadd.f32 %v2718, %v2830
      %2832 = vdwg.mxu0
      %v2833 = vand.u32 %v261, 4294901760
      %2834 = vmatprep.subr.mxu0 %v2833
      %v2835 = vand.u32 %v260, 4294901760
      %2836 = vmatpush1.msra.mxu0 %v2835
      %v2837 = vand.u32 %v263, 4294901760
      %2838 = vmatprep.subr.mxu0 %v2837
      %v2839 = vand.u32 %v262, 4294901760
      %2840 = vmatpush1.msra.mxu0 %v2839
      %v2841 = vand.u32 %v265, 4294901760
      %2842 = vmatprep.subr.mxu0 %v2841
      %v2843 = vand.u32 %v264, 4294901760
      %2844 = vmatpush1.msra.mxu0 %v2843
      %v2845 = vand.u32 %v267, 4294901760
      %2846 = vmatprep.subr.mxu0 %v2845
      %v2847 = vand.u32 %v266, 4294901760
      %2848 = vmatpush1.msra.mxu0 %v2847
      %2849 = vmatprep.subr.mxu0 0.0
      %2850 = vmatpush1.msra.mxu0 0.0
      %2851 = vmatprep.subr.mxu0 0.0
      %2852 = vmatpush1.msra.mxu0 0.0
      %2853 = vmatprep.subr.mxu0 0.0
      %2854 = vmatpush1.msra.mxu0 0.0
      %2855 = vmatprep.subr.mxu0 0.0
      %2856 = vmatpush1.msra.mxu0 0.0
      %2857 = vmatprep.subr.mxu0 0.0
      %2858 = vmatpush1.msra.mxu0 0.0
      %2859 = vmatprep.subr.mxu0 0.0
      %2860 = vmatpush1.msra.mxu0 0.0
      %2861 = vmatprep.subr.mxu0 0.0
      %2862 = vmatpush1.msra.mxu0 0.0
      %2863 = vmatprep.subr.mxu0 0.0
      %2864 = vmatpush1.msra.mxu0 0.0
      %2865 = vmatprep.subr.mxu0 0.0
      %2866 = vmatpush1.msra.mxu0 0.0
      %2867 = vmatprep.subr.mxu0 0.0
      %2868 = vmatpush1.msra.mxu0 0.0
      %2869 = vmatprep.subr.mxu0 0.0
      %2870 = vmatpush1.msra.mxu0 0.0
      %2871 = vmatprep.subr.mxu0 0.0
      %2872 = vmatpush1.msra.mxu0 0.0
      %2873 = vmatprep.subr.mxu0 0.0
      %2874 = vmatpush1.msra.mxu0 0.0
      %2875 = vmatprep.subr.mxu0 0.0
      %2876 = vmatpush1.msra.mxu0 0.0
      %2877 = vmatprep.subr.mxu0 0.0
      %2878 = vmatpush1.msra.mxu0 0.0
      %2879 = vmatprep.subr.mxu0 0.0
      %2880 = vmatpush1.msra.mxu0 0.0
      %2881 = vmatprep.subr.mxu0 0.0
      %2882 = vmatpush1.msra.mxu0 0.0
      %2883 = vmatprep.subr.mxu0 0.0
      %2884 = vmatpush1.msra.mxu0 0.0
      %2885 = vmatprep.subr.mxu0 0.0
      %2886 = vmatpush1.msra.mxu0 0.0
      %2887 = vmatprep.subr.mxu0 0.0
      %2888 = vmatpush1.msra.mxu0 0.0
      %2889 = vmatprep.subr.mxu0 0.0
      %2890 = vmatpush1.msra.mxu0 0.0
      %2891 = vmatprep.subr.mxu0 0.0
      %2892 = vmatpush1.msra.mxu0 0.0
      %2893 = vmatprep.subr.mxu0 0.0
      %2894 = vmatpush1.msra.mxu0 0.0
      %2895 = vmatprep.subr.mxu0 0.0
      %2896 = vmatpush1.msra.mxu0 0.0
      %2897 = vmatprep.subr.mxu0 0.0
      %2898 = vmatpush1.msra.mxu0 0.0
      %2899 = vmatprep.subr.mxu0 0.0
      %2900 = vmatpush1.msra.mxu0 0.0
      %2901 = vmatprep.subr.mxu0 0.0
      %2902 = vmatpush1.msra.mxu0 0.0
      %2903 = vmatprep.subr.mxu0 0.0
      %2904 = vmatpush1.msra.mxu0 0.0
      %2905 = vmatprep.mubr.f32.mxu0 0.0
      %v2906 = vand.u32 %v2462, 4294901760
      %v2907 = vsub.f32 %v2462, %v2906
      %v2908 = vand.u32 %v2907, 4294901760
      %2909 = vmatmul.mubr.f32.gmra.mrb[0].mxu0 %v2908
      %v2910 = vpop.f32.mrb[0].mxu0
      %v2911 = vadd.f32 %v2805, %v2910
      %v2912 = vpop.f32.mrb[0].mxu0
      %v2913 = vadd.f32 %v2807, %v2912
      %2914 = vmatprep.mubr.f32.mxu0 0.0
      %v2915 = vand.u32 %v2464, 4294901760
      %v2916 = vsub.f32 %v2464, %v2915
      %v2917 = vand.u32 %v2916, 4294901760
      %2918 = vmatmul.mubr.f32.gmra.mrb[0].mxu0 %v2917
      %v2919 = vpop.f32.mrb[0].mxu0
      %v2920 = vadd.f32 %v2813, %v2919
      %v2921 = vpop.f32.mrb[0].mxu0
      %v2922 = vadd.f32 %v2815, %v2921
      %2923 = vmatprep.mubr.f32.mxu0 0.0
      %v2924 = vand.u32 %v2466, 4294901760
      %v2925 = vsub.f32 %v2466, %v2924
      %v2926 = vand.u32 %v2925, 4294901760
      %2927 = vmatmul.mubr.f32.gmra.mrb[0].mxu0 %v2926
      %v2928 = vpop.f32.mrb[0].mxu0
      %v2929 = vadd.f32 %v2821, %v2928
      %v2930 = vpop.f32.mrb[0].mxu0
      %v2931 = vadd.f32 %v2823, %v2930
      %2932 = vmatprep.mubr.f32.mxu0 0.0
      %v2933 = vand.u32 %v2468, 4294901760
      %v2934 = vsub.f32 %v2468, %v2933
      %v2935 = vand.u32 %v2934, 4294901760
      %2936 = vmatmul.mubr.f32.gmra.mrb[0].mxu0 %v2935
      %v2937 = vpop.f32.mrb[0].mxu0
      %v2938 = vadd.f32 %v2829, %v2937
      %v2939 = vpop.f32.mrb[0].mxu0
      %v2940 = vadd.f32 %v2831, %v2939
      %2941 = vdwg.mxu0
      %v2942 = vand.u32 %v261, 4294901760
      %v2943 = vsub.f32 %v261, %v2942
      %v2944 = vand.u32 %v2943, 4294901760
      %2945 = vmatprep.subr.mxu0 %v2944
      %v2946 = vand.u32 %v260, 4294901760
      %v2947 = vsub.f32 %v260, %v2946
      %v2948 = vand.u32 %v2947, 4294901760
      %2949 = vmatpush1.msra.mxu0 %v2948
      %v2950 = vand.u32 %v263, 4294901760
      %v2951 = vsub.f32 %v263, %v2950
      %v2952 = vand.u32 %v2951, 4294901760
      %2953 = vmatprep.subr.mxu0 %v2952
      %v2954 = vand.u32 %v262, 4294901760
      %v2955 = vsub.f32 %v262, %v2954
      %v2956 = vand.u32 %v2955, 4294901760
      %2957 = vmatpush1.msra.mxu0 %v2956
      %v2958 = vand.u32 %v265, 4294901760
      %v2959 = vsub.f32 %v265, %v2958
      %v2960 = vand.u32 %v2959, 4294901760
      %2961 = vmatprep.subr.mxu0 %v2960
      %v2962 = vand.u32 %v264, 4294901760
      %v2963 = vsub.f32 %v264, %v2962
      %v2964 = vand.u32 %v2963, 4294901760
      %2965 = vmatpush1.msra.mxu0 %v2964
      %v2966 = vand.u32 %v267, 4294901760
      %v2967 = vsub.f32 %v267, %v2966
      %v2968 = vand.u32 %v2967, 4294901760
      %2969 = vmatprep.subr.mxu0 %v2968
      %v2970 = vand.u32 %v266, 4294901760
      %v2971 = vsub.f32 %v266, %v2970
      %v2972 = vand.u32 %v2971, 4294901760
      %2973 = vmatpush1.msra.mxu0 %v2972
      %2974 = vmatprep.subr.mxu0 0.0
      %2975 = vmatpush1.msra.mxu0 0.0
      %2976 = vmatprep.subr.mxu0 0.0
      %2977 = vmatpush1.msra.mxu0 0.0
      %2978 = vmatprep.subr.mxu0 0.0
      %2979 = vmatpush1.msra.mxu0 0.0
      %2980 = vmatprep.subr.mxu0 0.0
      %2981 = vmatpush1.msra.mxu0 0.0
      %2982 = vmatprep.subr.mxu0 0.0
      %2983 = vmatpush1.msra.mxu0 0.0
      %2984 = vmatprep.subr.mxu0 0.0
      %2985 = vmatpush1.msra.mxu0 0.0
      %2986 = vmatprep.subr.mxu0 0.0
      %2987 = vmatpush1.msra.mxu0 0.0
      %2988 = vmatprep.subr.mxu0 0.0
      %2989 = vmatpush1.msra.mxu0 0.0
      %2990 = vmatprep.subr.mxu0 0.0
      %2991 = vmatpush1.msra.mxu0 0.0
      %2992 = vmatprep.subr.mxu0 0.0
      %2993 = vmatpush1.msra.mxu0 0.0
      %2994 = vmatprep.subr.mxu0 0.0
      %2995 = vmatpush1.msra.mxu0 0.0
      %2996 = vmatprep.subr.mxu0 0.0
      %2997 = vmatpush1.msra.mxu0 0.0
      %2998 = vmatprep.subr.mxu0 0.0
      %2999 = vmatpush1.msra.mxu0 0.0
      %3000 = vmatprep.subr.mxu0 0.0
      %3001 = vmatpush1.msra.mxu0 0.0
      %3002 = vmatprep.subr.mxu0 0.0
      %3003 = vmatpush1.msra.mxu0 0.0
      %3004 = vmatprep.subr.mxu0 0.0
      %3005 = vmatpush1.msra.mxu0 0.0
      %3006 = vmatprep.subr.mxu0 0.0
      %3007 = vmatpush1.msra.mxu0 0.0
      %3008 = vmatprep.subr.mxu0 0.0
      %3009 = vmatpush1.msra.mxu0 0.0
      %3010 = vmatprep.subr.mxu0 0.0
      %3011 = vmatpush1.msra.mxu0 0.0
      %3012 = vmatprep.subr.mxu0 0.0
      %3013 = vmatpush1.msra.mxu0 0.0
      %3014 = vmatprep.subr.mxu0 0.0
      %3015 = vmatpush1.msra.mxu0 0.0
      %3016 = vmatprep.subr.mxu0 0.0
      %3017 = vmatpush1.msra.mxu0 0.0
      %3018 = vmatprep.subr.mxu0 0.0
      %3019 = vmatpush1.msra.mxu0 0.0
      %3020 = vmatprep.subr.mxu0 0.0
      %3021 = vmatpush1.msra.mxu0 0.0
      %3022 = vmatprep.subr.mxu0 0.0
      %3023 = vmatpush1.msra.mxu0 0.0
      %3024 = vmatprep.subr.mxu0 0.0
      %3025 = vmatpush1.msra.mxu0 0.0
      %3026 = vmatprep.subr.mxu0 0.0
      %3027 = vmatpush1.msra.mxu0 0.0
      %3028 = vmatprep.subr.mxu0 0.0
      %3029 = vmatpush1.msra.mxu0 0.0
      %3030 = vmatprep.mubr.f32.mxu0 0.0
      %v3031 = vand.u32 %v2462, 4294901760
      %3032 = vmatmul.mubr.f32.gmra.mrb[0].mxu0 %v3031
      %v3033 = vpop.f32.mrb[0].mxu0
      %v3034 = vadd.f32 %v2911, %v3033
      %v3035 = vpop.f32.mrb[0].mxu0
      %v3036 = vadd.f32 %v2913, %v3035
      %3037 = vmatprep.mubr.f32.mxu0 0.0
      %v3038 = vand.u32 %v2464, 4294901760
      %3039 = vmatmul.mubr.f32.gmra.mrb[0].mxu0 %v3038
      %v3040 = vpop.f32.mrb[0].mxu0
      %v3041 = vadd.f32 %v2920, %v3040
      %v3042 = vpop.f32.mrb[0].mxu0
      %v3043 = vadd.f32 %v2922, %v3042
      %3044 = vmatprep.mubr.f32.mxu0 0.0
      %v3045 = vand.u32 %v2466, 4294901760
      %3046 = vmatmul.mubr.f32.gmra.mrb[0].mxu0 %v3045
      %v3047 = vpop.f32.mrb[0].mxu0
      %v3048 = vadd.f32 %v2929, %v3047
      %v3049 = vpop.f32.mrb[0].mxu0
      %v3050 = vadd.f32 %v2931, %v3049
      %3051 = vmatprep.mubr.f32.mxu0 0.0
      %v3052 = vand.u32 %v2468, 4294901760
      %3053 = vmatmul.mubr.f32.gmra.mrb[0].mxu0 %v3052
      %v3054 = vpop.f32.mrb[0].mxu0
      %v3055 = vadd.f32 %v2938, %v3054
      %v3056 = vpop.f32.mrb[0].mxu0
      %v3057 = vadd.f32 %v2940, %v3056
      %3058 = vdwg.mxu0
      %v3059 = vand.u32 %v261, 4294901760
      %3060 = vmatprep.subr.mxu0 %v3059
      %v3061 = vand.u32 %v260, 4294901760
      %3062 = vmatpush1.msra.mxu0 %v3061
      %v3063 = vand.u32 %v263, 4294901760
      %3064 = vmatprep.subr.mxu0 %v3063
      %v3065 = vand.u32 %v262, 4294901760
      %3066 = vmatpush1.msra.mxu0 %v3065
      %v3067 = vand.u32 %v265, 4294901760
      %3068 = vmatprep.subr.mxu0 %v3067
      %v3069 = vand.u32 %v264, 4294901760
      %3070 = vmatpush1.msra.mxu0 %v3069
      %v3071 = vand.u32 %v267, 4294901760
      %3072 = vmatprep.subr.mxu0 %v3071
      %v3073 = vand.u32 %v266, 4294901760
      %3074 = vmatpush1.msra.mxu0 %v3073
      %3075 = vmatprep.subr.mxu0 0.0
      %3076 = vmatpush1.msra.mxu0 0.0
      %3077 = vmatprep.subr.mxu0 0.0
      %3078 = vmatpush1.msra.mxu0 0.0
      %3079 = vmatprep.subr.mxu0 0.0
      %3080 = vmatpush1.msra.mxu0 0.0
      %3081 = vmatprep.subr.mxu0 0.0
      %3082 = vmatpush1.msra.mxu0 0.0
      %3083 = vmatprep.subr.mxu0 0.0
      %3084 = vmatpush1.msra.mxu0 0.0
      %3085 = vmatprep.subr.mxu0 0.0
      %3086 = vmatpush1.msra.mxu0 0.0
      %3087 = vmatprep.subr.mxu0 0.0
      %3088 = vmatpush1.msra.mxu0 0.0
      %3089 = vmatprep.subr.mxu0 0.0
      %3090 = vmatpush1.msra.mxu0 0.0
      %3091 = vmatprep.subr.mxu0 0.0
      %3092 = vmatpush1.msra.mxu0 0.0
      %3093 = vmatprep.subr.mxu0 0.0
      %3094 = vmatpush1.msra.mxu0 0.0
      %3095 = vmatprep.subr.mxu0 0.0
      %3096 = vmatpush1.msra.mxu0 0.0
      %3097 = vmatprep.subr.mxu0 0.0
      %3098 = vmatpush1.msra.mxu0 0.0
      %3099 = vmatprep.subr.mxu0 0.0
      %3100 = vmatpush1.msra.mxu0 0.0
      %3101 = vmatprep.subr.mxu0 0.0
      %3102 = vmatpush1.msra.mxu0 0.0
      %3103 = vmatprep.subr.mxu0 0.0
      %3104 = vmatpush1.msra.mxu0 0.0
      %3105 = vmatprep.subr.mxu0 0.0
      %3106 = vmatpush1.msra.mxu0 0.0
      %3107 = vmatprep.subr.mxu0 0.0
      %3108 = vmatpush1.msra.mxu0 0.0
      %3109 = vmatprep.subr.mxu0 0.0
      %3110 = vmatpush1.msra.mxu0 0.0
      %3111 = vmatprep.subr.mxu0 0.0
      %3112 = vmatpush1.msra.mxu0 0.0
      %3113 = vmatprep.subr.mxu0 0.0
      %3114 = vmatpush1.msra.mxu0 0.0
      %3115 = vmatprep.subr.mxu0 0.0
      %3116 = vmatpush1.msra.mxu0 0.0
      %3117 = vmatprep.subr.mxu0 0.0
      %3118 = vmatpush1.msra.mxu0 0.0
      %3119 = vmatprep.subr.mxu0 0.0
      %3120 = vmatpush1.msra.mxu0 0.0
      %3121 = vmatprep.subr.mxu0 0.0
      %3122 = vmatpush1.msra.mxu0 0.0
      %3123 = vmatprep.subr.mxu0 0.0
      %3124 = vmatpush1.msra.mxu0 0.0
      %3125 = vmatprep.subr.mxu0 0.0
      %3126 = vmatpush1.msra.mxu0 0.0
      %3127 = vmatprep.subr.mxu0 0.0
      %3128 = vmatpush1.msra.mxu0 0.0
      %3129 = vmatprep.subr.mxu0 0.0
      %3130 = vmatpush1.msra.mxu0 0.0
      %3131 = vmatprep.mubr.f32.mxu0 0.0
      %v3132 = vand.u32 %v2462, 4294901760
      %3133 = vmatmul.mubr.f32.gmra.mrb[0].mxu0 %v3132
      %v3134 = vpop.f32.mrb[0].mxu0
      %v3135 = vadd.f32 %v3034, %v3134
      %v3136 = vpop.f32.mrb[0].mxu0
      %v3137 = vadd.f32 %v3036, %v3136
      %3138 = vmatprep.mubr.f32.mxu0 0.0
      %v3139 = vand.u32 %v2464, 4294901760
      %3140 = vmatmul.mubr.f32.gmra.mrb[0].mxu0 %v3139
      %v3141 = vpop.f32.mrb[0].mxu0
      %v3142 = vadd.f32 %v3041, %v3141
      %v3143 = vpop.f32.mrb[0].mxu0
      %v3144 = vadd.f32 %v3043, %v3143
      %3145 = vmatprep.mubr.f32.mxu0 0.0
      %v3146 = vand.u32 %v2466, 4294901760
      %3147 = vmatmul.mubr.f32.gmra.mrb[0].mxu0 %v3146
      %v3148 = vpop.f32.mrb[0].mxu0
      %v3149 = vadd.f32 %v3048, %v3148
      %v3150 = vpop.f32.mrb[0].mxu0
      %v3151 = vadd.f32 %v3050, %v3150
      %3152 = vmatprep.mubr.f32.mxu0 0.0
      %v3153 = vand.u32 %v2468, 4294901760
      %3154 = vmatmul.mubr.f32.gmra.mrb[0].mxu0 %v3153
      %v3155 = vpop.f32.mrb[0].mxu0
      %v3156 = vadd.f32 %v3055, %v3155
      %v3157 = vpop.f32.mrb[0].mxu0
      %v3158 = vadd.f32 %v3057, %v3157
      %3159 = vdwg.mxu0
      %v3160 = vld [vmem:[%s3] sm:$0x3]
      %v3162 = vlaneseq
      %v3163 = vshrl.u32 %v3162, 7
      %v3164 = vsub.s32 0, %v3163
      %v3165 = vrot.slane %v3160, %v3164
      %v3166 = vlaneseq
      %v3167 = vshrl.u32 %v3166, 7
      %v3168 = vsub.s32 1, %v3167
      %v3169 = vrot.slane %v3160, %v3168
      %v3172 = vadd.f32 %v3135, %v3165
      %v3173 = vadd.f32 %v3137, %v3169
      %v3174 = vadd.f32 %v3142, %v3165
      %v3175 = vadd.f32 %v3144, %v3169
      %v3176 = vadd.f32 %v3149, %v3165
      %v3177 = vadd.f32 %v3151, %v3169
      %v3178 = vadd.f32 %v3156, %v3165
      %v3179 = vadd.f32 %v3158, %v3169
      %v3180 = vmax.f32 %v3172, 0.0
      %v3181 = vmax.f32 %v3173, 0.0
      %v3182 = vmax.f32 %v3174, 0.0
      %v3183 = vmax.f32 %v3175, 0.0
      %v3184 = vmax.f32 %v3176, 0.0
      %v3185 = vmax.f32 %v3177, 0.0
      %v3186 = vmax.f32 %v3178, 0.0
      %v3187 = vmax.f32 %v3179, 0.0
      %v3188 = vld [vmem:[%s4] sm:$0xff]
      %v3189 = vld [vmem:[%s4 + $0x8] sm:$0xff]
      %v3190 = vld [vmem:[%s4 + $0x10] sm:$0xff]
      %v3191 = vld [vmem:[%s4 + $0x18] sm:$0xff]
      %v3192 = vld [vmem:[%s4 + $0x20] sm:$0xff]
      %v3193 = vld [vmem:[%s4 + $0x28] sm:$0xff]
      %v3194 = vld [vmem:[%s4 + $0x30] sm:$0xff]
      %v3195 = vld [vmem:[%s4 + $0x38] sm:$0xff]
      %v3196 = vld [vmem:[%s4 + $0x40] sm:$0xff]
      %v3197 = vld [vmem:[%s4 + $0x48] sm:$0xff]
      %v3198 = vld [vmem:[%s4 + $0x50] sm:$0xff]
      %v3199 = vld [vmem:[%s4 + $0x58] sm:$0xff]
      %v3200 = vld [vmem:[%s4 + $0x60] sm:$0xff]
      %v3201 = vld [vmem:[%s4 + $0x68] sm:$0xff]
      %v3202 = vld [vmem:[%s4 + $0x70] sm:$0xff]
      %v3203 = vld [vmem:[%s4 + $0x78] sm:$0xff]
      %v3204 = vld [vmem:[%s4 + $0x80] sm:$0xff]
      %v3205 = vld [vmem:[%s4 + $0x88] sm:$0xff]
      %v3206 = vld [vmem:[%s4 + $0x90] sm:$0xff]
      %v3207 = vld [vmem:[%s4 + $0x98] sm:$0xff]
      %v3208 = vld [vmem:[%s4 + $0xa0] sm:$0xff]
      %v3209 = vld [vmem:[%s4 + $0xa8] sm:$0xff]
      %v3210 = vld [vmem:[%s4 + $0xb0] sm:$0xff]
      %v3211 = vld [vmem:[%s4 + $0xb8] sm:$0xff]
      %v3212 = vld [vmem:[%s4 + $0xc0] sm:$0xff]
      %v3213 = vld [vmem:[%s4 + $0xc8] sm:$0xff]
      %v3214 = vld [vmem:[%s4 + $0xd0] sm:$0xff]
      %v3215 = vld [vmem:[%s4 + $0xd8] sm:$0xff]
      %v3216 = vld [vmem:[%s4 + $0xe0] sm:$0xff]
      %v3217 = vld [vmem:[%s4 + $0xe8] sm:$0xff]
      %v3218 = vld [vmem:[%s4 + $0xf0] sm:$0xff]
      %v3219 = vld [vmem:[%s4 + $0xf8] sm:$0xff]
      %v3220 = vld [vmem:[%s5] sm:$0x1]
      %v3222 = vlaneseq
      %v3223 = vshrl.u32 %v3222, 7
      %v3224 = vsub.s32 0, %v3223
      %v3225 = vrot.slane %v3220, %v3224
      %3227 = vmatprep.subr.mxu0 0.0
      %v3228 = vand.u32 %v3188, 4294901760
      %3229 = vmatpush1.msra.mxu0 %v3228
      %3230 = vmatprep.subr.mxu0 0.0
      %v3231 = vand.u32 %v3189, 4294901760
      %3232 = vmatpush1.msra.mxu0 %v3231
      %3233 = vmatprep.subr.mxu0 0.0
      %v3234 = vand.u32 %v3190, 4294901760
      %3235 = vmatpush1.msra.mxu0 %v3234
      %3236 = vmatprep.subr.mxu0 0.0
      %v3237 = vand.u32 %v3191, 4294901760
      %3238 = vmatpush1.msra.mxu0 %v3237
      %3239 = vmatprep.subr.mxu0 0.0
      %v3240 = vand.u32 %v3192, 4294901760
      %3241 = vmatpush1.msra.mxu0 %v3240
      %3242 = vmatprep.subr.mxu0 0.0
      %v3243 = vand.u32 %v3193, 4294901760
      %3244 = vmatpush1.msra.mxu0 %v3243
      %3245 = vmatprep.subr.mxu0 0.0
      %v3246 = vand.u32 %v3194, 4294901760
      %3247 = vmatpush1.msra.mxu0 %v3246
      %3248 = vmatprep.subr.mxu0 0.0
      %v3249 = vand.u32 %v3195, 4294901760
      %3250 = vmatpush1.msra.mxu0 %v3249
      %3251 = vmatprep.subr.mxu0 0.0
      %v3252 = vand.u32 %v3196, 4294901760
      %3253 = vmatpush1.msra.mxu0 %v3252
      %3254 = vmatprep.subr.mxu0 0.0
      %v3255 = vand.u32 %v3197, 4294901760
      %3256 = vmatpush1.msra.mxu0 %v3255
      %3257 = vmatprep.subr.mxu0 0.0
      %v3258 = vand.u32 %v3198, 4294901760
      %3259 = vmatpush1.msra.mxu0 %v3258
      %3260 = vmatprep.subr.mxu0 0.0
      %v3261 = vand.u32 %v3199, 4294901760
      %3262 = vmatpush1.msra.mxu0 %v3261
      %3263 = vmatprep.subr.mxu0 0.0
      %v3264 = vand.u32 %v3200, 4294901760
      %3265 = vmatpush1.msra.mxu0 %v3264
      %3266 = vmatprep.subr.mxu0 0.0
      %v3267 = vand.u32 %v3201, 4294901760
      %3268 = vmatpush1.msra.mxu0 %v3267
      %3269 = vmatprep.subr.mxu0 0.0
      %v3270 = vand.u32 %v3202, 4294901760
      %3271 = vmatpush1.msra.mxu0 %v3270
      %3272 = vmatprep.subr.mxu0 0.0
      %v3273 = vand.u32 %v3203, 4294901760
      %3274 = vmatpush1.msra.mxu0 %v3273
      %3275 = vmatprep.subr.mxu0 0.0
      %v3276 = vand.u32 %v3204, 4294901760
      %3277 = vmatpush1.msra.mxu0 %v3276
      %3278 = vmatprep.subr.mxu0 0.0
      %v3279 = vand.u32 %v3205, 4294901760
      %3280 = vmatpush1.msra.mxu0 %v3279
      %3281 = vmatprep.subr.mxu0 0.0
      %v3282 = vand.u32 %v3206, 4294901760
      %3283 = vmatpush1.msra.mxu0 %v3282
      %3284 = vmatprep.subr.mxu0 0.0
      %v3285 = vand.u32 %v3207, 4294901760
      %3286 = vmatpush1.msra.mxu0 %v3285
      %3287 = vmatprep.subr.mxu0 0.0
      %v3288 = vand.u32 %v3208, 4294901760
      %3289 = vmatpush1.msra.mxu0 %v3288
      %3290 = vmatprep.subr.mxu0 0.0
      %v3291 = vand.u32 %v3209, 4294901760
      %3292 = vmatpush1.msra.mxu0 %v3291
      %3293 = vmatprep.subr.mxu0 0.0
      %v3294 = vand.u32 %v3210, 4294901760
      %3295 = vmatpush1.msra.mxu0 %v3294
      %3296 = vmatprep.subr.mxu0 0.0
      %v3297 = vand.u32 %v3211, 4294901760
      %3298 = vmatpush1.msra.mxu0 %v3297
      %3299 = vmatprep.subr.mxu0 0.0
      %v3300 = vand.u32 %v3212, 4294901760
      %3301 = vmatpush1.msra.mxu0 %v3300
      %3302 = vmatprep.subr.mxu0 0.0
      %v3303 = vand.u32 %v3213, 4294901760
      %3304 = vmatpush1.msra.mxu0 %v3303
      %3305 = vmatprep.subr.mxu0 0.0
      %v3306 = vand.u32 %v3214, 4294901760
      %3307 = vmatpush1.msra.mxu0 %v3306
      %3308 = vmatprep.subr.mxu0 0.0
      %v3309 = vand.u32 %v3215, 4294901760
      %3310 = vmatpush1.msra.mxu0 %v3309
      %3311 = vmatprep.subr.mxu0 0.0
      %v3312 = vand.u32 %v3216, 4294901760
      %3313 = vmatpush1.msra.mxu0 %v3312
      %3314 = vmatprep.subr.mxu0 0.0
      %v3315 = vand.u32 %v3217, 4294901760
      %3316 = vmatpush1.msra.mxu0 %v3315
      %3317 = vmatprep.subr.mxu0 0.0
      %v3318 = vand.u32 %v3218, 4294901760
      %3319 = vmatpush1.msra.mxu0 %v3318
      %3320 = vmatprep.subr.mxu0 0.0
      %v3321 = vand.u32 %v3219, 4294901760
      %3322 = vmatpush1.msra.mxu0 %v3321
      %v3323 = vand.u32 %v3181, 4294901760
      %v3324 = vsub.f32 %v3181, %v3323
      %v3325 = vand.u32 %v3324, 4294901760
      %v3326 = vsub.f32 %v3324, %v3325
      %v3327 = vand.u32 %v3326, 4294901760
      %3328 = vmatprep.mubr.f32.mxu0 %v3327
      %v3329 = vand.u32 %v3180, 4294901760
      %v3330 = vsub.f32 %v3180, %v3329
      %v3331 = vand.u32 %v3330, 4294901760
      %v3332 = vsub.f32 %v3330, %v3331
      %v3333 = vand.u32 %v3332, 4294901760
      %3334 = vmatmul.mubr.f32.gmra.mrb[0].mxu0 %v3333
      %v3335 = vpop.f32.mrb[0].mxu0
      %v3336 = vadd.f32 %v3225, %v3335
      %v3337 = vpop.f32.mrb[0].mxu0
      %v3338 = vand.u32 %v3183, 4294901760
      %v3339 = vsub.f32 %v3183, %v3338
      %v3340 = vand.u32 %v3339, 4294901760
      %v3341 = vsub.f32 %v3339, %v3340
      %v3342 = vand.u32 %v3341, 4294901760
      %3343 = vmatprep.mubr.f32.mxu0 %v3342
      %v3344 = vand.u32 %v3182, 4294901760
      %v3345 = vsub.f32 %v3182, %v3344
      %v3346 = vand.u32 %v3345, 4294901760
      %v3347 = vsub.f32 %v3345, %v3346
      %v3348 = vand.u32 %v3347, 4294901760
      %3349 = vmatmul.mubr.f32.gmra.mrb[0].mxu0 %v3348
      %v3350 = vpop.f32.mrb[0].mxu0
      %v3351 = vadd.f32 %v3225, %v3350
      %v3352 = vpop.f32.mrb[0].mxu0
      %v3353 = vand.u32 %v3185, 4294901760
      %v3354 = vsub.f32 %v3185, %v3353
      %v3355 = vand.u32 %v3354, 4294901760
      %v3356 = vsub.f32 %v3354, %v3355
      %v3357 = vand.u32 %v3356, 4294901760
      %3358 = vmatprep.mubr.f32.mxu0 %v3357
      %v3359 = vand.u32 %v3184, 4294901760
      %v3360 = vsub.f32 %v3184, %v3359
      %v3361 = vand.u32 %v3360, 4294901760
      %v3362 = vsub.f32 %v3360, %v3361
      %v3363 = vand.u32 %v3362, 4294901760
      %3364 = vmatmul.mubr.f32.gmra.mrb[0].mxu0 %v3363
      %v3365 = vpop.f32.mrb[0].mxu0
      %v3366 = vadd.f32 %v3225, %v3365
      %v3367 = vpop.f32.mrb[0].mxu0
      %v3368 = vand.u32 %v3187, 4294901760
      %v3369 = vsub.f32 %v3187, %v3368
      %v3370 = vand.u32 %v3369, 4294901760
      %v3371 = vsub.f32 %v3369, %v3370
      %v3372 = vand.u32 %v3371, 4294901760
      %3373 = vmatprep.mubr.f32.mxu0 %v3372
      %v3374 = vand.u32 %v3186, 4294901760
      %v3375 = vsub.f32 %v3186, %v3374
      %v3376 = vand.u32 %v3375, 4294901760
      %v3377 = vsub.f32 %v3375, %v3376
      %v3378 = vand.u32 %v3377, 4294901760
      %3379 = vmatmul.mubr.f32.gmra.mrb[0].mxu0 %v3378
      %v3380 = vpop.f32.mrb[0].mxu0
      %v3381 = vadd.f32 %v3225, %v3380
      %v3382 = vpop.f32.mrb[0].mxu0
      %3383 = vdwg.mxu0
      %3384 = vmatprep.subr.mxu0 0.0
      %v3385 = vand.u32 %v3188, 4294901760
      %v3386 = vsub.f32 %v3188, %v3385
      %v3387 = vand.u32 %v3386, 4294901760
      %v3388 = vsub.f32 %v3386, %v3387
      %v3389 = vand.u32 %v3388, 4294901760
      %3390 = vmatpush1.msra.mxu0 %v3389
      %3391 = vmatprep.subr.mxu0 0.0
      %v3392 = vand.u32 %v3189, 4294901760
      %v3393 = vsub.f32 %v3189, %v3392
      %v3394 = vand.u32 %v3393, 4294901760
      %v3395 = vsub.f32 %v3393, %v3394
      %v3396 = vand.u32 %v3395, 4294901760
      %3397 = vmatpush1.msra.mxu0 %v3396
      %3398 = vmatprep.subr.mxu0 0.0
      %v3399 = vand.u32 %v3190, 4294901760
      %v3400 = vsub.f32 %v3190, %v3399
      %v3401 = vand.u32 %v3400, 4294901760
      %v3402 = vsub.f32 %v3400, %v3401
      %v3403 = vand.u32 %v3402, 4294901760
      %3404 = vmatpush1.msra.mxu0 %v3403
      %3405 = vmatprep.subr.mxu0 0.0
      %v3406 = vand.u32 %v3191, 4294901760
      %v3407 = vsub.f32 %v3191, %v3406
      %v3408 = vand.u32 %v3407, 4294901760
      %v3409 = vsub.f32 %v3407, %v3408
      %v3410 = vand.u32 %v3409, 4294901760
      %3411 = vmatpush1.msra.mxu0 %v3410
      %3412 = vmatprep.subr.mxu0 0.0
      %v3413 = vand.u32 %v3192, 4294901760
      %v3414 = vsub.f32 %v3192, %v3413
      %v3415 = vand.u32 %v3414, 4294901760
      %v3416 = vsub.f32 %v3414, %v3415
      %v3417 = vand.u32 %v3416, 4294901760
      %3418 = vmatpush1.msra.mxu0 %v3417
      %3419 = vmatprep.subr.mxu0 0.0
      %v3420 = vand.u32 %v3193, 4294901760
      %v3421 = vsub.f32 %v3193, %v3420
      %v3422 = vand.u32 %v3421, 4294901760
      %v3423 = vsub.f32 %v3421, %v3422
      %v3424 = vand.u32 %v3423, 4294901760
      %3425 = vmatpush1.msra.mxu0 %v3424
      %3426 = vmatprep.subr.mxu0 0.0
      %v3427 = vand.u32 %v3194, 4294901760
      %v3428 = vsub.f32 %v3194, %v3427
      %v3429 = vand.u32 %v3428, 4294901760
      %v3430 = vsub.f32 %v3428, %v3429
      %v3431 = vand.u32 %v3430, 4294901760
      %3432 = vmatpush1.msra.mxu0 %v3431
      %3433 = vmatprep.subr.mxu0 0.0
      %v3434 = vand.u32 %v3195, 4294901760
      %v3435 = vsub.f32 %v3195, %v3434
      %v3436 = vand.u32 %v3435, 4294901760
      %v3437 = vsub.f32 %v3435, %v3436
      %v3438 = vand.u32 %v3437, 4294901760
      %3439 = vmatpush1.msra.mxu0 %v3438
      %3440 = vmatprep.subr.mxu0 0.0
      %v3441 = vand.u32 %v3196, 4294901760
      %v3442 = vsub.f32 %v3196, %v3441
      %v3443 = vand.u32 %v3442, 4294901760
      %v3444 = vsub.f32 %v3442, %v3443
      %v3445 = vand.u32 %v3444, 4294901760
      %3446 = vmatpush1.msra.mxu0 %v3445
      %3447 = vmatprep.subr.mxu0 0.0
      %v3448 = vand.u32 %v3197, 4294901760
      %v3449 = vsub.f32 %v3197, %v3448
      %v3450 = vand.u32 %v3449, 4294901760
      %v3451 = vsub.f32 %v3449, %v3450
      %v3452 = vand.u32 %v3451, 4294901760
      %3453 = vmatpush1.msra.mxu0 %v3452
      %3454 = vmatprep.subr.mxu0 0.0
      %v3455 = vand.u32 %v3198, 4294901760
      %v3456 = vsub.f32 %v3198, %v3455
      %v3457 = vand.u32 %v3456, 4294901760
      %v3458 = vsub.f32 %v3456, %v3457
      %v3459 = vand.u32 %v3458, 4294901760
      %3460 = vmatpush1.msra.mxu0 %v3459
      %3461 = vmatprep.subr.mxu0 0.0
      %v3462 = vand.u32 %v3199, 4294901760
      %v3463 = vsub.f32 %v3199, %v3462
      %v3464 = vand.u32 %v3463, 4294901760
      %v3465 = vsub.f32 %v3463, %v3464
      %v3466 = vand.u32 %v3465, 4294901760
      %3467 = vmatpush1.msra.mxu0 %v3466
      %3468 = vmatprep.subr.mxu0 0.0
      %v3469 = vand.u32 %v3200, 4294901760
      %v3470 = vsub.f32 %v3200, %v3469
      %v3471 = vand.u32 %v3470, 4294901760
      %v3472 = vsub.f32 %v3470, %v3471
      %v3473 = vand.u32 %v3472, 4294901760
      %3474 = vmatpush1.msra.mxu0 %v3473
      %3475 = vmatprep.subr.mxu0 0.0
      %v3476 = vand.u32 %v3201, 4294901760
      %v3477 = vsub.f32 %v3201, %v3476
      %v3478 = vand.u32 %v3477, 4294901760
      %v3479 = vsub.f32 %v3477, %v3478
      %v3480 = vand.u32 %v3479, 4294901760
      %3481 = vmatpush1.msra.mxu0 %v3480
      %3482 = vmatprep.subr.mxu0 0.0
      %v3483 = vand.u32 %v3202, 4294901760
      %v3484 = vsub.f32 %v3202, %v3483
      %v3485 = vand.u32 %v3484, 4294901760
      %v3486 = vsub.f32 %v3484, %v3485
      %v3487 = vand.u32 %v3486, 4294901760
      %3488 = vmatpush1.msra.mxu0 %v3487
      %3489 = vmatprep.subr.mxu0 0.0
      %v3490 = vand.u32 %v3203, 4294901760
      %v3491 = vsub.f32 %v3203, %v3490
      %v3492 = vand.u32 %v3491, 4294901760
      %v3493 = vsub.f32 %v3491, %v3492
      %v3494 = vand.u32 %v3493, 4294901760
      %3495 = vmatpush1.msra.mxu0 %v3494
      %3496 = vmatprep.subr.mxu0 0.0
      %v3497 = vand.u32 %v3204, 4294901760
      %v3498 = vsub.f32 %v3204, %v3497
      %v3499 = vand.u32 %v3498, 4294901760
      %v3500 = vsub.f32 %v3498, %v3499
      %v3501 = vand.u32 %v3500, 4294901760
      %3502 = vmatpush1.msra.mxu0 %v3501
      %3503 = vmatprep.subr.mxu0 0.0
      %v3504 = vand.u32 %v3205, 4294901760
      %v3505 = vsub.f32 %v3205, %v3504
      %v3506 = vand.u32 %v3505, 4294901760
      %v3507 = vsub.f32 %v3505, %v3506
      %v3508 = vand.u32 %v3507, 4294901760
      %3509 = vmatpush1.msra.mxu0 %v3508
      %3510 = vmatprep.subr.mxu0 0.0
      %v3511 = vand.u32 %v3206, 4294901760
      %v3512 = vsub.f32 %v3206, %v3511
      %v3513 = vand.u32 %v3512, 4294901760
      %v3514 = vsub.f32 %v3512, %v3513
      %v3515 = vand.u32 %v3514, 4294901760
      %3516 = vmatpush1.msra.mxu0 %v3515
      %3517 = vmatprep.subr.mxu0 0.0
      %v3518 = vand.u32 %v3207, 4294901760
      %v3519 = vsub.f32 %v3207, %v3518
      %v3520 = vand.u32 %v3519, 4294901760
      %v3521 = vsub.f32 %v3519, %v3520
      %v3522 = vand.u32 %v3521, 4294901760
      %3523 = vmatpush1.msra.mxu0 %v3522
      %3524 = vmatprep.subr.mxu0 0.0
      %v3525 = vand.u32 %v3208, 4294901760
      %v3526 = vsub.f32 %v3208, %v3525
      %v3527 = vand.u32 %v3526, 4294901760
      %v3528 = vsub.f32 %v3526, %v3527
      %v3529 = vand.u32 %v3528, 4294901760
      %3530 = vmatpush1.msra.mxu0 %v3529
      %3531 = vmatprep.subr.mxu0 0.0
      %v3532 = vand.u32 %v3209, 4294901760
      %v3533 = vsub.f32 %v3209, %v3532
      %v3534 = vand.u32 %v3533, 4294901760
      %v3535 = vsub.f32 %v3533, %v3534
      %v3536 = vand.u32 %v3535, 4294901760
      %3537 = vmatpush1.msra.mxu0 %v3536
      %3538 = vmatprep.subr.mxu0 0.0
      %v3539 = vand.u32 %v3210, 4294901760
      %v3540 = vsub.f32 %v3210, %v3539
      %v3541 = vand.u32 %v3540, 4294901760
      %v3542 = vsub.f32 %v3540, %v3541
      %v3543 = vand.u32 %v3542, 4294901760
      %3544 = vmatpush1.msra.mxu0 %v3543
      %3545 = vmatprep.subr.mxu0 0.0
      %v3546 = vand.u32 %v3211, 4294901760
      %v3547 = vsub.f32 %v3211, %v3546
      %v3548 = vand.u32 %v3547, 4294901760
      %v3549 = vsub.f32 %v3547, %v3548
      %v3550 = vand.u32 %v3549, 4294901760
      %3551 = vmatpush1.msra.mxu0 %v3550
      %3552 = vmatprep.subr.mxu0 0.0
      %v3553 = vand.u32 %v3212, 4294901760
      %v3554 = vsub.f32 %v3212, %v3553
      %v3555 = vand.u32 %v3554, 4294901760
      %v3556 = vsub.f32 %v3554, %v3555
      %v3557 = vand.u32 %v3556, 4294901760
      %3558 = vmatpush1.msra.mxu0 %v3557
      %3559 = vmatprep.subr.mxu0 0.0
      %v3560 = vand.u32 %v3213, 4294901760
      %v3561 = vsub.f32 %v3213, %v3560
      %v3562 = vand.u32 %v3561, 4294901760
      %v3563 = vsub.f32 %v3561, %v3562
      %v3564 = vand.u32 %v3563, 4294901760
      %3565 = vmatpush1.msra.mxu0 %v3564
      %3566 = vmatprep.subr.mxu0 0.0
      %v3567 = vand.u32 %v3214, 4294901760
      %v3568 = vsub.f32 %v3214, %v3567
      %v3569 = vand.u32 %v3568, 4294901760
      %v3570 = vsub.f32 %v3568, %v3569
      %v3571 = vand.u32 %v3570, 4294901760
      %3572 = vmatpush1.msra.mxu0 %v3571
      %3573 = vmatprep.subr.mxu0 0.0
      %v3574 = vand.u32 %v3215, 4294901760
      %v3575 = vsub.f32 %v3215, %v3574
      %v3576 = vand.u32 %v3575, 4294901760
      %v3577 = vsub.f32 %v3575, %v3576
      %v3578 = vand.u32 %v3577, 4294901760
      %3579 = vmatpush1.msra.mxu0 %v3578
      %3580 = vmatprep.subr.mxu0 0.0
      %v3581 = vand.u32 %v3216, 4294901760
      %v3582 = vsub.f32 %v3216, %v3581
      %v3583 = vand.u32 %v3582, 4294901760
      %v3584 = vsub.f32 %v3582, %v3583
      %v3585 = vand.u32 %v3584, 4294901760
      %3586 = vmatpush1.msra.mxu0 %v3585
      %3587 = vmatprep.subr.mxu0 0.0
      %v3588 = vand.u32 %v3217, 4294901760
      %v3589 = vsub.f32 %v3217, %v3588
      %v3590 = vand.u32 %v3589, 4294901760
      %v3591 = vsub.f32 %v3589, %v3590
      %v3592 = vand.u32 %v3591, 4294901760
      %3593 = vmatpush1.msra.mxu0 %v3592
      %3594 = vmatprep.subr.mxu0 0.0
      %v3595 = vand.u32 %v3218, 4294901760
      %v3596 = vsub.f32 %v3218, %v3595
      %v3597 = vand.u32 %v3596, 4294901760
      %v3598 = vsub.f32 %v3596, %v3597
      %v3599 = vand.u32 %v3598, 4294901760
      %3600 = vmatpush1.msra.mxu0 %v3599
      %3601 = vmatprep.subr.mxu0 0.0
      %v3602 = vand.u32 %v3219, 4294901760
      %v3603 = vsub.f32 %v3219, %v3602
      %v3604 = vand.u32 %v3603, 4294901760
      %v3605 = vsub.f32 %v3603, %v3604
      %v3606 = vand.u32 %v3605, 4294901760
      %3607 = vmatpush1.msra.mxu0 %v3606
      %v3608 = vand.u32 %v3181, 4294901760
      %3609 = vmatprep.mubr.f32.mxu0 %v3608
      %v3610 = vand.u32 %v3180, 4294901760
      %3611 = vmatmul.mubr.f32.gmra.mrb[0].mxu0 %v3610
      %v3612 = vpop.f32.mrb[0].mxu0
      %v3613 = vadd.f32 %v3336, %v3612
      %v3614 = vpop.f32.mrb[0].mxu0
      %v3615 = vand.u32 %v3183, 4294901760
      %3616 = vmatprep.mubr.f32.mxu0 %v3615
      %v3617 = vand.u32 %v3182, 4294901760
      %3618 = vmatmul.mubr.f32.gmra.mrb[0].mxu0 %v3617
      %v3619 = vpop.f32.mrb[0].mxu0
      %v3620 = vadd.f32 %v3351, %v3619
      %v3621 = vpop.f32.mrb[0].mxu0
      %v3622 = vand.u32 %v3185, 4294901760
      %3623 = vmatprep.mubr.f32.mxu0 %v3622
      %v3624 = vand.u32 %v3184, 4294901760
      %3625 = vmatmul.mubr.f32.gmra.mrb[0].mxu0 %v3624
      %v3626 = vpop.f32.mrb[0].mxu0
      %v3627 = vadd.f32 %v3366, %v3626
      %v3628 = vpop.f32.mrb[0].mxu0
      %v3629 = vand.u32 %v3187, 4294901760
      %3630 = vmatprep.mubr.f32.mxu0 %v3629
      %v3631 = vand.u32 %v3186, 4294901760
      %3632 = vmatmul.mubr.f32.gmra.mrb[0].mxu0 %v3631
      %v3633 = vpop.f32.mrb[0].mxu0
      %v3634 = vadd.f32 %v3381, %v3633
      %v3635 = vpop.f32.mrb[0].mxu0
      %3636 = vdwg.mxu0
      %3637 = vmatprep.subr.mxu0 0.0
      %v3638 = vand.u32 %v3188, 4294901760
      %v3639 = vsub.f32 %v3188, %v3638
      %3640 = vmatpush1.msra.mxu0 %v3639
      %3641 = vmatprep.subr.mxu0 0.0
      %v3642 = vand.u32 %v3189, 4294901760
      %v3643 = vsub.f32 %v3189, %v3642
      %3644 = vmatpush1.msra.mxu0 %v3643
      %3645 = vmatprep.subr.mxu0 0.0
      %v3646 = vand.u32 %v3190, 4294901760
      %v3647 = vsub.f32 %v3190, %v3646
      %3648 = vmatpush1.msra.mxu0 %v3647
      %3649 = vmatprep.subr.mxu0 0.0
      %v3650 = vand.u32 %v3191, 4294901760
      %v3651 = vsub.f32 %v3191, %v3650
      %3652 = vmatpush1.msra.mxu0 %v3651
      %3653 = vmatprep.subr.mxu0 0.0
      %v3654 = vand.u32 %v3192, 4294901760
      %v3655 = vsub.f32 %v3192, %v3654
      %3656 = vmatpush1.msra.mxu0 %v3655
      %3657 = vmatprep.subr.mxu0 0.0
      %v3658 = vand.u32 %v3193, 4294901760
      %v3659 = vsub.f32 %v3193, %v3658
      %3660 = vmatpush1.msra.mxu0 %v3659
      %3661 = vmatprep.subr.mxu0 0.0
      %v3662 = vand.u32 %v3194, 4294901760
      %v3663 = vsub.f32 %v3194, %v3662
      %3664 = vmatpush1.msra.mxu0 %v3663
      %3665 = vmatprep.subr.mxu0 0.0
      %v3666 = vand.u32 %v3195, 4294901760
      %v3667 = vsub.f32 %v3195, %v3666
      %3668 = vmatpush1.msra.mxu0 %v3667
      %3669 = vmatprep.subr.mxu0 0.0
      %v3670 = vand.u32 %v3196, 4294901760
      %v3671 = vsub.f32 %v3196, %v3670
      %3672 = vmatpush1.msra.mxu0 %v3671
      %3673 = vmatprep.subr.mxu0 0.0
      %v3674 = vand.u32 %v3197, 4294901760
      %v3675 = vsub.f32 %v3197, %v3674
      %3676 = vmatpush1.msra.mxu0 %v3675
      %3677 = vmatprep.subr.mxu0 0.0
      %v3678 = vand.u32 %v3198, 4294901760
      %v3679 = vsub.f32 %v3198, %v3678
      %3680 = vmatpush1.msra.mxu0 %v3679
      %3681 = vmatprep.subr.mxu0 0.0
      %v3682 = vand.u32 %v3199, 4294901760
      %v3683 = vsub.f32 %v3199, %v3682
      %3684 = vmatpush1.msra.mxu0 %v3683
      %3685 = vmatprep.subr.mxu0 0.0
      %v3686 = vand.u32 %v3200, 4294901760
      %v3687 = vsub.f32 %v3200, %v3686
      %3688 = vmatpush1.msra.mxu0 %v3687
      %3689 = vmatprep.subr.mxu0 0.0
      %v3690 = vand.u32 %v3201, 4294901760
      %v3691 = vsub.f32 %v3201, %v3690
      %3692 = vmatpush1.msra.mxu0 %v3691
      %3693 = vmatprep.subr.mxu0 0.0
      %v3694 = vand.u32 %v3202, 4294901760
      %v3695 = vsub.f32 %v3202, %v3694
      %3696 = vmatpush1.msra.mxu0 %v3695
      %3697 = vmatprep.subr.mxu0 0.0
      %v3698 = vand.u32 %v3203, 4294901760
      %v3699 = vsub.f32 %v3203, %v3698
      %3700 = vmatpush1.msra.mxu0 %v3699
      %3701 = vmatprep.subr.mxu0 0.0
      %v3702 = vand.u32 %v3204, 4294901760
      %v3703 = vsub.f32 %v3204, %v3702
      %3704 = vmatpush1.msra.mxu0 %v3703
      %3705 = vmatprep.subr.mxu0 0.0
      %v3706 = vand.u32 %v3205, 4294901760
      %v3707 = vsub.f32 %v3205, %v3706
      %3708 = vmatpush1.msra.mxu0 %v3707
      %3709 = vmatprep.subr.mxu0 0.0
      %v3710 = vand.u32 %v3206, 4294901760
      %v3711 = vsub.f32 %v3206, %v3710
      %3712 = vmatpush1.msra.mxu0 %v3711
      %3713 = vmatprep.subr.mxu0 0.0
      %v3714 = vand.u32 %v3207, 4294901760
      %v3715 = vsub.f32 %v3207, %v3714
      %3716 = vmatpush1.msra.mxu0 %v3715
      %3717 = vmatprep.subr.mxu0 0.0
      %v3718 = vand.u32 %v3208, 4294901760
      %v3719 = vsub.f32 %v3208, %v3718
      %3720 = vmatpush1.msra.mxu0 %v3719
      %3721 = vmatprep.subr.mxu0 0.0
      %v3722 = vand.u32 %v3209, 4294901760
      %v3723 = vsub.f32 %v3209, %v3722
      %3724 = vmatpush1.msra.mxu0 %v3723
      %3725 = vmatprep.subr.mxu0 0.0
      %v3726 = vand.u32 %v3210, 4294901760
      %v3727 = vsub.f32 %v3210, %v3726
      %3728 = vmatpush1.msra.mxu0 %v3727
      %3729 = vmatprep.subr.mxu0 0.0
      %v3730 = vand.u32 %v3211, 4294901760
      %v3731 = vsub.f32 %v3211, %v3730
      %3732 = vmatpush1.msra.mxu0 %v3731
      %3733 = vmatprep.subr.mxu0 0.0
      %v3734 = vand.u32 %v3212, 4294901760
      %v3735 = vsub.f32 %v3212, %v3734
      %3736 = vmatpush1.msra.mxu0 %v3735
      %3737 = vmatprep.subr.mxu0 0.0
      %v3738 = vand.u32 %v3213, 4294901760
      %v3739 = vsub.f32 %v3213, %v3738
      %3740 = vmatpush1.msra.mxu0 %v3739
      %3741 = vmatprep.subr.mxu0 0.0
      %v3742 = vand.u32 %v3214, 4294901760
      %v3743 = vsub.f32 %v3214, %v3742
      %3744 = vmatpush1.msra.mxu0 %v3743
      %3745 = vmatprep.subr.mxu0 0.0
      %v3746 = vand.u32 %v3215, 4294901760
      %v3747 = vsub.f32 %v3215, %v3746
      %3748 = vmatpush1.msra.mxu0 %v3747
      %3749 = vmatprep.subr.mxu0 0.0
      %v3750 = vand.u32 %v3216, 4294901760
      %v3751 = vsub.f32 %v3216, %v3750
      %3752 = vmatpush1.msra.mxu0 %v3751
      %3753 = vmatprep.subr.mxu0 0.0
      %v3754 = vand.u32 %v3217, 4294901760
      %v3755 = vsub.f32 %v3217, %v3754
      %3756 = vmatpush1.msra.mxu0 %v3755
      %3757 = vmatprep.subr.mxu0 0.0
      %v3758 = vand.u32 %v3218, 4294901760
      %v3759 = vsub.f32 %v3218, %v3758
      %3760 = vmatpush1.msra.mxu0 %v3759
      %3761 = vmatprep.subr.mxu0 0.0
      %v3762 = vand.u32 %v3219, 4294901760
      %v3763 = vsub.f32 %v3219, %v3762
      %3764 = vmatpush1.msra.mxu0 %v3763
      %v3765 = vand.u32 %v3181, 4294901760
      %v3766 = vsub.f32 %v3181, %v3765
      %3767 = vmatprep.mubr.f32.mxu0 %v3766
      %v3768 = vand.u32 %v3180, 4294901760
      %v3769 = vsub.f32 %v3180, %v3768
      %3770 = vmatmul.mubr.f32.gmra.mrb[0].mxu0 %v3769
      %v3771 = vpop.f32.mrb[0].mxu0
      %v3772 = vadd.f32 %v3613, %v3771
      %v3773 = vpop.f32.mrb[0].mxu0
      %v3774 = vand.u32 %v3183, 4294901760
      %v3775 = vsub.f32 %v3183, %v3774
      %3776 = vmatprep.mubr.f32.mxu0 %v3775
      %v3777 = vand.u32 %v3182, 4294901760
      %v3778 = vsub.f32 %v3182, %v3777
      %3779 = vmatmul.mubr.f32.gmra.mrb[0].mxu0 %v3778
      %v3780 = vpop.f32.mrb[0].mxu0
      %v3781 = vadd.f32 %v3620, %v3780
      %v3782 = vpop.f32.mrb[0].mxu0
      %v3783 = vand.u32 %v3185, 4294901760
      %v3784 = vsub.f32 %v3185, %v3783
      %3785 = vmatprep.mubr.f32.mxu0 %v3784
      %v3786 = vand.u32 %v3184, 4294901760
      %v3787 = vsub.f32 %v3184, %v3786
      %3788 = vmatmul.mubr.f32.gmra.mrb[0].mxu0 %v3787
      %v3789 = vpop.f32.mrb[0].mxu0
      %v3790 = vadd.f32 %v3627, %v3789
      %v3791 = vpop.f32.mrb[0].mxu0
      %v3792 = vand.u32 %v3187, 4294901760
      %v3793 = vsub.f32 %v3187, %v3792
      %3794 = vmatprep.mubr.f32.mxu0 %v3793
      %v3795 = vand.u32 %v3186, 4294901760
      %v3796 = vsub.f32 %v3186, %v3795
      %3797 = vmatmul.mubr.f32.gmra.mrb[0].mxu0 %v3796
      %v3798 = vpop.f32.mrb[0].mxu0
      %v3799 = vadd.f32 %v3634, %v3798
      %v3800 = vpop.f32.mrb[0].mxu0
      %3801 = vdwg.mxu0
      %3802 = vmatprep.subr.mxu0 0.0
      %v3803 = vand.u32 %v3188, 4294901760
      %3804 = vmatpush1.msra.mxu0 %v3803
      %3805 = vmatprep.subr.mxu0 0.0
      %v3806 = vand.u32 %v3189, 4294901760
      %3807 = vmatpush1.msra.mxu0 %v3806
      %3808 = vmatprep.subr.mxu0 0.0
      %v3809 = vand.u32 %v3190, 4294901760
      %3810 = vmatpush1.msra.mxu0 %v3809
      %3811 = vmatprep.subr.mxu0 0.0
      %v3812 = vand.u32 %v3191, 4294901760
      %3813 = vmatpush1.msra.mxu0 %v3812
      %3814 = vmatprep.subr.mxu0 0.0
      %v3815 = vand.u32 %v3192, 4294901760
      %3816 = vmatpush1.msra.mxu0 %v3815
      %3817 = vmatprep.subr.mxu0 0.0
      %v3818 = vand.u32 %v3193, 4294901760
      %3819 = vmatpush1.msra.mxu0 %v3818
      %3820 = vmatprep.subr.mxu0 0.0
      %v3821 = vand.u32 %v3194, 4294901760
      %3822 = vmatpush1.msra.mxu0 %v3821
      %3823 = vmatprep.subr.mxu0 0.0
      %v3824 = vand.u32 %v3195, 4294901760
      %3825 = vmatpush1.msra.mxu0 %v3824
      %3826 = vmatprep.subr.mxu0 0.0
      %v3827 = vand.u32 %v3196, 4294901760
      %3828 = vmatpush1.msra.mxu0 %v3827
      %3829 = vmatprep.subr.mxu0 0.0
      %v3830 = vand.u32 %v3197, 4294901760
      %3831 = vmatpush1.msra.mxu0 %v3830
      %3832 = vmatprep.subr.mxu0 0.0
      %v3833 = vand.u32 %v3198, 4294901760
      %3834 = vmatpush1.msra.mxu0 %v3833
      %3835 = vmatprep.subr.mxu0 0.0
      %v3836 = vand.u32 %v3199, 4294901760
      %3837 = vmatpush1.msra.mxu0 %v3836
      %3838 = vmatprep.subr.mxu0 0.0
      %v3839 = vand.u32 %v3200, 4294901760
      %3840 = vmatpush1.msra.mxu0 %v3839
      %3841 = vmatprep.subr.mxu0 0.0
      %v3842 = vand.u32 %v3201, 4294901760
      %3843 = vmatpush1.msra.mxu0 %v3842
      %3844 = vmatprep.subr.mxu0 0.0
      %v3845 = vand.u32 %v3202, 4294901760
      %3846 = vmatpush1.msra.mxu0 %v3845
      %3847 = vmatprep.subr.mxu0 0.0
      %v3848 = vand.u32 %v3203, 4294901760
      %3849 = vmatpush1.msra.mxu0 %v3848
      %3850 = vmatprep.subr.mxu0 0.0
      %v3851 = vand.u32 %v3204, 4294901760
      %3852 = vmatpush1.msra.mxu0 %v3851
      %3853 = vmatprep.subr.mxu0 0.0
      %v3854 = vand.u32 %v3205, 4294901760
      %3855 = vmatpush1.msra.mxu0 %v3854
      %3856 = vmatprep.subr.mxu0 0.0
      %v3857 = vand.u32 %v3206, 4294901760
      %3858 = vmatpush1.msra.mxu0 %v3857
      %3859 = vmatprep.subr.mxu0 0.0
      %v3860 = vand.u32 %v3207, 4294901760
      %3861 = vmatpush1.msra.mxu0 %v3860
      %3862 = vmatprep.subr.mxu0 0.0
      %v3863 = vand.u32 %v3208, 4294901760
      %3864 = vmatpush1.msra.mxu0 %v3863
      %3865 = vmatprep.subr.mxu0 0.0
      %v3866 = vand.u32 %v3209, 4294901760
      %3867 = vmatpush1.msra.mxu0 %v3866
      %3868 = vmatprep.subr.mxu0 0.0
      %v3869 = vand.u32 %v3210, 4294901760
      %3870 = vmatpush1.msra.mxu0 %v3869
      %3871 = vmatprep.subr.mxu0 0.0
      %v3872 = vand.u32 %v3211, 4294901760
      %3873 = vmatpush1.msra.mxu0 %v3872
      %3874 = vmatprep.subr.mxu0 0.0
      %v3875 = vand.u32 %v3212, 4294901760
      %3876 = vmatpush1.msra.mxu0 %v3875
      %3877 = vmatprep.subr.mxu0 0.0
      %v3878 = vand.u32 %v3213, 4294901760
      %3879 = vmatpush1.msra.mxu0 %v3878
      %3880 = vmatprep.subr.mxu0 0.0
      %v3881 = vand.u32 %v3214, 4294901760
      %3882 = vmatpush1.msra.mxu0 %v3881
      %3883 = vmatprep.subr.mxu0 0.0
      %v3884 = vand.u32 %v3215, 4294901760
      %3885 = vmatpush1.msra.mxu0 %v3884
      %3886 = vmatprep.subr.mxu0 0.0
      %v3887 = vand.u32 %v3216, 4294901760
      %3888 = vmatpush1.msra.mxu0 %v3887
      %3889 = vmatprep.subr.mxu0 0.0
      %v3890 = vand.u32 %v3217, 4294901760
      %3891 = vmatpush1.msra.mxu0 %v3890
      %3892 = vmatprep.subr.mxu0 0.0
      %v3893 = vand.u32 %v3218, 4294901760
      %3894 = vmatpush1.msra.mxu0 %v3893
      %3895 = vmatprep.subr.mxu0 0.0
      %v3896 = vand.u32 %v3219, 4294901760
      %3897 = vmatpush1.msra.mxu0 %v3896
      %v3898 = vand.u32 %v3181, 4294901760
      %v3899 = vsub.f32 %v3181, %v3898
      %v3900 = vand.u32 %v3899, 4294901760
      %3901 = vmatprep.mubr.f32.mxu0 %v3900
      %v3902 = vand.u32 %v3180, 4294901760
      %v3903 = vsub.f32 %v3180, %v3902
      %v3904 = vand.u32 %v3903, 4294901760
      %3905 = vmatmul.mubr.f32.gmra.mrb[0].mxu0 %v3904
      %v3906 = vpop.f32.mrb[0].mxu0
      %v3907 = vadd.f32 %v3772, %v3906
      %v3908 = vpop.f32.mrb[0].mxu0
      %v3909 = vand.u32 %v3183, 4294901760
      %v3910 = vsub.f32 %v3183, %v3909
      %v3911 = vand.u32 %v3910, 4294901760
      %3912 = vmatprep.mubr.f32.mxu0 %v3911
      %v3913 = vand.u32 %v3182, 4294901760
      %v3914 = vsub.f32 %v3182, %v3913
      %v3915 = vand.u32 %v3914, 4294901760
      %3916 = vmatmul.mubr.f32.gmra.mrb[0].mxu0 %v3915
      %v3917 = vpop.f32.mrb[0].mxu0
      %v3918 = vadd.f32 %v3781, %v3917
      %v3919 = vpop.f32.mrb[0].mxu0
      %v3920 = vand.u32 %v3185, 4294901760
      %v3921 = vsub.f32 %v3185, %v3920
      %v3922 = vand.u32 %v3921, 4294901760
      %3923 = vmatprep.mubr.f32.mxu0 %v3922
      %v3924 = vand.u32 %v3184, 4294901760
      %v3925 = vsub.f32 %v3184, %v3924
      %v3926 = vand.u32 %v3925, 4294901760
      %3927 = vmatmul.mubr.f32.gmra.mrb[0].mxu0 %v3926
      %v3928 = vpop.f32.mrb[0].mxu0
      %v3929 = vadd.f32 %v3790, %v3928
      %v3930 = vpop.f32.mrb[0].mxu0
      %v3931 = vand.u32 %v3187, 4294901760
      %v3932 = vsub.f32 %v3187, %v3931
      %v3933 = vand.u32 %v3932, 4294901760
      %3934 = vmatprep.mubr.f32.mxu0 %v3933
      %v3935 = vand.u32 %v3186, 4294901760
      %v3936 = vsub.f32 %v3186, %v3935
      %v3937 = vand.u32 %v3936, 4294901760
      %3938 = vmatmul.mubr.f32.gmra.mrb[0].mxu0 %v3937
      %v3939 = vpop.f32.mrb[0].mxu0
      %v3940 = vadd.f32 %v3799, %v3939
      %v3941 = vpop.f32.mrb[0].mxu0
      %3942 = vdwg.mxu0
      %3943 = vmatprep.subr.mxu0 0.0
      %v3944 = vand.u32 %v3188, 4294901760
      %v3945 = vsub.f32 %v3188, %v3944
      %v3946 = vand.u32 %v3945, 4294901760
      %3947 = vmatpush1.msra.mxu0 %v3946
      %3948 = vmatprep.subr.mxu0 0.0
      %v3949 = vand.u32 %v3189, 4294901760
      %v3950 = vsub.f32 %v3189, %v3949
      %v3951 = vand.u32 %v3950, 4294901760
      %3952 = vmatpush1.msra.mxu0 %v3951
      %3953 = vmatprep.subr.mxu0 0.0
      %v3954 = vand.u32 %v3190, 4294901760
      %v3955 = vsub.f32 %v3190, %v3954
      %v3956 = vand.u32 %v3955, 4294901760
      %3957 = vmatpush1.msra.mxu0 %v3956
      %3958 = vmatprep.subr.mxu0 0.0
      %v3959 = vand.u32 %v3191, 4294901760
      %v3960 = vsub.f32 %v3191, %v3959
      %v3961 = vand.u32 %v3960, 4294901760
      %3962 = vmatpush1.msra.mxu0 %v3961
      %3963 = vmatprep.subr.mxu0 0.0
      %v3964 = vand.u32 %v3192, 4294901760
      %v3965 = vsub.f32 %v3192, %v3964
      %v3966 = vand.u32 %v3965, 4294901760
      %3967 = vmatpush1.msra.mxu0 %v3966
      %3968 = vmatprep.subr.mxu0 0.0
      %v3969 = vand.u32 %v3193, 4294901760
      %v3970 = vsub.f32 %v3193, %v3969
      %v3971 = vand.u32 %v3970, 4294901760
      %3972 = vmatpush1.msra.mxu0 %v3971
      %3973 = vmatprep.subr.mxu0 0.0
      %v3974 = vand.u32 %v3194, 4294901760
      %v3975 = vsub.f32 %v3194, %v3974
      %v3976 = vand.u32 %v3975, 4294901760
      %3977 = vmatpush1.msra.mxu0 %v3976
      %3978 = vmatprep.subr.mxu0 0.0
      %v3979 = vand.u32 %v3195, 4294901760
      %v3980 = vsub.f32 %v3195, %v3979
      %v3981 = vand.u32 %v3980, 4294901760
      %3982 = vmatpush1.msra.mxu0 %v3981
      %3983 = vmatprep.subr.mxu0 0.0
      %v3984 = vand.u32 %v3196, 4294901760
      %v3985 = vsub.f32 %v3196, %v3984
      %v3986 = vand.u32 %v3985, 4294901760
      %3987 = vmatpush1.msra.mxu0 %v3986
      %3988 = vmatprep.subr.mxu0 0.0
      %v3989 = vand.u32 %v3197, 4294901760
      %v3990 = vsub.f32 %v3197, %v3989
      %v3991 = vand.u32 %v3990, 4294901760
      %3992 = vmatpush1.msra.mxu0 %v3991
      %3993 = vmatprep.subr.mxu0 0.0
      %v3994 = vand.u32 %v3198, 4294901760
      %v3995 = vsub.f32 %v3198, %v3994
      %v3996 = vand.u32 %v3995, 4294901760
      %3997 = vmatpush1.msra.mxu0 %v3996
      %3998 = vmatprep.subr.mxu0 0.0
      %v3999 = vand.u32 %v3199, 4294901760
      %v4000 = vsub.f32 %v3199, %v3999
      %v4001 = vand.u32 %v4000, 4294901760
      %4002 = vmatpush1.msra.mxu0 %v4001
      %4003 = vmatprep.subr.mxu0 0.0
      %v4004 = vand.u32 %v3200, 4294901760
      %v4005 = vsub.f32 %v3200, %v4004
      %v4006 = vand.u32 %v4005, 4294901760
      %4007 = vmatpush1.msra.mxu0 %v4006
      %4008 = vmatprep.subr.mxu0 0.0
      %v4009 = vand.u32 %v3201, 4294901760
      %v4010 = vsub.f32 %v3201, %v4009
      %v4011 = vand.u32 %v4010, 4294901760
      %4012 = vmatpush1.msra.mxu0 %v4011
      %4013 = vmatprep.subr.mxu0 0.0
      %v4014 = vand.u32 %v3202, 4294901760
      %v4015 = vsub.f32 %v3202, %v4014
      %v4016 = vand.u32 %v4015, 4294901760
      %4017 = vmatpush1.msra.mxu0 %v4016
      %4018 = vmatprep.subr.mxu0 0.0
      %v4019 = vand.u32 %v3203, 4294901760
      %v4020 = vsub.f32 %v3203, %v4019
      %v4021 = vand.u32 %v4020, 4294901760
      %4022 = vmatpush1.msra.mxu0 %v4021
      %4023 = vmatprep.subr.mxu0 0.0
      %v4024 = vand.u32 %v3204, 4294901760
      %v4025 = vsub.f32 %v3204, %v4024
      %v4026 = vand.u32 %v4025, 4294901760
      %4027 = vmatpush1.msra.mxu0 %v4026
      %4028 = vmatprep.subr.mxu0 0.0
      %v4029 = vand.u32 %v3205, 4294901760
      %v4030 = vsub.f32 %v3205, %v4029
      %v4031 = vand.u32 %v4030, 4294901760
      %4032 = vmatpush1.msra.mxu0 %v4031
      %4033 = vmatprep.subr.mxu0 0.0
      %v4034 = vand.u32 %v3206, 4294901760
      %v4035 = vsub.f32 %v3206, %v4034
      %v4036 = vand.u32 %v4035, 4294901760
      %4037 = vmatpush1.msra.mxu0 %v4036
      %4038 = vmatprep.subr.mxu0 0.0
      %v4039 = vand.u32 %v3207, 4294901760
      %v4040 = vsub.f32 %v3207, %v4039
      %v4041 = vand.u32 %v4040, 4294901760
      %4042 = vmatpush1.msra.mxu0 %v4041
      %4043 = vmatprep.subr.mxu0 0.0
      %v4044 = vand.u32 %v3208, 4294901760
      %v4045 = vsub.f32 %v3208, %v4044
      %v4046 = vand.u32 %v4045, 4294901760
      %4047 = vmatpush1.msra.mxu0 %v4046
      %4048 = vmatprep.subr.mxu0 0.0
      %v4049 = vand.u32 %v3209, 4294901760
      %v4050 = vsub.f32 %v3209, %v4049
      %v4051 = vand.u32 %v4050, 4294901760
      %4052 = vmatpush1.msra.mxu0 %v4051
      %4053 = vmatprep.subr.mxu0 0.0
      %v4054 = vand.u32 %v3210, 4294901760
      %v4055 = vsub.f32 %v3210, %v4054
      %v4056 = vand.u32 %v4055, 4294901760
      %4057 = vmatpush1.msra.mxu0 %v4056
      %4058 = vmatprep.subr.mxu0 0.0
      %v4059 = vand.u32 %v3211, 4294901760
      %v4060 = vsub.f32 %v3211, %v4059
      %v4061 = vand.u32 %v4060, 4294901760
      %4062 = vmatpush1.msra.mxu0 %v4061
      %4063 = vmatprep.subr.mxu0 0.0
      %v4064 = vand.u32 %v3212, 4294901760
      %v4065 = vsub.f32 %v3212, %v4064
      %v4066 = vand.u32 %v4065, 4294901760
      %4067 = vmatpush1.msra.mxu0 %v4066
      %4068 = vmatprep.subr.mxu0 0.0
      %v4069 = vand.u32 %v3213, 4294901760
      %v4070 = vsub.f32 %v3213, %v4069
      %v4071 = vand.u32 %v4070, 4294901760
      %4072 = vmatpush1.msra.mxu0 %v4071
      %4073 = vmatprep.subr.mxu0 0.0
      %v4074 = vand.u32 %v3214, 4294901760
      %v4075 = vsub.f32 %v3214, %v4074
      %v4076 = vand.u32 %v4075, 4294901760
      %4077 = vmatpush1.msra.mxu0 %v4076
      %4078 = vmatprep.subr.mxu0 0.0
      %v4079 = vand.u32 %v3215, 4294901760
      %v4080 = vsub.f32 %v3215, %v4079
      %v4081 = vand.u32 %v4080, 4294901760
      %4082 = vmatpush1.msra.mxu0 %v4081
      %4083 = vmatprep.subr.mxu0 0.0
      %v4084 = vand.u32 %v3216, 4294901760
      %v4085 = vsub.f32 %v3216, %v4084
      %v4086 = vand.u32 %v4085, 4294901760
      %4087 = vmatpush1.msra.mxu0 %v4086
      %4088 = vmatprep.subr.mxu0 0.0
      %v4089 = vand.u32 %v3217, 4294901760
      %v4090 = vsub.f32 %v3217, %v4089
      %v4091 = vand.u32 %v4090, 4294901760
      %4092 = vmatpush1.msra.mxu0 %v4091
      %4093 = vmatprep.subr.mxu0 0.0
      %v4094 = vand.u32 %v3218, 4294901760
      %v4095 = vsub.f32 %v3218, %v4094
      %v4096 = vand.u32 %v4095, 4294901760
      %4097 = vmatpush1.msra.mxu0 %v4096
      %4098 = vmatprep.subr.mxu0 0.0
      %v4099 = vand.u32 %v3219, 4294901760
      %v4100 = vsub.f32 %v3219, %v4099
      %v4101 = vand.u32 %v4100, 4294901760
      %4102 = vmatpush1.msra.mxu0 %v4101
      %v4103 = vand.u32 %v3181, 4294901760
      %4104 = vmatprep.mubr.f32.mxu0 %v4103
      %v4105 = vand.u32 %v3180, 4294901760
      %4106 = vmatmul.mubr.f32.gmra.mrb[0].mxu0 %v4105
      %v4107 = vpop.f32.mrb[0].mxu0
      %v4108 = vadd.f32 %v3907, %v4107
      %v4109 = vpop.f32.mrb[0].mxu0
      %v4110 = vand.u32 %v3183, 4294901760
      %4111 = vmatprep.mubr.f32.mxu0 %v4110
      %v4112 = vand.u32 %v3182, 4294901760
      %4113 = vmatmul.mubr.f32.gmra.mrb[0].mxu0 %v4112
      %v4114 = vpop.f32.mrb[0].mxu0
      %v4115 = vadd.f32 %v3918, %v4114
      %v4116 = vpop.f32.mrb[0].mxu0
      %v4117 = vand.u32 %v3185, 4294901760
      %4118 = vmatprep.mubr.f32.mxu0 %v4117
      %v4119 = vand.u32 %v3184, 4294901760
      %4120 = vmatmul.mubr.f32.gmra.mrb[0].mxu0 %v4119
      %v4121 = vpop.f32.mrb[0].mxu0
      %v4122 = vadd.f32 %v3929, %v4121
      %v4123 = vpop.f32.mrb[0].mxu0
      %v4124 = vand.u32 %v3187, 4294901760
      %4125 = vmatprep.mubr.f32.mxu0 %v4124
      %v4126 = vand.u32 %v3186, 4294901760
      %4127 = vmatmul.mubr.f32.gmra.mrb[0].mxu0 %v4126
      %v4128 = vpop.f32.mrb[0].mxu0
      %v4129 = vadd.f32 %v3940, %v4128
      %v4130 = vpop.f32.mrb[0].mxu0
      %4131 = vdwg.mxu0
      %4132 = vmatprep.subr.mxu0 0.0
      %v4133 = vand.u32 %v3188, 4294901760
      %4134 = vmatpush1.msra.mxu0 %v4133
      %4135 = vmatprep.subr.mxu0 0.0
      %v4136 = vand.u32 %v3189, 4294901760
      %4137 = vmatpush1.msra.mxu0 %v4136
      %4138 = vmatprep.subr.mxu0 0.0
      %v4139 = vand.u32 %v3190, 4294901760
      %4140 = vmatpush1.msra.mxu0 %v4139
      %4141 = vmatprep.subr.mxu0 0.0
      %v4142 = vand.u32 %v3191, 4294901760
      %4143 = vmatpush1.msra.mxu0 %v4142
      %4144 = vmatprep.subr.mxu0 0.0
      %v4145 = vand.u32 %v3192, 4294901760
      %4146 = vmatpush1.msra.mxu0 %v4145
      %4147 = vmatprep.subr.mxu0 0.0
      %v4148 = vand.u32 %v3193, 4294901760
      %4149 = vmatpush1.msra.mxu0 %v4148
      %4150 = vmatprep.subr.mxu0 0.0
      %v4151 = vand.u32 %v3194, 4294901760
      %4152 = vmatpush1.msra.mxu0 %v4151
      %4153 = vmatprep.subr.mxu0 0.0
      %v4154 = vand.u32 %v3195, 4294901760
      %4155 = vmatpush1.msra.mxu0 %v4154
      %4156 = vmatprep.subr.mxu0 0.0
      %v4157 = vand.u32 %v3196, 4294901760
      %4158 = vmatpush1.msra.mxu0 %v4157
      %4159 = vmatprep.subr.mxu0 0.0
      %v4160 = vand.u32 %v3197, 4294901760
      %4161 = vmatpush1.msra.mxu0 %v4160
      %4162 = vmatprep.subr.mxu0 0.0
      %v4163 = vand.u32 %v3198, 4294901760
      %4164 = vmatpush1.msra.mxu0 %v4163
      %4165 = vmatprep.subr.mxu0 0.0
      %v4166 = vand.u32 %v3199, 4294901760
      %4167 = vmatpush1.msra.mxu0 %v4166
      %4168 = vmatprep.subr.mxu0 0.0
      %v4169 = vand.u32 %v3200, 4294901760
      %4170 = vmatpush1.msra.mxu0 %v4169
      %4171 = vmatprep.subr.mxu0 0.0
      %v4172 = vand.u32 %v3201, 4294901760
      %4173 = vmatpush1.msra.mxu0 %v4172
      %4174 = vmatprep.subr.mxu0 0.0
      %v4175 = vand.u32 %v3202, 4294901760
      %4176 = vmatpush1.msra.mxu0 %v4175
      %4177 = vmatprep.subr.mxu0 0.0
      %v4178 = vand.u32 %v3203, 4294901760
      %4179 = vmatpush1.msra.mxu0 %v4178
      %4180 = vmatprep.subr.mxu0 0.0
      %v4181 = vand.u32 %v3204, 4294901760
      %4182 = vmatpush1.msra.mxu0 %v4181
      %4183 = vmatprep.subr.mxu0 0.0
      %v4184 = vand.u32 %v3205, 4294901760
      %4185 = vmatpush1.msra.mxu0 %v4184
      %4186 = vmatprep.subr.mxu0 0.0
      %v4187 = vand.u32 %v3206, 4294901760
      %4188 = vmatpush1.msra.mxu0 %v4187
      %4189 = vmatprep.subr.mxu0 0.0
      %v4190 = vand.u32 %v3207, 4294901760
      %4191 = vmatpush1.msra.mxu0 %v4190
      %4192 = vmatprep.subr.mxu0 0.0
      %v4193 = vand.u32 %v3208, 4294901760
      %4194 = vmatpush1.msra.mxu0 %v4193
      %4195 = vmatprep.subr.mxu0 0.0
      %v4196 = vand.u32 %v3209, 4294901760
      %4197 = vmatpush1.msra.mxu0 %v4196
      %4198 = vmatprep.subr.mxu0 0.0
      %v4199 = vand.u32 %v3210, 4294901760
      %4200 = vmatpush1.msra.mxu0 %v4199
      %4201 = vmatprep.subr.mxu0 0.0
      %v4202 = vand.u32 %v3211, 4294901760
      %4203 = vmatpush1.msra.mxu0 %v4202
      %4204 = vmatprep.subr.mxu0 0.0
      %v4205 = vand.u32 %v3212, 4294901760
      %4206 = vmatpush1.msra.mxu0 %v4205
      %4207 = vmatprep.subr.mxu0 0.0
      %v4208 = vand.u32 %v3213, 4294901760
      %4209 = vmatpush1.msra.mxu0 %v4208
      %4210 = vmatprep.subr.mxu0 0.0
      %v4211 = vand.u32 %v3214, 4294901760
      %4212 = vmatpush1.msra.mxu0 %v4211
      %4213 = vmatprep.subr.mxu0 0.0
      %v4214 = vand.u32 %v3215, 4294901760
      %4215 = vmatpush1.msra.mxu0 %v4214
      %4216 = vmatprep.subr.mxu0 0.0
      %v4217 = vand.u32 %v3216, 4294901760
      %4218 = vmatpush1.msra.mxu0 %v4217
      %4219 = vmatprep.subr.mxu0 0.0
      %v4220 = vand.u32 %v3217, 4294901760
      %4221 = vmatpush1.msra.mxu0 %v4220
      %4222 = vmatprep.subr.mxu0 0.0
      %v4223 = vand.u32 %v3218, 4294901760
      %4224 = vmatpush1.msra.mxu0 %v4223
      %4225 = vmatprep.subr.mxu0 0.0
      %v4226 = vand.u32 %v3219, 4294901760
      %4227 = vmatpush1.msra.mxu0 %v4226
      %v4228 = vand.u32 %v3181, 4294901760
      %4229 = vmatprep.mubr.f32.mxu0 %v4228
      %v4230 = vand.u32 %v3180, 4294901760
      %4231 = vmatmul.mubr.f32.gmra.mrb[0].mxu0 %v4230
      %v4232 = vpop.f32.mrb[0].mxu0
      %v4233 = vadd.f32 %v4108, %v4232
      %v4234 = vpop.f32.mrb[0].mxu0
      %v4235 = vand.u32 %v3183, 4294901760
      %4236 = vmatprep.mubr.f32.mxu0 %v4235
      %v4237 = vand.u32 %v3182, 4294901760
      %4238 = vmatmul.mubr.f32.gmra.mrb[0].mxu0 %v4237
      %v4239 = vpop.f32.mrb[0].mxu0
      %v4240 = vadd.f32 %v4115, %v4239
      %v4241 = vpop.f32.mrb[0].mxu0
      %v4242 = vand.u32 %v3185, 4294901760
      %4243 = vmatprep.mubr.f32.mxu0 %v4242
      %v4244 = vand.u32 %v3184, 4294901760
      %4245 = vmatmul.mubr.f32.gmra.mrb[0].mxu0 %v4244
      %v4246 = vpop.f32.mrb[0].mxu0
      %v4247 = vadd.f32 %v4122, %v4246
      %v4248 = vpop.f32.mrb[0].mxu0
      %v4249 = vand.u32 %v3187, 4294901760
      %4250 = vmatprep.mubr.f32.mxu0 %v4249
      %v4251 = vand.u32 %v3186, 4294901760
      %4252 = vmatmul.mubr.f32.gmra.mrb[0].mxu0 %v4251
      %v4253 = vpop.f32.mrb[0].mxu0
      %v4254 = vadd.f32 %v4129, %v4253
      %v4255 = vpop.f32.mrb[0].mxu0
      %4256 = vdwg.mxu0
      %v4261 = vcombine.high %v4233, %v4233
      %v4262 = vcombine.high %v4240, %v4240
      %v4263 = vcombine.high %v4247, %v4247
      %v4264 = vcombine.high %v4254, %v4254
      %vm4269 = vcmask 27648
      %v4270 = vsel %vm4269, %v4233, -inf
      %v4271 = vrot.slane %v4270, 4
      %v4272 = vmax.f32 %v4270, %v4271
      %v4273 = vrot.slane %v4272, 2
      %v4274 = vmax.f32 %v4272, %v4273
      %v4275 = vrot.slane %v4274, 1
      %v4276 = vmax.f32 %v4274, %v4275
      %v4277 = vsel %vm4269, %v4261, -inf
      %v4278 = vrot.slane %v4277, 4
      %v4279 = vmax.f32 %v4277, %v4278
      %v4280 = vrot.slane %v4279, 2
      %v4281 = vmax.f32 %v4279, %v4280
      %v4282 = vrot.slane %v4281, 1
      %v4283 = vmax.f32 %v4281, %v4282
      %v4284 = vsel %vm4269, %v4240, -inf
      %v4285 = vrot.slane %v4284, 4
      %v4286 = vmax.f32 %v4284, %v4285
      %v4287 = vrot.slane %v4286, 2
      %v4288 = vmax.f32 %v4286, %v4287
      %v4289 = vrot.slane %v4288, 1
      %v4290 = vmax.f32 %v4288, %v4289
      %v4291 = vsel %vm4269, %v4262, -inf
      %v4292 = vrot.slane %v4291, 4
      %v4293 = vmax.f32 %v4291, %v4292
      %v4294 = vrot.slane %v4293, 2
      %v4295 = vmax.f32 %v4293, %v4294
      %v4296 = vrot.slane %v4295, 1
      %v4297 = vmax.f32 %v4295, %v4296
      %v4298 = vsel %vm4269, %v4247, -inf
      %v4299 = vrot.slane %v4298, 4
      %v4300 = vmax.f32 %v4298, %v4299
      %v4301 = vrot.slane %v4300, 2
      %v4302 = vmax.f32 %v4300, %v4301
      %v4303 = vrot.slane %v4302, 1
      %v4304 = vmax.f32 %v4302, %v4303
      %v4305 = vsel %vm4269, %v4263, -inf
      %v4306 = vrot.slane %v4305, 4
      %v4307 = vmax.f32 %v4305, %v4306
      %v4308 = vrot.slane %v4307, 2
      %v4309 = vmax.f32 %v4307, %v4308
      %v4310 = vrot.slane %v4309, 1
      %v4311 = vmax.f32 %v4309, %v4310
      %v4312 = vsel %vm4269, %v4254, -inf
      %v4313 = vrot.slane %v4312, 4
      %v4314 = vmax.f32 %v4312, %v4313
      %v4315 = vrot.slane %v4314, 2
      %v4316 = vmax.f32 %v4314, %v4315
      %v4317 = vrot.slane %v4316, 1
      %v4318 = vmax.f32 %v4316, %v4317
      %v4319 = vsel %vm4269, %v4264, -inf
      %v4320 = vrot.slane %v4319, 4
      %v4321 = vmax.f32 %v4319, %v4320
      %v4322 = vrot.slane %v4321, 2
      %v4323 = vmax.f32 %v4321, %v4322
      %v4324 = vrot.slane %v4323, 1
      %v4325 = vmax.f32 %v4323, %v4324
      %v4326 = vsub.f32 %v4233, %v4276
      %v4327 = vsub.f32 %v4261, %v4283
      %v4328 = vsub.f32 %v4240, %v4290
      %v4329 = vsub.f32 %v4262, %v4297
      %v4330 = vsub.f32 %v4247, %v4304
      %v4331 = vsub.f32 %v4263, %v4311
      %v4332 = vsub.f32 %v4254, %v4318
      %v4333 = vsub.f32 %v4264, %v4325
      %v4334 = vmul.f32 %v4326, 1.442695
      %v4335 = vpow.pop %v4334
      %v4336 = vmul.f32 %v4327, 1.442695
      %v4337 = vpow.pop %v4336
      %v4338 = vmul.f32 %v4328, 1.442695
      %v4339 = vpow.pop %v4338
      %v4340 = vmul.f32 %v4329, 1.442695
      %v4341 = vpow.pop %v4340
      %v4342 = vmul.f32 %v4330, 1.442695
      %v4343 = vpow.pop %v4342
      %v4344 = vmul.f32 %v4331, 1.442695
      %v4345 = vpow.pop %v4344
      %v4346 = vmul.f32 %v4332, 1.442695
      %v4347 = vpow.pop %v4346
      %v4348 = vmul.f32 %v4333, 1.442695
      %v4349 = vpow.pop %v4348
      %v4350 = vsel %vm4269, %v4335, 0.0
      %v4351 = vrot.slane %v4350, 4
      %v4352 = vadd.f32 %v4350, %v4351
      %v4353 = vrot.slane %v4352, 2
      %v4354 = vadd.f32 %v4352, %v4353
      %v4355 = vrot.slane %v4354, 1
      %v4356 = vadd.f32 %v4354, %v4355
      %v4357 = vsel %vm4269, %v4337, 0.0
      %v4358 = vrot.slane %v4357, 4
      %v4359 = vadd.f32 %v4357, %v4358
      %v4360 = vrot.slane %v4359, 2
      %v4361 = vadd.f32 %v4359, %v4360
      %v4362 = vrot.slane %v4361, 1
      %v4363 = vadd.f32 %v4361, %v4362
      %v4364 = vsel %vm4269, %v4339, 0.0
      %v4365 = vrot.slane %v4364, 4
      %v4366 = vadd.f32 %v4364, %v4365
      %v4367 = vrot.slane %v4366, 2
      %v4368 = vadd.f32 %v4366, %v4367
      %v4369 = vrot.slane %v4368, 1
      %v4370 = vadd.f32 %v4368, %v4369
      %v4371 = vsel %vm4269, %v4341, 0.0
      %v4372 = vrot.slane %v4371, 4
      %v4373 = vadd.f32 %v4371, %v4372
      %v4374 = vrot.slane %v4373, 2
      %v4375 = vadd.f32 %v4373, %v4374
      %v4376 = vrot.slane %v4375, 1
      %v4377 = vadd.f32 %v4375, %v4376
      %v4378 = vsel %vm4269, %v4343, 0.0
      %v4379 = vrot.slane %v4378, 4
      %v4380 = vadd.f32 %v4378, %v4379
      %v4381 = vrot.slane %v4380, 2
      %v4382 = vadd.f32 %v4380, %v4381
      %v4383 = vrot.slane %v4382, 1
      %v4384 = vadd.f32 %v4382, %v4383
      %v4385 = vsel %vm4269, %v4345, 0.0
      %v4386 = vrot.slane %v4385, 4
      %v4387 = vadd.f32 %v4385, %v4386
      %v4388 = vrot.slane %v4387, 2
      %v4389 = vadd.f32 %v4387, %v4388
      %v4390 = vrot.slane %v4389, 1
      %v4391 = vadd.f32 %v4389, %v4390
      %v4392 = vsel %vm4269, %v4347, 0.0
      %v4393 = vrot.slane %v4392, 4
      %v4394 = vadd.f32 %v4392, %v4393
      %v4395 = vrot.slane %v4394, 2
      %v4396 = vadd.f32 %v4394, %v4395
      %v4397 = vrot.slane %v4396, 1
      %v4398 = vadd.f32 %v4396, %v4397
      %v4399 = vsel %vm4269, %v4349, 0.0
      %v4400 = vrot.slane %v4399, 4
      %v4401 = vadd.f32 %v4399, %v4400
      %v4402 = vrot.slane %v4401, 2
      %v4403 = vadd.f32 %v4401, %v4402
      %v4404 = vrot.slane %v4403, 1
      %v4405 = vadd.f32 %v4403, %v4404
      %v4406 = vrcp.pop %v4356
      %v4407 = vrcp.pop %v4363
      %v4408 = vrcp.pop %v4370
      %v4409 = vrcp.pop %v4377
      %v4410 = vrcp.pop %v4384
      %v4411 = vrcp.pop %v4391
      %v4412 = vrcp.pop %v4398
      %v4413 = vrcp.pop %v4405
      %v4414 = vmul.f32 %v4335, %v4406
      %v4415 = vmul.f32 %v4337, %v4407
      %v4416 = vmul.f32 %v4339, %v4408
      %v4417 = vmul.f32 %v4341, %v4409
      %v4418 = vmul.f32 %v4343, %v4410
      %v4419 = vmul.f32 %v4345, %v4411
      %v4420 = vmul.f32 %v4347, %v4412
      %v4421 = vmul.f32 %v4349, %v4413
      %v4422 = vlaneseq
      %v4423 = vshrl.u32 %v4422, 7
      %v4424 = vsub.s32 0, %v4423
      %v4425 = vrot.slane %v4414, %v4424
      %4427 = vbcast.lane.b32.xlu0 %v4425, 256
      %v4428 = vpop.permute.xlu0 %4427
      %v4429 = vlaneseq
      %v4430 = vshrl.u32 %v4429, 7
      %v4431 = vsub.s32 1, %v4430
      %v4432 = vrot.slane %v4414, %v4431
      %4434 = vbcast.lane.b32.xlu0 %v4432, 256
      %v4435 = vpop.permute.xlu0 %4434
      %v4436 = vlaneseq
      %v4437 = vshrl.u32 %v4436, 7
      %v4438 = vsub.s32 2, %v4437
      %v4439 = vrot.slane %v4414, %v4438
      %4441 = vbcast.lane.b32.xlu0 %v4439, 256
      %v4442 = vpop.permute.xlu0 %4441
      %v4443 = vlaneseq
      %v4444 = vshrl.u32 %v4443, 7
      %v4445 = vsub.s32 3, %v4444
      %v4446 = vrot.slane %v4414, %v4445
      %4448 = vbcast.lane.b32.xlu0 %v4446, 256
      %v4449 = vpop.permute.xlu0 %4448
      %v4450 = vlaneseq
      %v4451 = vshrl.u32 %v4450, 7
      %v4452 = vsub.s32 0, %v4451
      %v4453 = vrot.slane %v4415, %v4452
      %4455 = vbcast.lane.b32.xlu0 %v4453, 256
      %v4456 = vpop.permute.xlu0 %4455
      %v4457 = vlaneseq
      %v4458 = vshrl.u32 %v4457, 7
      %v4459 = vsub.s32 1, %v4458
      %v4460 = vrot.slane %v4415, %v4459
      %4462 = vbcast.lane.b32.xlu0 %v4460, 256
      %v4463 = vpop.permute.xlu0 %4462
      %v4464 = vlaneseq
      %v4465 = vshrl.u32 %v4464, 7
      %v4466 = vsub.s32 2, %v4465
      %v4467 = vrot.slane %v4415, %v4466
      %4469 = vbcast.lane.b32.xlu0 %v4467, 256
      %v4470 = vpop.permute.xlu0 %4469
      %v4471 = vlaneseq
      %v4472 = vshrl.u32 %v4471, 7
      %v4473 = vsub.s32 3, %v4472
      %v4474 = vrot.slane %v4415, %v4473
      %4476 = vbcast.lane.b32.xlu0 %v4474, 256
      %v4477 = vpop.permute.xlu0 %4476
      %v4478 = vlaneseq
      %v4479 = vshrl.u32 %v4478, 7
      %v4480 = vsub.s32 0, %v4479
      %v4481 = vrot.slane %v4416, %v4480
      %4483 = vbcast.lane.b32.xlu0 %v4481, 256
      %v4484 = vpop.permute.xlu0 %4483
      %v4485 = vlaneseq
      %v4486 = vshrl.u32 %v4485, 7
      %v4487 = vsub.s32 1, %v4486
      %v4488 = vrot.slane %v4416, %v4487
      %4490 = vbcast.lane.b32.xlu0 %v4488, 256
      %v4491 = vpop.permute.xlu0 %4490
      %v4492 = vlaneseq
      %v4493 = vshrl.u32 %v4492, 7
      %v4494 = vsub.s32 2, %v4493
      %v4495 = vrot.slane %v4416, %v4494
      %4497 = vbcast.lane.b32.xlu0 %v4495, 256
      %v4498 = vpop.permute.xlu0 %4497
      %v4499 = vlaneseq
      %v4500 = vshrl.u32 %v4499, 7
      %v4501 = vsub.s32 3, %v4500
      %v4502 = vrot.slane %v4416, %v4501
      %4504 = vbcast.lane.b32.xlu0 %v4502, 256
      %v4505 = vpop.permute.xlu0 %4504
      %v4506 = vlaneseq
      %v4507 = vshrl.u32 %v4506, 7
      %v4508 = vsub.s32 0, %v4507
      %v4509 = vrot.slane %v4417, %v4508
      %4511 = vbcast.lane.b32.xlu0 %v4509, 256
      %v4512 = vpop.permute.xlu0 %4511
      %v4513 = vlaneseq
      %v4514 = vshrl.u32 %v4513, 7
      %v4515 = vsub.s32 1, %v4514
      %v4516 = vrot.slane %v4417, %v4515
      %4518 = vbcast.lane.b32.xlu0 %v4516, 256
      %v4519 = vpop.permute.xlu0 %4518
      %v4520 = vlaneseq
      %v4521 = vshrl.u32 %v4520, 7
      %v4522 = vsub.s32 2, %v4521
      %v4523 = vrot.slane %v4417, %v4522
      %4525 = vbcast.lane.b32.xlu0 %v4523, 256
      %v4526 = vpop.permute.xlu0 %4525
      %v4527 = vlaneseq
      %v4528 = vshrl.u32 %v4527, 7
      %v4529 = vsub.s32 3, %v4528
      %v4530 = vrot.slane %v4417, %v4529
      %4532 = vbcast.lane.b32.xlu0 %v4530, 256
      %v4533 = vpop.permute.xlu0 %4532
      %v4534 = vlaneseq
      %v4535 = vshrl.u32 %v4534, 7
      %v4536 = vsub.s32 0, %v4535
      %v4537 = vrot.slane %v4418, %v4536
      %4539 = vbcast.lane.b32.xlu0 %v4537, 256
      %v4540 = vpop.permute.xlu0 %4539
      %v4541 = vlaneseq
      %v4542 = vshrl.u32 %v4541, 7
      %v4543 = vsub.s32 1, %v4542
      %v4544 = vrot.slane %v4418, %v4543
      %4546 = vbcast.lane.b32.xlu0 %v4544, 256
      %v4547 = vpop.permute.xlu0 %4546
      %v4548 = vlaneseq
      %v4549 = vshrl.u32 %v4548, 7
      %v4550 = vsub.s32 2, %v4549
      %v4551 = vrot.slane %v4418, %v4550
      %4553 = vbcast.lane.b32.xlu0 %v4551, 256
      %v4554 = vpop.permute.xlu0 %4553
      %v4555 = vlaneseq
      %v4556 = vshrl.u32 %v4555, 7
      %v4557 = vsub.s32 3, %v4556
      %v4558 = vrot.slane %v4418, %v4557
      %4560 = vbcast.lane.b32.xlu0 %v4558, 256
      %v4561 = vpop.permute.xlu0 %4560
      %v4562 = vlaneseq
      %v4563 = vshrl.u32 %v4562, 7
      %v4564 = vsub.s32 0, %v4563
      %v4565 = vrot.slane %v4419, %v4564
      %4567 = vbcast.lane.b32.xlu0 %v4565, 256
      %v4568 = vpop.permute.xlu0 %4567
      %v4569 = vlaneseq
      %v4570 = vshrl.u32 %v4569, 7
      %v4571 = vsub.s32 1, %v4570
      %v4572 = vrot.slane %v4419, %v4571
      %4574 = vbcast.lane.b32.xlu0 %v4572, 256
      %v4575 = vpop.permute.xlu0 %4574
      %v4576 = vlaneseq
      %v4577 = vshrl.u32 %v4576, 7
      %v4578 = vsub.s32 2, %v4577
      %v4579 = vrot.slane %v4419, %v4578
      %4581 = vbcast.lane.b32.xlu0 %v4579, 256
      %v4582 = vpop.permute.xlu0 %4581
      %v4583 = vlaneseq
      %v4584 = vshrl.u32 %v4583, 7
      %v4585 = vsub.s32 3, %v4584
      %v4586 = vrot.slane %v4419, %v4585
      %4588 = vbcast.lane.b32.xlu0 %v4586, 256
      %v4589 = vpop.permute.xlu0 %4588
      %v4590 = vlaneseq
      %v4591 = vshrl.u32 %v4590, 7
      %v4592 = vsub.s32 0, %v4591
      %v4593 = vrot.slane %v4420, %v4592
      %4595 = vbcast.lane.b32.xlu0 %v4593, 256
      %v4596 = vpop.permute.xlu0 %4595
      %v4597 = vlaneseq
      %v4598 = vshrl.u32 %v4597, 7
      %v4599 = vsub.s32 1, %v4598
      %v4600 = vrot.slane %v4420, %v4599
      %4602 = vbcast.lane.b32.xlu0 %v4600, 256
      %v4603 = vpop.permute.xlu0 %4602
      %v4604 = vlaneseq
      %v4605 = vshrl.u32 %v4604, 7
      %v4606 = vsub.s32 2, %v4605
      %v4607 = vrot.slane %v4420, %v4606
      %4609 = vbcast.lane.b32.xlu0 %v4607, 256
      %v4610 = vpop.permute.xlu0 %4609
      %v4611 = vlaneseq
      %v4612 = vshrl.u32 %v4611, 7
      %v4613 = vsub.s32 3, %v4612
      %v4614 = vrot.slane %v4420, %v4613
      %4616 = vbcast.lane.b32.xlu0 %v4614, 256
      %v4617 = vpop.permute.xlu0 %4616
      %v4618 = vlaneseq
      %v4619 = vshrl.u32 %v4618, 7
      %v4620 = vsub.s32 0, %v4619
      %v4621 = vrot.slane %v4421, %v4620
      %4623 = vbcast.lane.b32.xlu0 %v4621, 256
      %v4624 = vpop.permute.xlu0 %4623
      %v4625 = vlaneseq
      %v4626 = vshrl.u32 %v4625, 7
      %v4627 = vsub.s32 1, %v4626
      %v4628 = vrot.slane %v4421, %v4627
      %4630 = vbcast.lane.b32.xlu0 %v4628, 256
      %v4631 = vpop.permute.xlu0 %4630
      %v4632 = vlaneseq
      %v4633 = vshrl.u32 %v4632, 7
      %v4634 = vsub.s32 2, %v4633
      %v4635 = vrot.slane %v4421, %v4634
      %4637 = vbcast.lane.b32.xlu0 %v4635, 256
      %v4638 = vpop.permute.xlu0 %4637
      %v4639 = vlaneseq
      %v4640 = vshrl.u32 %v4639, 7
      %v4641 = vsub.s32 3, %v4640
      %v4642 = vrot.slane %v4421, %v4641
      %4644 = vbcast.lane.b32.xlu0 %v4642, 256
      %v4645 = vpop.permute.xlu0 %4644
      %v4647 = vunpack.c.l.s4 1966171168
      %v4648 = vunpack.c.0.s8 %v4647
      %v4649 = vlaneseq
      %v4650 = vshrl.u32 %v4649, 7
      %v4651 = vsub.s32 %v4648, %v4650
      %v4652 = vrot.slane %v252, %v4651
      %v4653 = vcombine.high %v4652, %v4652
      %v4655 = vunpack.c.l.s4 1966171168
      %v4656 = vunpack.c.0.s8 %v4655
      %v4657 = vlaneseq
      %v4658 = vshrl.u32 %v4657, 7
      %v4659 = vsub.s32 %v4656, %v4658
      %v4660 = vrot.slane %v4652, %v4659
      %v4662 = vunpack.c.l.s4 1966171168
      %v4663 = vunpack.c.0.s8 %v4662
      %v4664 = vlaneseq
      %v4665 = vshrl.u32 %v4664, 7
      %v4666 = vsub.s32 %v4663, %v4665
      %v4667 = vrot.slane %v4653, %v4666
      %v4668 = vcombine.high %v4660, %v4660
      %v4669 = vcombine.high %v4667, %v4667
      %v4671 = vunpack.c.l.s4 1966171168
      %v4672 = vunpack.c.0.s8 %v4671
      %v4673 = vlaneseq
      %v4674 = vshrl.u32 %v4673, 7
      %v4675 = vsub.s32 %v4672, %v4674
      %v4676 = vrot.slane %v253, %v4675
      %v4677 = vcombine.high %v4676, %v4676
      %v4679 = vunpack.c.l.s4 1966171168
      %v4680 = vunpack.c.0.s8 %v4679
      %v4681 = vlaneseq
      %v4682 = vshrl.u32 %v4681, 7
      %v4683 = vsub.s32 %v4680, %v4682
      %v4684 = vrot.slane %v4676, %v4683
      %v4686 = vunpack.c.l.s4 1966171168
      %v4687 = vunpack.c.0.s8 %v4686
      %v4688 = vlaneseq
      %v4689 = vshrl.u32 %v4688, 7
      %v4690 = vsub.s32 %v4687, %v4689
      %v4691 = vrot.slane %v4677, %v4690
      %v4692 = vcombine.high %v4684, %v4684
      %v4693 = vcombine.high %v4691, %v4691
      %v4695 = vunpack.c.l.s4 1966171168
      %v4696 = vunpack.c.0.s8 %v4695
      %v4697 = vlaneseq
      %v4698 = vshrl.u32 %v4697, 7
      %v4699 = vsub.s32 %v4696, %v4698
      %v4700 = vrot.slane %v254, %v4699
      %v4701 = vcombine.high %v4700, %v4700
      %v4703 = vunpack.c.l.s4 1966171168
      %v4704 = vunpack.c.0.s8 %v4703
      %v4705 = vlaneseq
      %v4706 = vshrl.u32 %v4705, 7
      %v4707 = vsub.s32 %v4704, %v4706
      %v4708 = vrot.slane %v4700, %v4707
      %v4710 = vunpack.c.l.s4 1966171168
      %v4711 = vunpack.c.0.s8 %v4710
      %v4712 = vlaneseq
      %v4713 = vshrl.u32 %v4712, 7
      %v4714 = vsub.s32 %v4711, %v4713
      %v4715 = vrot.slane %v4701, %v4714
      %v4716 = vcombine.high %v4708, %v4708
      %v4717 = vcombine.high %v4715, %v4715
      %v4719 = vunpack.c.l.s4 1966171168
      %v4720 = vunpack.c.0.s8 %v4719
      %v4721 = vlaneseq
      %v4722 = vshrl.u32 %v4721, 7
      %v4723 = vsub.s32 %v4720, %v4722
      %v4724 = vrot.slane %v255, %v4723
      %v4725 = vcombine.high %v4724, %v4724
      %v4727 = vunpack.c.l.s4 1966171168
      %v4728 = vunpack.c.0.s8 %v4727
      %v4729 = vlaneseq
      %v4730 = vshrl.u32 %v4729, 7
      %v4731 = vsub.s32 %v4728, %v4730
      %v4732 = vrot.slane %v4724, %v4731
      %v4734 = vunpack.c.l.s4 1966171168
      %v4735 = vunpack.c.0.s8 %v4734
      %v4736 = vlaneseq
      %v4737 = vshrl.u32 %v4736, 7
      %v4738 = vsub.s32 %v4735, %v4737
      %v4739 = vrot.slane %v4725, %v4738
      %v4740 = vcombine.high %v4732, %v4732
      %v4741 = vcombine.high %v4739, %v4739
      %v4743 = vunpack.c.l.s4 1966171168
      %v4744 = vunpack.c.0.s8 %v4743
      %v4745 = vlaneseq
      %v4746 = vshrl.u32 %v4745, 7
      %v4747 = vsub.s32 %v4744, %v4746
      %v4748 = vrot.slane %v256, %v4747
      %v4749 = vcombine.high %v4748, %v4748
      %v4751 = vunpack.c.l.s4 1966171168
      %v4752 = vunpack.c.0.s8 %v4751
      %v4753 = vlaneseq
      %v4754 = vshrl.u32 %v4753, 7
      %v4755 = vsub.s32 %v4752, %v4754
      %v4756 = vrot.slane %v4748, %v4755
      %v4758 = vunpack.c.l.s4 1966171168
      %v4759 = vunpack.c.0.s8 %v4758
      %v4760 = vlaneseq
      %v4761 = vshrl.u32 %v4760, 7
      %v4762 = vsub.s32 %v4759, %v4761
      %v4763 = vrot.slane %v4749, %v4762
      %v4764 = vcombine.high %v4756, %v4756
      %v4765 = vcombine.high %v4763, %v4763
      %v4767 = vunpack.c.l.s4 1966171168
      %v4768 = vunpack.c.0.s8 %v4767
      %v4769 = vlaneseq
      %v4770 = vshrl.u32 %v4769, 7
      %v4771 = vsub.s32 %v4768, %v4770
      %v4772 = vrot.slane %v257, %v4771
      %v4773 = vcombine.high %v4772, %v4772
      %v4775 = vunpack.c.l.s4 1966171168
      %v4776 = vunpack.c.0.s8 %v4775
      %v4777 = vlaneseq
      %v4778 = vshrl.u32 %v4777, 7
      %v4779 = vsub.s32 %v4776, %v4778
      %v4780 = vrot.slane %v4772, %v4779
      %v4782 = vunpack.c.l.s4 1966171168
      %v4783 = vunpack.c.0.s8 %v4782
      %v4784 = vlaneseq
      %v4785 = vshrl.u32 %v4784, 7
      %v4786 = vsub.s32 %v4783, %v4785
      %v4787 = vrot.slane %v4773, %v4786
      %v4788 = vcombine.high %v4780, %v4780
      %v4789 = vcombine.high %v4787, %v4787
      %v4791 = vunpack.c.l.s4 1966171168
      %v4792 = vunpack.c.0.s8 %v4791
      %v4793 = vlaneseq
      %v4794 = vshrl.u32 %v4793, 7
      %v4795 = vsub.s32 %v4792, %v4794
      %v4796 = vrot.slane %v258, %v4795
      %v4797 = vcombine.high %v4796, %v4796
      %v4799 = vunpack.c.l.s4 1966171168
      %v4800 = vunpack.c.0.s8 %v4799
      %v4801 = vlaneseq
      %v4802 = vshrl.u32 %v4801, 7
      %v4803 = vsub.s32 %v4800, %v4802
      %v4804 = vrot.slane %v4796, %v4803
      %v4806 = vunpack.c.l.s4 1966171168
      %v4807 = vunpack.c.0.s8 %v4806
      %v4808 = vlaneseq
      %v4809 = vshrl.u32 %v4808, 7
      %v4810 = vsub.s32 %v4807, %v4809
      %v4811 = vrot.slane %v4797, %v4810
      %v4812 = vcombine.high %v4804, %v4804
      %v4813 = vcombine.high %v4811, %v4811
      %v4815 = vunpack.c.l.s4 1966171168
      %v4816 = vunpack.c.0.s8 %v4815
      %v4817 = vlaneseq
      %v4818 = vshrl.u32 %v4817, 7
      %v4819 = vsub.s32 %v4816, %v4818
      %v4820 = vrot.slane %v259, %v4819
      %v4821 = vcombine.high %v4820, %v4820
      %v4823 = vunpack.c.l.s4 1966171168
      %v4824 = vunpack.c.0.s8 %v4823
      %v4825 = vlaneseq
      %v4826 = vshrl.u32 %v4825, 7
      %v4827 = vsub.s32 %v4824, %v4826
      %v4828 = vrot.slane %v4820, %v4827
      %v4830 = vunpack.c.l.s4 1966171168
      %v4831 = vunpack.c.0.s8 %v4830
      %v4832 = vlaneseq
      %v4833 = vshrl.u32 %v4832, 7
      %v4834 = vsub.s32 %v4831, %v4833
      %v4835 = vrot.slane %v4821, %v4834
      %v4836 = vcombine.high %v4828, %v4828
      %v4837 = vcombine.high %v4835, %v4835
      %v4838 = vlaneseq
      %v4839 = vshrl.u32 %v4838, 7
      %v4840 = vsub.s32 0, %v4839
      %v4841 = vrot.slane %v4660, %v4840
      %v4842 = vlaneseq
      %v4843 = vshrl.u32 %v4842, 7
      %v4844 = vsub.s32 0, %v4843
      %v4845 = vrot.slane %v4667, %v4844
      %v4846 = vlaneseq
      %v4847 = vshrl.u32 %v4846, 7
      %v4848 = vsub.s32 0, %v4847
      %v4849 = vrot.slane %v4668, %v4848
      %v4850 = vlaneseq
      %v4851 = vshrl.u32 %v4850, 7
      %v4852 = vsub.s32 0, %v4851
      %v4853 = vrot.slane %v4669, %v4852
      %v4854 = vlaneseq
      %v4855 = vshrl.u32 %v4854, 7
      %v4856 = vsub.s32 0, %v4855
      %v4857 = vrot.slane %v4684, %v4856
      %v4858 = vlaneseq
      %v4859 = vshrl.u32 %v4858, 7
      %v4860 = vsub.s32 0, %v4859
      %v4861 = vrot.slane %v4691, %v4860
      %v4862 = vlaneseq
      %v4863 = vshrl.u32 %v4862, 7
      %v4864 = vsub.s32 0, %v4863
      %v4865 = vrot.slane %v4692, %v4864
      %v4866 = vlaneseq
      %v4867 = vshrl.u32 %v4866, 7
      %v4868 = vsub.s32 0, %v4867
      %v4869 = vrot.slane %v4693, %v4868
      %v4870 = vlaneseq
      %v4871 = vshrl.u32 %v4870, 7
      %v4872 = vsub.s32 0, %v4871
      %v4873 = vrot.slane %v4708, %v4872
      %v4874 = vlaneseq
      %v4875 = vshrl.u32 %v4874, 7
      %v4876 = vsub.s32 0, %v4875
      %v4877 = vrot.slane %v4715, %v4876
      %v4878 = vlaneseq
      %v4879 = vshrl.u32 %v4878, 7
      %v4880 = vsub.s32 0, %v4879
      %v4881 = vrot.slane %v4716, %v4880
      %v4882 = vlaneseq
      %v4883 = vshrl.u32 %v4882, 7
      %v4884 = vsub.s32 0, %v4883
      %v4885 = vrot.slane %v4717, %v4884
      %v4886 = vlaneseq
      %v4887 = vshrl.u32 %v4886, 7
      %v4888 = vsub.s32 0, %v4887
      %v4889 = vrot.slane %v4732, %v4888
      %v4890 = vlaneseq
      %v4891 = vshrl.u32 %v4890, 7
      %v4892 = vsub.s32 0, %v4891
      %v4893 = vrot.slane %v4739, %v4892
      %v4894 = vlaneseq
      %v4895 = vshrl.u32 %v4894, 7
      %v4896 = vsub.s32 0, %v4895
      %v4897 = vrot.slane %v4740, %v4896
      %v4898 = vlaneseq
      %v4899 = vshrl.u32 %v4898, 7
      %v4900 = vsub.s32 0, %v4899
      %v4901 = vrot.slane %v4741, %v4900
      %v4902 = vlaneseq
      %v4903 = vshrl.u32 %v4902, 7
      %v4904 = vsub.s32 0, %v4903
      %v4905 = vrot.slane %v4756, %v4904
      %v4906 = vlaneseq
      %v4907 = vshrl.u32 %v4906, 7
      %v4908 = vsub.s32 0, %v4907
      %v4909 = vrot.slane %v4763, %v4908
      %v4910 = vlaneseq
      %v4911 = vshrl.u32 %v4910, 7
      %v4912 = vsub.s32 0, %v4911
      %v4913 = vrot.slane %v4764, %v4912
      %v4914 = vlaneseq
      %v4915 = vshrl.u32 %v4914, 7
      %v4916 = vsub.s32 0, %v4915
      %v4917 = vrot.slane %v4765, %v4916
      %v4918 = vlaneseq
      %v4919 = vshrl.u32 %v4918, 7
      %v4920 = vsub.s32 0, %v4919
      %v4921 = vrot.slane %v4780, %v4920
      %v4922 = vlaneseq
      %v4923 = vshrl.u32 %v4922, 7
      %v4924 = vsub.s32 0, %v4923
      %v4925 = vrot.slane %v4787, %v4924
      %v4926 = vlaneseq
      %v4927 = vshrl.u32 %v4926, 7
      %v4928 = vsub.s32 0, %v4927
      %v4929 = vrot.slane %v4788, %v4928
      %v4930 = vlaneseq
      %v4931 = vshrl.u32 %v4930, 7
      %v4932 = vsub.s32 0, %v4931
      %v4933 = vrot.slane %v4789, %v4932
      %v4934 = vlaneseq
      %v4935 = vshrl.u32 %v4934, 7
      %v4936 = vsub.s32 0, %v4935
      %v4937 = vrot.slane %v4804, %v4936
      %v4938 = vlaneseq
      %v4939 = vshrl.u32 %v4938, 7
      %v4940 = vsub.s32 0, %v4939
      %v4941 = vrot.slane %v4811, %v4940
      %v4942 = vlaneseq
      %v4943 = vshrl.u32 %v4942, 7
      %v4944 = vsub.s32 0, %v4943
      %v4945 = vrot.slane %v4812, %v4944
      %v4946 = vlaneseq
      %v4947 = vshrl.u32 %v4946, 7
      %v4948 = vsub.s32 0, %v4947
      %v4949 = vrot.slane %v4813, %v4948
      %v4950 = vlaneseq
      %v4951 = vshrl.u32 %v4950, 7
      %v4952 = vsub.s32 0, %v4951
      %v4953 = vrot.slane %v4828, %v4952
      %v4954 = vlaneseq
      %v4955 = vshrl.u32 %v4954, 7
      %v4956 = vsub.s32 0, %v4955
      %v4957 = vrot.slane %v4835, %v4956
      %v4958 = vlaneseq
      %v4959 = vshrl.u32 %v4958, 7
      %v4960 = vsub.s32 0, %v4959
      %v4961 = vrot.slane %v4836, %v4960
      %v4962 = vlaneseq
      %v4963 = vshrl.u32 %v4962, 7
      %v4964 = vsub.s32 0, %v4963
      %v4965 = vrot.slane %v4837, %v4964
      %v4998 = vmul.f32 %v4428, %v4841
      %v4999 = vmul.f32 %v4435, %v4845
      %v5000 = vmul.f32 %v4442, %v4849
      %v5001 = vmul.f32 %v4449, %v4853
      %v5002 = vmul.f32 %v4456, %v4857
      %v5003 = vmul.f32 %v4463, %v4861
      %v5004 = vmul.f32 %v4470, %v4865
      %v5005 = vmul.f32 %v4477, %v4869
      %v5006 = vmul.f32 %v4484, %v4873
      %v5007 = vmul.f32 %v4491, %v4877
      %v5008 = vmul.f32 %v4498, %v4881
      %v5009 = vmul.f32 %v4505, %v4885
      %v5010 = vmul.f32 %v4512, %v4889
      %v5011 = vmul.f32 %v4519, %v4893
      %v5012 = vmul.f32 %v4526, %v4897
      %v5013 = vmul.f32 %v4533, %v4901
      %v5014 = vmul.f32 %v4540, %v4905
      %v5015 = vmul.f32 %v4547, %v4909
      %v5016 = vmul.f32 %v4554, %v4913
      %v5017 = vmul.f32 %v4561, %v4917
      %v5018 = vmul.f32 %v4568, %v4921
      %v5019 = vmul.f32 %v4575, %v4925
      %v5020 = vmul.f32 %v4582, %v4929
      %v5021 = vmul.f32 %v4589, %v4933
      %v5022 = vmul.f32 %v4596, %v4937
      %v5023 = vmul.f32 %v4603, %v4941
      %v5024 = vmul.f32 %v4610, %v4945
      %v5025 = vmul.f32 %v4617, %v4949
      %v5026 = vmul.f32 %v4624, %v4953
      %v5027 = vmul.f32 %v4631, %v4957
      %v5028 = vmul.f32 %v4638, %v4961
      %v5029 = vmul.f32 %v4645, %v4965
      %vm5030 = vcmask 257024
      %v5031 = vsel %vm5030, %v4998, 0.0
      %v5032 = vsel %vm5030, %v4999, 0.0
      %v5033 = vadd.f32 %v5031, %v5032
      %v5034 = vsel %vm5030, %v5000, 0.0
      %v5035 = vadd.f32 %v5033, %v5034
      %v5036 = vsel %vm5030, %v5001, 0.0
      %v5037 = vadd.f32 %v5035, %v5036
      %v5038 = vsel %vm5030, %v5002, 0.0
      %v5039 = vsel %vm5030, %v5003, 0.0
      %v5040 = vadd.f32 %v5038, %v5039
      %v5041 = vsel %vm5030, %v5004, 0.0
      %v5042 = vadd.f32 %v5040, %v5041
      %v5043 = vsel %vm5030, %v5005, 0.0
      %v5044 = vadd.f32 %v5042, %v5043
      %v5045 = vsel %vm5030, %v5006, 0.0
      %v5046 = vsel %vm5030, %v5007, 0.0
      %v5047 = vadd.f32 %v5045, %v5046
      %v5048 = vsel %vm5030, %v5008, 0.0
      %v5049 = vadd.f32 %v5047, %v5048
      %v5050 = vsel %vm5030, %v5009, 0.0
      %v5051 = vadd.f32 %v5049, %v5050
      %v5052 = vsel %vm5030, %v5010, 0.0
      %v5053 = vsel %vm5030, %v5011, 0.0
      %v5054 = vadd.f32 %v5052, %v5053
      %v5055 = vsel %vm5030, %v5012, 0.0
      %v5056 = vadd.f32 %v5054, %v5055
      %v5057 = vsel %vm5030, %v5013, 0.0
      %v5058 = vadd.f32 %v5056, %v5057
      %v5059 = vsel %vm5030, %v5014, 0.0
      %v5060 = vsel %vm5030, %v5015, 0.0
      %v5061 = vadd.f32 %v5059, %v5060
      %v5062 = vsel %vm5030, %v5016, 0.0
      %v5063 = vadd.f32 %v5061, %v5062
      %v5064 = vsel %vm5030, %v5017, 0.0
      %v5065 = vadd.f32 %v5063, %v5064
      %v5066 = vsel %vm5030, %v5018, 0.0
      %v5067 = vsel %vm5030, %v5019, 0.0
      %v5068 = vadd.f32 %v5066, %v5067
      %v5069 = vsel %vm5030, %v5020, 0.0
      %v5070 = vadd.f32 %v5068, %v5069
      %v5071 = vsel %vm5030, %v5021, 0.0
      %v5072 = vadd.f32 %v5070, %v5071
      %v5073 = vsel %vm5030, %v5022, 0.0
      %v5074 = vsel %vm5030, %v5023, 0.0
      %v5075 = vadd.f32 %v5073, %v5074
      %v5076 = vsel %vm5030, %v5024, 0.0
      %v5077 = vadd.f32 %v5075, %v5076
      %v5078 = vsel %vm5030, %v5025, 0.0
      %v5079 = vadd.f32 %v5077, %v5078
      %v5080 = vsel %vm5030, %v5026, 0.0
      %v5081 = vsel %vm5030, %v5027, 0.0
      %v5082 = vadd.f32 %v5080, %v5081
      %v5083 = vsel %vm5030, %v5028, 0.0
      %v5084 = vadd.f32 %v5082, %v5083
      %v5085 = vsel %vm5030, %v5029, 0.0
      %v5086 = vadd.f32 %v5084, %v5085
      %v5087 = vcombine.low %v5037, %v5051
      %v5089 = vunpack.c.l.s4 1983009808
      %v5090 = vunpack.c.0.s8 %v5089
      %v5091 = vlaneseq
      %v5092 = vshrl.u32 %v5091, 7
      %v5093 = vsub.s32 %v5090, %v5092
      %v5094 = vrot.slane %v5087, %v5093
      %v5095 = vcombine.low %v5044, %v5058
      %v5097 = vunpack.c.l.s4 1983009808
      %v5098 = vunpack.c.0.s8 %v5097
      %v5099 = vlaneseq
      %v5100 = vshrl.u32 %v5099, 7
      %v5101 = vsub.s32 %v5098, %v5100
      %v5102 = vrot.slane %v5095, %v5101
      %v5103 = vcombine.low %v5065, %v5079
      %v5105 = vunpack.c.l.s4 1983009808
      %v5106 = vunpack.c.0.s8 %v5105
      %v5107 = vlaneseq
      %v5108 = vshrl.u32 %v5107, 7
      %v5109 = vsub.s32 %v5106, %v5108
      %v5110 = vrot.slane %v5103, %v5109
      %v5111 = vcombine.low %v5072, %v5086
      %v5113 = vunpack.c.l.s4 1983009808
      %v5114 = vunpack.c.0.s8 %v5113
      %v5115 = vlaneseq
      %v5116 = vshrl.u32 %v5115, 7
      %v5117 = vsub.s32 %v5114, %v5116
      %v5118 = vrot.slane %v5111, %v5117
      %v5119 = vcombine.low %v5094, %v5102
      %v5120 = vcombine.high %v5094, %v5102
      %v5122 = vunpack.c.l.s4 1934713408
      %v5123 = vunpack.c.0.s8 %v5122
      %v5124 = vlaneseq
      %v5125 = vshrl.u32 %v5124, 7
      %v5126 = vsub.s32 %v5123, %v5125
      %v5127 = vrot.slane %v5119, %v5126
      %v5129 = vunpack.c.l.s4 1934713408
      %v5130 = vunpack.c.0.s8 %v5129
      %v5131 = vlaneseq
      %v5132 = vshrl.u32 %v5131, 7
      %v5133 = vsub.s32 %v5130, %v5132
      %v5134 = vrot.slane %v5120, %v5133
      %v5135 = vcombine.low %v5110, %v5118
      %v5136 = vcombine.high %v5110, %v5118
      %v5138 = vunpack.c.l.s4 1934713408
      %v5139 = vunpack.c.0.s8 %v5138
      %v5140 = vlaneseq
      %v5141 = vshrl.u32 %v5140, 7
      %v5142 = vsub.s32 %v5139, %v5141
      %v5143 = vrot.slane %v5135, %v5142
      %v5145 = vunpack.c.l.s4 1934713408
      %v5146 = vunpack.c.0.s8 %v5145
      %v5147 = vlaneseq
      %v5148 = vshrl.u32 %v5147, 7
      %v5149 = vsub.s32 %v5146, %v5148
      %v5150 = vrot.slane %v5136, %v5149
      %v5151 = vcombine.low %v5127, %v5143
      %v5152 = vcombine.high %v5127, %v5143
      %v5153 = vcombine.low %v5134, %v5150
      %v5154 = vcombine.high %v5134, %v5150
      %5156 = vrot.lane.b32.xlu0 %v5152, 32
      %v5157 = vpop.permute.xlu0 %5156
      %5160 = vrot.lane.b32.xlu0 %v5153, 64
      %v5161 = vpop.permute.xlu0 %5160
      %5164 = vrot.lane.b32.xlu0 %v5154, 96
      %v5165 = vpop.permute.xlu0 %5164
      %v5167 = vsel %vm301, %v5151, %v5157
      %v5168 = vsel %vm2315, %v5167, %v5161
      %vm5169 = vcmask 785408
      %v5170 = vsel %vm5169, %v5168, %v5165
      %5171 = vst [vmem:[%s251] sm:$0xff] %v5170
      %p5172 = scmp.lt.s32.totalorder %s17, 1
      %s5173 = scalar_select %p5172, %s17, 1
      %s5174 = smul.addr %s5173, 8
      %s5175 = scalar_lea.vmem %s6, %s5174
      // Predicated region
      $region45: #{attention_layer.1} parent=43 // pred_check
        %p5176 = pneg %p166
      $region46: #{attention_layer.1} parent=43 // pred_check_branch
        %5178 = sbr.rel (%p5176) target = $region48
      $region47: #{attention_layer.1} parent=43 // pred_region
        _
      $region48: #{attention_layer.1} parent=43 // pred_fallthru
        _
    $region44: #{attention_layer.1} parent=5 // pred_fallthru
      _
    %p5179 = scmp.le.s32.totalorder 2, %s12
    // Predicated region
    $region49: #{attention_layer.1} parent=5 // pred_check
      %p5180 = pneg %p5179
    $region50: #{attention_layer.1} parent=5 // pred_check_branch
      %5182 = sbr.rel (%p5180) target = $region52
    $region51: #{attention_layer.1} parent=5 // pred_region
      %s5183 = ssub.s32 %s12, 2
      // Predicated region
      $region53: #{attention_layer.1} parent=51 // pred_check
        %p5184 = pneg %p172
      $region54: #{attention_layer.1} parent=51 // pred_check_branch
        %5186 = sbr.rel (%p5184) target = $region56
      $region55: #{attention_layer.1} parent=51 // pred_region
        %p5187 = scmp.lt.s32.totalorder %s18, 1
        %s5188 = scalar_select %p5187, %s18, 1
        %s5189 = smul.addr %s5188, 8
        %s5190 = scalar_lea.vmem %s6, %s5189
      $region56: #{attention_layer.1} parent=51 // pred_fallthru
        _
    $region52: #{attention_layer.1} parent=5 // pred_fallthru
      _
  $region6: #{attention_layer.1} parent=0 // loop_footer
    %s16 = sadd.s32 1, %s12
  $region7: #{attention_layer.1} parent=0 // loop_footer_branch
    %11 = sbr.rel target = $region3
  $region8: #{attention_layer.1} parent=0 // loop_exit
    _

</llo_original>
